<compile_context>
chip_gen: v6e
topology: v6e:2x2x1
jax: 0.10.0
libtpu: 0.0.40
codegen_flags: <defaults>
</compile_context>

<pallas_src>
import math

import jax
import jax.numpy as jnp
from jax.experimental import pallas as pl
from jax.experimental.pallas import tpu as pltpu


# --------------------------------------------------------------------------- #
# Fused kernel
# --------------------------------------------------------------------------- #

def _fused_subsample_kernel(taps_ref, w1_ref, b1_ref, w2_ref, b2_ref,
                            wl_ref, bl_ref, pe_ref, o_ref,
                            y1_scr, stage_scr):
    """Fused Conv2d(1,C,3,2)+ReLU -> Conv2d(C,C,3,2)+ReLU -> Linear -> PE.

    taps_ref : (1, 1, F1, TQ2, 9) bf16  conv1 im2col, blocked & time-parity split:
               taps[f1, p*(tq+1)+r, 3i+j] = x[4*(t0+r) + 2p + i, 2*f1 + j]
    w1_ref   : (9, C)        bf16
    b1_ref   : (1, C)        f32
    w2_ref   : (9, C, C)     bf16   w2[3i+j, ci, co]
    b2_ref   : (1, C)        f32
    wl_ref   : (F2*C, odim)  bf16   row index = f2*C + c (torch channel-major
                                    flatten folded into the weight)
    bl_ref   : (1, odim)     f32
    pe_ref   : (tq, odim)    f32    PE rows of this time tile
    o_ref    : (1, tq, odim)
    y1_scr   : (F1, TQ2, C)  bf16 scratch -- conv1 activation, never hits HBM
    stage_scr: (tq, F2*C)    bf16 scratch -- staged Linear input
    """
    F1 = taps_ref.shape[2]
    tq2 = taps_ref.shape[3]
    C = w1_ref.shape[1]
    tq = o_ref.shape[1]
    odim = o_ref.shape[2]
    F2 = wl_ref.shape[0] // C
    tq1 = tq2 // 2                      # rows per time parity (= tq + 1)

    # ---- conv1 + ReLU: one MXU dot per y1 frequency column ----------------
    b1b = jnp.broadcast_to(b1_ref[...], (tq2, C))            # hoisted broadcast
    for f1 in range(F1):
        y = jnp.dot(taps_ref[0, 0, f1, :, :], w1_ref[...],
                    preferred_element_type=jnp.float32)      # (TQ2, C) f32
        y1_scr[f1, :, :] = jnp.maximum(y + b1b, 0.0).astype(y1_scr.dtype)

    # ---- conv2 + ReLU: 9 MXU dots per output column, straight f32 chain ---
    b2b = jnp.broadcast_to(b2_ref[...], (tq, C))             # hoisted broadcast
    # time tap i -> row offset in y1_scr's parity-split time axis:
    #   i=0 -> even rows r,  i=1 -> odd rows r,  i=2 -> even rows r+1
    tap_row_start = (0, tq1, 1)
    for f2 in range(F2):
        acc = jnp.zeros((tq, C), jnp.float32)
        for i in range(3):
            base = tap_row_start[i]
            for j in range(3):
                tap = y1_scr[2 * f2 + j, base:base + tq, :]            # (tq, C) bf16
                acc = acc + jnp.dot(tap, w2_ref[3 * i + j, :, :],
                                    preferred_element_type=jnp.float32)
        y2 = jnp.maximum(acc + b2b, 0.0).astype(stage_scr.dtype)
        stage_scr[:, f2 * C:(f2 + 1) * C] = y2                         # stage for Linear

    # ---- Linear (single big-K dot) + PositionalEncoding -------------------
    lin = jnp.dot(stage_scr[...], wl_ref[...],
                  preferred_element_type=jnp.float32)                  # (tq, odim)
    out = (lin + bl_ref[...]) * math.sqrt(odim) + pe_ref[...]
    # TODO(synk): dropout inside PositionalEncoding omitted (inference mode).
    o_ref[0, :, :] = out.astype(o_ref.dtype)


# --------------------------------------------------------------------------- #
# Chip-aware tiling helpers
# --------------------------------------------------------------------------- #

def _round_up(v, m):
    return ((v + m - 1) // m) * m


def _chip_info():
    """(VMEM capacity bytes, MXU-native M) with safe fallbacks."""
    kind = ""
    try:
        kind = jax.devices()[0].device_kind.lower()
    except Exception:
        pass
    vmem = None
    try:
        vmem = int(pltpu.get_tpu_info().vmem_capacity_bytes)
    except Exception:
        vmem = None
    if vmem is None:
        vmem = (64 if "v7" in kind else 128) * 1024 * 1024
    mxu_m = 256 if ("v6" in kind or "v7" in kind) else 128
    return vmem, mxu_m


def _pick_time_tile(T2, F1, F2, C, odim, vmem_bytes, mxu_m):
    """Largest time tile (rounded to the MXU-native M) whose VMEM working set
    -- double-buffered inputs/weights/output, single-buffered scratch and
    f32 temporaries, including lane padding -- fits the per-chip budget."""
    budget = int(vmem_bytes * 0.6)       # headroom for compiler-internal scratch

    def usage(tq):
        tq2 = 2 * (tq + 1)
        taps_blk = F1 * _round_up(tq2, 16) * 128 * 2            # bf16, 9 -> 128 lanes
        y1_sc = F1 * _round_up(tq2, 16) * _round_up(C, 128) * 2
        stage = _round_up(tq, 16) * _round_up(F2 * C, 128) * 2
        out_blk = _round_up(tq, 8) * _round_up(odim, 128) * 4
        pe_blk = out_blk
        weights = (9 * _round_up(C, 128) * 2
                   + 9 * C * _round_up(C, 128) * 2
                   + F2 * C * _round_up(odim, 128) * 2
                   + 2 * _round_up(C, 128) * 4 + _round_up(odim, 128) * 4)
        temps = 4 * _round_up(tq, 8) * (_round_up(C, 128) + _round_up(odim, 128)) * 4
        # NOTE: constant-index weight blocks would ideally be pl.Buffered(1)
        # (v7x VMEM saving); counted at 2x here to stay conservative.
        return 2 * (taps_blk + out_blk + pe_blk + weights) + y1_sc + stage + temps

    if usage(T2) <= budget or T2 <= 8:
        return T2
    cap = max(mxu_m, (T2 // mxu_m) * mxu_m)
    for tq in range(min(cap, 8 * mxu_m), 0, -mxu_m):
        if usage(tq) <= budget:
            return tq
    for tq in range(mxu_m - 8, 0, -8):
        if usage(tq) <= budget:
            return tq
    return 8


# --------------------------------------------------------------------------- #
# XLA-side prep (tiny vs. the activations) + wrapper
# --------------------------------------------------------------------------- #

def _build_conv1_taps(x, tq, nblk, F1):
    """bf16 conv1 im2col of x, pre-blocked and time-parity split.

    Returns (B, nblk, F1, 2*(tq+1), 9) with
      taps[b, t, f1, p*(tq+1)+r, 3i+j] = x[b, 4*(t*tq + r) + 2p + i, 2*f1 + j].
    x is tiny compared with the conv1 activation, so this pass is cheap; it
    replaces both the old f32 (B, F1, T1, 9) taps tensor and the y1 HBM
    round-trip entirely.
    """
    B, T, _ = x.shape
    tq1 = tq + 1
    G = nblk * tq + 1
    t_need = 4 * (G - 1) + 5
    x_pad = jnp.pad(x, ((0, 0), (0, max(0, t_need - T)), (0, 0)))
    gidx = jnp.arange(nblk)[:, None] * tq + jnp.arange(tq1)[None, :]   # (nblk, tq1)
    per_parity = []
    for p in range(2):
        taps9 = []
        for i in range(3):
            xs = x_pad[:, 2 * p + i::4, :][:, :G, :]                   # (B, G, idim)
            for j in range(3):
                taps9.append(xs[:, :, j::2][:, :, :F1])                # (B, G, F1)
        per_parity.append(jnp.stack(taps9, axis=-1)[:, gidx])          # (B, nblk, tq1, F1, 9)
    taps = jnp.stack(per_parity, axis=2)                               # (B, nblk, 2, tq1, F1, 9)
    taps = taps.transpose(0, 1, 4, 2, 3, 5)                            # (B, nblk, F1, 2, tq1, 9)
    return taps.reshape(B, nblk, F1, 2 * tq1, 9).astype(jnp.bfloat16)


def sinusoidal_pe(max_len, d):
    pos = jnp.arange(max_len, dtype=jnp.float32)[:, None]
    div = jnp.exp(jnp.arange(0, d, 2, dtype=jnp.float32) * -(math.log(10000.0) / d))
    pe = jnp.zeros((max_len, d), jnp.float32)
    pe = pe.at[:, 0::2].set(jnp.sin(pos * div))
    pe = pe.at[:, 1::2].set(jnp.cos(pos * div)[:, : d // 2])
    return pe


def conv2d_subsampling_forward(prep, x, x_mask, out_dtype=jnp.float32):
    """x: (B, T, idim) f32; x_mask: (B, 1, T) or None."""
    B, T, idim = x.shape
    C = prep["w1"].shape[1]
    odim = prep["wl"].shape[1]
    F1 = (idim - 3) // 2 + 1
    T1 = (T - 3) // 2 + 1
    F2 = (F1 - 3) // 2 + 1
    T2 = (T1 - 3) // 2 + 1
    assert prep["wl"].shape[0] == F2 * C, "linear weight layout mismatch"

    vmem_bytes, mxu_m = _chip_info()
    tq = _pick_time_tile(T2, F1, F2, C, odim, vmem_bytes, mxu_m)
    nblk = -(-T2 // tq)
    t2_pad = nblk * tq
    tq2 = 2 * (tq + 1)

    taps = _build_conv1_taps(x, tq, nblk, F1)          # (B, nblk, F1, TQ2, 9) bf16
    pe = sinusoidal_pe(t2_pad, odim)                   # (T2pad, odim) f32

    flops = 2 * B * nblk * (tq2 * F1 * 9 * C           # conv1
                            + tq * F2 * 9 * C * C      # conv2
                            + tq * F2 * C * odim)      # linear
    bytes_accessed = (taps.size * 2 + pe.size * 4 + B * t2_pad * odim * 4
                      + (9 * C + 9 * C * C + F2 * C * odim) * 2
                      + (2 * C + odim) * 4)

    out = pl.pallas_call(
        _fused_subsample_kernel,
        out_shape=jax.ShapeDtypeStruct((B, t2_pad, odim), out_dtype),
        grid=(B, nblk),
        in_specs=[
            pl.BlockSpec((1, 1, F1, tq2, 9), lambda b, t: (b, t, 0, 0, 0)),
            pl.BlockSpec((9, C), lambda b, t: (0, 0)),            # resident
            pl.BlockSpec((1, C), lambda b, t: (0, 0)),
            pl.BlockSpec((9, C, C), lambda b, t: (0, 0, 0)),      # resident
            pl.BlockSpec((1, C), lambda b, t: (0, 0)),
            pl.BlockSpec((F2 * C, odim), lambda b, t: (0, 0)),    # resident
            pl.BlockSpec((1, odim), lambda b, t: (0, 0)),
            pl.BlockSpec((tq, odim), lambda b, t: (t, 0)),        # PE per tile
        ],
        out_specs=pl.BlockSpec((1, tq, odim), lambda b, t: (b, t, 0)),
        scratch_shapes=[
            pltpu.VMEM((F1, tq2, C), jnp.bfloat16),               # y1 (never in HBM)
            pltpu.VMEM((tq, F2 * C), jnp.bfloat16),               # staged Linear input
        ],
        compiler_params=pltpu.CompilerParams(
            dimension_semantics=("parallel", "parallel"),
            vmem_limit_bytes=int(vmem_bytes * 0.75)),
        cost_estimate=pl.CostEstimate(
            flops=flops, transcendentals=0, bytes_accessed=bytes_accessed),
    )(taps, prep["w1"], prep["b1"], prep["w2"], prep["b2"],
      prep["wl"], prep["bl"], pe)

    out = out[:, :T2, :]
    if x_mask is None:
        return out, None
    return out, x_mask[:, :, :-2:2][:, :, :-2:2]


# --------------------------------------------------------------------------- #
# Parameters (torch-layout init + one-time kernel-layout prep, outside jit)
# --------------------------------------------------------------------------- #

def init_params(key, idim, odim):
    f2 = ((idim - 1) // 2 - 1) // 2
    k1, k2, k3, k4, k5, k6 = jax.random.split(key, 6)
    return {
        "w_conv1": jax.random.normal(k1, (odim, 1, 3, 3), jnp.float32) * 0.1,
        "b_conv1": jax.random.normal(k2, (odim,), jnp.float32) * 0.1,
        "w_conv2": jax.random.normal(k3, (odim, odim, 3, 3), jnp.float32) * 0.05,
        "b_conv2": jax.random.normal(k4, (odim,), jnp.float32) * 0.05,
        "w_lin": jax.random.normal(k5, (odim, odim * f2), jnp.float32) * 0.05,
        "b_lin": jax.random.normal(k6, (odim,), jnp.float32) * 0.05,
    }


def prepare_params(params, idim, odim):
    """One-time (model-load) weight prep: kernel layouts + bf16 MXU operands.
    Torch's channel-major flatten (transpose(1,2).view) is folded into the
    Linear weight:  wl[f2*C + c, n] = W[n, c*F2 + f2]."""
    F1 = (idim - 3) // 2 + 1
    F2 = (F1 - 3) // 2 + 1
    w1 = (params["w_conv1"][:, 0].transpose(1, 2, 0)
          .reshape(9, odim).astype(jnp.bfloat16))
    b1 = params["b_conv1"].reshape(1, odim).astype(jnp.float32)
    w2 = (params["w_conv2"].transpose(2, 3, 1, 0)
          .reshape(9, odim, odim).astype(jnp.bfloat16))
    b2 = params["b_conv2"].reshape(1, odim).astype(jnp.float32)
    wl = (params["w_lin"].reshape(odim, odim, F2)    # [n, c, f2]
          .transpose(2, 1, 0)                        # [f2, c, n]
          .reshape(F2 * odim, odim).astype(jnp.bfloat16))
    bl = params["b_lin"].reshape(1, odim).astype(jnp.float32)
    return {"w1": w1, "b1": b1, "w2": w2, "b2": b2, "wl": wl, "bl": bl}


def _reference_forward(params, x, odim):
    """Pure-JAX (XLA) reference matching the PyTorch module, for verification."""
    h = x[:, None, :, :]
    h = jax.lax.conv_general_dilated(h, params["w_conv1"], (2, 2), "VALID",
                                     dimension_numbers=("NCHW", "OIHW", "NCHW"))
    h = jnp.maximum(h + params["b_conv1"][None, :, None, None], 0.0)
    h = jax.lax.conv_general_dilated(h, params["w_conv2"], (2, 2), "VALID",
                                     dimension_numbers=("NCHW", "OIHW", "NCHW"))
    h = jnp.maximum(h + params["b_conv2"][None, :, None, None], 0.0)
    b, c, t, f = h.shape
    feat = h.transpose(0, 2, 1, 3).reshape(b, t, c * f)
    lin = feat @ params["w_lin"].T + params["b_lin"]
    return lin * math.sqrt(odim) + sinusoidal_pe(t, odim)[None]


if __name__ == "__main__":
    key = jax.random.PRNGKey(0)
    B, T, idim, odim = 2, 16, 16, 32
    kx, kp = jax.random.split(key)

    x = jax.random.normal(kx, (B, T, idim), jnp.float32)
    x_mask = jnp.ones((B, 1, T), dtype=jnp.bool_)
    params = init_params(kp, idim, odim)

    prep = prepare_params(params, idim, odim)          # once, outside jit
    fwd = jax.jit(conv2d_subsampling_forward)
    out, mask = fwd(prep, x, x_mask)
    jax.block_until_ready(out)
    jax.block_until_ready(mask)

    # T2 = ((T-1)//2 - 1)//2 = 3, feature dim = odim
    assert out.shape == (B, 3, odim), out.shape
    assert mask.shape == (B, 1, 3), mask.shape

    # numeric check vs pure-JAX reference (bf16 MXU operands -> loose tol)
    ref = _reference_forward(params, x, odim)
    err = float(jnp.max(jnp.abs(out - ref)))
    assert err < 0.15, f"max abs error vs reference: {err}"

    print("KERNEL_OK")
</pallas_src>

<mosaic_0001>
module attributes {stable_mosaic.version = 11 : i64} {
  func.func @_fused_subsample_kernel(%arg0: i32, %arg1: i32, %arg2: memref<1x1x7x8x9xbf16, #tpu.memory_space<vmem>>, %arg3: memref<9x32xbf16, #tpu.memory_space<vmem>>, %arg4: memref<1x32xf32, #tpu.memory_space<vmem>>, %arg5: memref<9x32x32xbf16, #tpu.memory_space<vmem>>, %arg6: memref<1x32xf32, #tpu.memory_space<vmem>>, %arg7: memref<96x32xbf16, #tpu.memory_space<vmem>>, %arg8: memref<1x32xf32, #tpu.memory_space<vmem>>, %arg9: memref<3x32xf32, #tpu.memory_space<vmem>>, %arg10: memref<1x3x32xf32, #tpu.memory_space<vmem>>, %arg11: memref<7x8x32xbf16, #tpu.memory_space<vmem>>, %arg12: memref<3x96xbf16, #tpu.memory_space<vmem>>) attributes {dimension_semantics = [#tpu.dimension_semantics<parallel>, #tpu.dimension_semantics<parallel>], iteration_bounds = array<i64: 2, 1>, scalar_prefetch = 0 : i64, scratch_operands = 2 : i64, tpu.core_type = #tpu.core_type<tc>, window_params = [{transform_indices = @transform_0, window_bounds = array<i64: 1, 1, 7, 8, 9>}, {pipeline_mode = #tpu.pipeline_mode<synchronous>, transform_indices = @transform_1, window_bounds = array<i64: 9, 32>}, {pipeline_mode = #tpu.pipeline_mode<synchronous>, transform_indices = @transform_2, window_bounds = array<i64: 1, 32>}, {pipeline_mode = #tpu.pipeline_mode<synchronous>, transform_indices = @transform_3, window_bounds = array<i64: 9, 32, 32>}, {pipeline_mode = #tpu.pipeline_mode<synchronous>, transform_indices = @transform_4, window_bounds = array<i64: 1, 32>}, {pipeline_mode = #tpu.pipeline_mode<synchronous>, transform_indices = @transform_5, window_bounds = array<i64: 96, 32>}, {pipeline_mode = #tpu.pipeline_mode<synchronous>, transform_indices = @transform_6, window_bounds = array<i64: 1, 32>}, {transform_indices = @transform_7, window_bounds = array<i64: 3, 32>}, {transform_indices = @transform_8, window_bounds = array<i64: 1, 3, 32>}]} {
    %c0 = arith.constant 0 : index
    %c0_0 = arith.constant 0 : index
    %0 = vector.load %arg4[%c0, %c0_0] : memref<1x32xf32, #tpu.memory_space<vmem>>, vector<1x32xf32>
    %1 = vector.shape_cast %0 : vector<1x32xf32> to vector<1x32xf32>
    %2 = vector.broadcast %1 : vector<1x32xf32> to vector<8x32xf32>
    %c0_1 = arith.constant 0 : index
    %c0_2 = arith.constant 0 : index
    %c0_3 = arith.constant 0 : index
    %c0_4 = arith.constant 0 : index
    %c0_5 = arith.constant 0 : index
    %3 = vector.load %arg2[%c0_1, %c0_2, %c0_3, %c0_4, %c0_5] : memref<1x1x7x8x9xbf16, #tpu.memory_space<vmem>>, vector<1x1x1x8x9xbf16>
    %4 = vector.shape_cast %3 : vector<1x1x1x8x9xbf16> to vector<8x9xbf16>
    %c0_6 = arith.constant 0 : index
    %c0_7 = arith.constant 0 : index
    %5 = vector.load %arg3[%c0_6, %c0_7] : memref<9x32xbf16, #tpu.memory_space<vmem>>, vector<9x32xbf16>
    %cst = arith.constant dense<0.000000e+00> : vector<8x32xf32>
    %6 = tpu.matmul %4, %5, %cst {dimension_numbers = #tpu.dot_dimension_numbers<[1], [0], [0], [1], [0, 0, 1, 1], [], []>} : vector<8x9xbf16>, vector<9x32xbf16>, vector<8x32xf32> -> vector<8x32xf32>
    %7 = arith.addf %6, %2 : vector<8x32xf32>
    %cst_8 = arith.constant 0.000000e+00 : f32
    %8 = vector.broadcast %cst_8 : f32 to vector<8x32xf32>
    %9 = arith.maximumf %7, %8 : vector<8x32xf32>
    %10 = arith.truncf %9 : vector<8x32xf32> to vector<8x32xbf16>
    %c0_9 = arith.constant 0 : index
    %c0_10 = arith.constant 0 : index
    %c0_11 = arith.constant 0 : index
    %11 = vector.load %arg11[%c0_9, %c0_10, %c0_11] : memref<7x8x32xbf16, #tpu.memory_space<vmem>>, vector<1x8x32xbf16>
    %12 = vector.shape_cast %11 : vector<1x8x32xbf16> to vector<8x32xbf16>
    %13 = vector.shape_cast %10 : vector<8x32xbf16> to vector<1x8x32xbf16>
    tpu.vector_store %arg11[%c0_9, %c0_10, %c0_11], %13 {strides = array<i32>} : memref<7x8x32xbf16, #tpu.memory_space<vmem>>, vector<1x8x32xbf16>,
    %c0_12 = arith.constant 0 : index
    %c0_13 = arith.constant 0 : index
    %c1 = arith.constant 1 : index
    %c0_14 = arith.constant 0 : index
    %c0_15 = arith.constant 0 : index
    %14 = vector.load %arg2[%c0_12, %c0_13, %c1, %c0_14, %c0_15] : memref<1x1x7x8x9xbf16, #tpu.memory_space<vmem>>, vector<1x1x1x8x9xbf16>
    %15 = vector.shape_cast %14 : vector<1x1x1x8x9xbf16> to vector<8x9xbf16>
    %c0_16 = arith.constant 0 : index
    %c0_17 = arith.constant 0 : index
    %16 = vector.load %arg3[%c0_16, %c0_17] : memref<9x32xbf16, #tpu.memory_space<vmem>>, vector<9x32xbf16>
    %cst_18 = arith.constant dense<0.000000e+00> : vector<8x32xf32>
    %17 = tpu.matmul %15, %16, %cst_18 {dimension_numbers = #tpu.dot_dimension_numbers<[1], [0], [0], [1], [0, 0, 1, 1], [], []>} : vector<8x9xbf16>, vector<9x32xbf16>, vector<8x32xf32> -> vector<8x32xf32>
    %18 = arith.addf %17, %2 : vector<8x32xf32>
    %cst_19 = arith.constant 0.000000e+00 : f32
    %19 = vector.broadcast %cst_19 : f32 to vector<8x32xf32>
    %20 = arith.maximumf %18, %19 : vector<8x32xf32>
    %21 = arith.truncf %20 : vector<8x32xf32> to vector<8x32xbf16>
    %c1_20 = arith.constant 1 : index
    %c0_21 = arith.constant 0 : index
    %c0_22 = arith.constant 0 : index
    %22 = vector.load %arg11[%c1_20, %c0_21, %c0_22] : memref<7x8x32xbf16, #tpu.memory_space<vmem>>, vector<1x8x32xbf16>
    %23 = vector.shape_cast %22 : vector<1x8x32xbf16> to vector<8x32xbf16>
    %24 = vector.shape_cast %21 : vector<8x32xbf16> to vector<1x8x32xbf16>
    tpu.vector_store %arg11[%c1_20, %c0_21, %c0_22], %24 {strides = array<i32>} : memref<7x8x32xbf16, #tpu.memory_space<vmem>>, vector<1x8x32xbf16>,
    %c0_23 = arith.constant 0 : index
    %c0_24 = arith.constant 0 : index
    %c2 = arith.constant 2 : index
    %c0_25 = arith.constant 0 : index
    %c0_26 = arith.constant 0 : index
    %25 = vector.load %arg2[%c0_23, %c0_24, %c2, %c0_25, %c0_26] : memref<1x1x7x8x9xbf16, #tpu.memory_space<vmem>>, vector<1x1x1x8x9xbf16>
    %26 = vector.shape_cast %25 : vector<1x1x1x8x9xbf16> to vector<8x9xbf16>
    %c0_27 = arith.constant 0 : index
    %c0_28 = arith.constant 0 : index
    %27 = vector.load %arg3[%c0_27, %c0_28] : memref<9x32xbf16, #tpu.memory_space<vmem>>, vector<9x32xbf16>
    %cst_29 = arith.constant dense<0.000000e+00> : vector<8x32xf32>
    %28 = tpu.matmul %26, %27, %cst_29 {dimension_numbers = #tpu.dot_dimension_numbers<[1], [0], [0], [1], [0, 0, 1, 1], [], []>} : vector<8x9xbf16>, vector<9x32xbf16>, vector<8x32xf32> -> vector<8x32xf32>
    %29 = arith.addf %28, %2 : vector<8x32xf32>
    %cst_30 = arith.constant 0.000000e+00 : f32
    %30 = vector.broadcast %cst_30 : f32 to vector<8x32xf32>
    %31 = arith.maximumf %29, %30 : vector<8x32xf32>
    %32 = arith.truncf %31 : vector<8x32xf32> to vector<8x32xbf16>
    %c2_31 = arith.constant 2 : index
    %c0_32 = arith.constant 0 : index
    %c0_33 = arith.constant 0 : index
    %33 = vector.load %arg11[%c2_31, %c0_32, %c0_33] : memref<7x8x32xbf16, #tpu.memory_space<vmem>>, vector<1x8x32xbf16>
    %34 = vector.shape_cast %33 : vector<1x8x32xbf16> to vector<8x32xbf16>
    %35 = vector.shape_cast %32 : vector<8x32xbf16> to vector<1x8x32xbf16>
    tpu.vector_store %arg11[%c2_31, %c0_32, %c0_33], %35 {strides = array<i32>} : memref<7x8x32xbf16, #tpu.memory_space<vmem>>, vector<1x8x32xbf16>,
    %c0_34 = arith.constant 0 : index
    %c0_35 = arith.constant 0 : index
    %c3 = arith.constant 3 : index
    %c0_36 = arith.constant 0 : index
    %c0_37 = arith.constant 0 : index
    %36 = vector.load %arg2[%c0_34, %c0_35, %c3, %c0_36, %c0_37] : memref<1x1x7x8x9xbf16, #tpu.memory_space<vmem>>, vector<1x1x1x8x9xbf16>
    %37 = vector.shape_cast %36 : vector<1x1x1x8x9xbf16> to vector<8x9xbf16>
    %c0_38 = arith.constant 0 : index
    %c0_39 = arith.constant 0 : index
    %38 = vector.load %arg3[%c0_38, %c0_39] : memref<9x32xbf16, #tpu.memory_space<vmem>>, vector<9x32xbf16>
    %cst_40 = arith.constant dense<0.000000e+00> : vector<8x32xf32>
    %39 = tpu.matmul %37, %38, %cst_40 {dimension_numbers = #tpu.dot_dimension_numbers<[1], [0], [0], [1], [0, 0, 1, 1], [], []>} : vector<8x9xbf16>, vector<9x32xbf16>, vector<8x32xf32> -> vector<8x32xf32>
    %40 = arith.addf %39, %2 : vector<8x32xf32>
    %cst_41 = arith.constant 0.000000e+00 : f32
    %41 = vector.broadcast %cst_41 : f32 to vector<8x32xf32>
    %42 = arith.maximumf %40, %41 : vector<8x32xf32>
    %43 = arith.truncf %42 : vector<8x32xf32> to vector<8x32xbf16>
    %c3_42 = arith.constant 3 : index
    %c0_43 = arith.constant 0 : index
    %c0_44 = arith.constant 0 : index
    %44 = vector.load %arg11[%c3_42, %c0_43, %c0_44] : memref<7x8x32xbf16, #tpu.memory_space<vmem>>, vector<1x8x32xbf16>
    %45 = vector.shape_cast %44 : vector<1x8x32xbf16> to vector<8x32xbf16>
    %46 = vector.shape_cast %43 : vector<8x32xbf16> to vector<1x8x32xbf16>
    tpu.vector_store %arg11[%c3_42, %c0_43, %c0_44], %46 {strides = array<i32>} : memref<7x8x32xbf16, #tpu.memory_space<vmem>>, vector<1x8x32xbf16>,
    %c0_45 = arith.constant 0 : index
    %c0_46 = arith.constant 0 : index
    %c4 = arith.constant 4 : index
    %c0_47 = arith.constant 0 : index
    %c0_48 = arith.constant 0 : index
    %47 = vector.load %arg2[%c0_45, %c0_46, %c4, %c0_47, %c0_48] : memref<1x1x7x8x9xbf16, #tpu.memory_space<vmem>>, vector<1x1x1x8x9xbf16>
    %48 = vector.shape_cast %47 : vector<1x1x1x8x9xbf16> to vector<8x9xbf16>
    %c0_49 = arith.constant 0 : index
    %c0_50 = arith.constant 0 : index
    %49 = vector.load %arg3[%c0_49, %c0_50] : memref<9x32xbf16, #tpu.memory_space<vmem>>, vector<9x32xbf16>
    %cst_51 = arith.constant dense<0.000000e+00> : vector<8x32xf32>
    %50 = tpu.matmul %48, %49, %cst_51 {dimension_numbers = #tpu.dot_dimension_numbers<[1], [0], [0], [1], [0, 0, 1, 1], [], []>} : vector<8x9xbf16>, vector<9x32xbf16>, vector<8x32xf32> -> vector<8x32xf32>
    %51 = arith.addf %50, %2 : vector<8x32xf32>
    %cst_52 = arith.constant 0.000000e+00 : f32
    %52 = vector.broadcast %cst_52 : f32 to vector<8x32xf32>
    %53 = arith.maximumf %51, %52 : vector<8x32xf32>
    %54 = arith.truncf %53 : vector<8x32xf32> to vector<8x32xbf16>
    %c4_53 = arith.constant 4 : index
    %c0_54 = arith.constant 0 : index
    %c0_55 = arith.constant 0 : index
    %55 = vector.load %arg11[%c4_53, %c0_54, %c0_55] : memref<7x8x32xbf16, #tpu.memory_space<vmem>>, vector<1x8x32xbf16>
    %56 = vector.shape_cast %55 : vector<1x8x32xbf16> to vector<8x32xbf16>
    %57 = vector.shape_cast %54 : vector<8x32xbf16> to vector<1x8x32xbf16>
    tpu.vector_store %arg11[%c4_53, %c0_54, %c0_55], %57 {strides = array<i32>} : memref<7x8x32xbf16, #tpu.memory_space<vmem>>, vector<1x8x32xbf16>,
    %c0_56 = arith.constant 0 : index
    %c0_57 = arith.constant 0 : index
    %c5 = arith.constant 5 : index
    %c0_58 = arith.constant 0 : index
    %c0_59 = arith.constant 0 : index
    %58 = vector.load %arg2[%c0_56, %c0_57, %c5, %c0_58, %c0_59] : memref<1x1x7x8x9xbf16, #tpu.memory_space<vmem>>, vector<1x1x1x8x9xbf16>
    %59 = vector.shape_cast %58 : vector<1x1x1x8x9xbf16> to vector<8x9xbf16>
    %c0_60 = arith.constant 0 : index
    %c0_61 = arith.constant 0 : index
    %60 = vector.load %arg3[%c0_60, %c0_61] : memref<9x32xbf16, #tpu.memory_space<vmem>>, vector<9x32xbf16>
    %cst_62 = arith.constant dense<0.000000e+00> : vector<8x32xf32>
    %61 = tpu.matmul %59, %60, %cst_62 {dimension_numbers = #tpu.dot_dimension_numbers<[1], [0], [0], [1], [0, 0, 1, 1], [], []>} : vector<8x9xbf16>, vector<9x32xbf16>, vector<8x32xf32> -> vector<8x32xf32>
    %62 = arith.addf %61, %2 : vector<8x32xf32>
    %cst_63 = arith.constant 0.000000e+00 : f32
    %63 = vector.broadcast %cst_63 : f32 to vector<8x32xf32>
    %64 = arith.maximumf %62, %63 : vector<8x32xf32>
    %65 = arith.truncf %64 : vector<8x32xf32> to vector<8x32xbf16>
    %c5_64 = arith.constant 5 : index
    %c0_65 = arith.constant 0 : index
    %c0_66 = arith.constant 0 : index
    %66 = vector.load %arg11[%c5_64, %c0_65, %c0_66] : memref<7x8x32xbf16, #tpu.memory_space<vmem>>, vector<1x8x32xbf16>
    %67 = vector.shape_cast %66 : vector<1x8x32xbf16> to vector<8x32xbf16>
    %68 = vector.shape_cast %65 : vector<8x32xbf16> to vector<1x8x32xbf16>
    tpu.vector_store %arg11[%c5_64, %c0_65, %c0_66], %68 {strides = array<i32>} : memref<7x8x32xbf16, #tpu.memory_space<vmem>>, vector<1x8x32xbf16>,
    %c0_67 = arith.constant 0 : index
    %c0_68 = arith.constant 0 : index
    %c6 = arith.constant 6 : index
    %c0_69 = arith.constant 0 : index
    %c0_70 = arith.constant 0 : index
    %69 = vector.load %arg2[%c0_67, %c0_68, %c6, %c0_69, %c0_70] : memref<1x1x7x8x9xbf16, #tpu.memory_space<vmem>>, vector<1x1x1x8x9xbf16>
    %70 = vector.shape_cast %69 : vector<1x1x1x8x9xbf16> to vector<8x9xbf16>
    %c0_71 = arith.constant 0 : index
    %c0_72 = arith.constant 0 : index
    %71 = vector.load %arg3[%c0_71, %c0_72] : memref<9x32xbf16, #tpu.memory_space<vmem>>, vector<9x32xbf16>
    %cst_73 = arith.constant dense<0.000000e+00> : vector<8x32xf32>
    %72 = tpu.matmul %70, %71, %cst_73 {dimension_numbers = #tpu.dot_dimension_numbers<[1], [0], [0], [1], [0, 0, 1, 1], [], []>} : vector<8x9xbf16>, vector<9x32xbf16>, vector<8x32xf32> -> vector<8x32xf32>
    %73 = arith.addf %72, %2 : vector<8x32xf32>
    %cst_74 = arith.constant 0.000000e+00 : f32
    %74 = vector.broadcast %cst_74 : f32 to vector<8x32xf32>
    %75 = arith.maximumf %73, %74 : vector<8x32xf32>
    %76 = arith.truncf %75 : vector<8x32xf32> to vector<8x32xbf16>
    %c6_75 = arith.constant 6 : index
    %c0_76 = arith.constant 0 : index
    %c0_77 = arith.constant 0 : index
    %77 = vector.load %arg11[%c6_75, %c0_76, %c0_77] : memref<7x8x32xbf16, #tpu.memory_space<vmem>>, vector<1x8x32xbf16>
    %78 = vector.shape_cast %77 : vector<1x8x32xbf16> to vector<8x32xbf16>
    %79 = vector.shape_cast %76 : vector<8x32xbf16> to vector<1x8x32xbf16>
    tpu.vector_store %arg11[%c6_75, %c0_76, %c0_77], %79 {strides = array<i32>} : memref<7x8x32xbf16, #tpu.memory_space<vmem>>, vector<1x8x32xbf16>,
    %c0_78 = arith.constant 0 : index
    %c0_79 = arith.constant 0 : index
    %80 = vector.load %arg6[%c0_78, %c0_79] : memref<1x32xf32, #tpu.memory_space<vmem>>, vector<1x32xf32>
    %81 = vector.shape_cast %80 : vector<1x32xf32> to vector<1x32xf32>
    %82 = vector.broadcast %81 : vector<1x32xf32> to vector<3x32xf32>
    %cst_80 = arith.constant 0.000000e+00 : f32
    %83 = vector.broadcast %cst_80 : f32 to vector<3x32xf32>
    %c0_81 = arith.constant 0 : index
    %c0_82 = arith.constant 0 : index
    %c0_83 = arith.constant 0 : index
    %84 = vector.load %arg11[%c0_81, %c0_82, %c0_83] : memref<7x8x32xbf16, #tpu.memory_space<vmem>>, vector<1x3x32xbf16>
    %85 = vector.shape_cast %84 : vector<1x3x32xbf16> to vector<3x32xbf16>
    %c0_84 = arith.constant 0 : index
    %c0_85 = arith.constant 0 : index
    %c0_86 = arith.constant 0 : index
    %86 = vector.load %arg5[%c0_84, %c0_85, %c0_86] : memref<9x32x32xbf16, #tpu.memory_space<vmem>>, vector<1x32x32xbf16>
    %87 = vector.shape_cast %86 : vector<1x32x32xbf16> to vector<32x32xbf16>
    %cst_87 = arith.constant dense<0.000000e+00> : vector<3x32xf32>
    %88 = tpu.matmul %85, %87, %cst_87 {dimension_numbers = #tpu.dot_dimension_numbers<[1], [0], [0], [1], [0, 0, 1, 1], [], []>} : vector<3x32xbf16>, vector<32x32xbf16>, vector<3x32xf32> -> vector<3x32xf32>
    %89 = arith.addf %83, %88 : vector<3x32xf32>
    %c1_88 = arith.constant 1 : index
    %c0_89 = arith.constant 0 : index
    %c0_90 = arith.constant 0 : index
    %90 = vector.load %arg11[%c1_88, %c0_89, %c0_90] : memref<7x8x32xbf16, #tpu.memory_space<vmem>>, vector<1x3x32xbf16>
    %91 = vector.shape_cast %90 : vector<1x3x32xbf16> to vector<3x32xbf16>
    %c1_91 = arith.constant 1 : index
    %c0_92 = arith.constant 0 : index
    %c0_93 = arith.constant 0 : index
    %92 = vector.load %arg5[%c1_91, %c0_92, %c0_93] : memref<9x32x32xbf16, #tpu.memory_space<vmem>>, vector<1x32x32xbf16>
    %93 = vector.shape_cast %92 : vector<1x32x32xbf16> to vector<32x32xbf16>
    %cst_94 = arith.constant dense<0.000000e+00> : vector<3x32xf32>
    %94 = tpu.matmul %91, %93, %cst_94 {dimension_numbers = #tpu.dot_dimension_numbers<[1], [0], [0], [1], [0, 0, 1, 1], [], []>} : vector<3x32xbf16>, vector<32x32xbf16>, vector<3x32xf32> -> vector<3x32xf32>
    %95 = arith.addf %89, %94 : vector<3x32xf32>
    %c2_95 = arith.constant 2 : index
    %c0_96 = arith.constant 0 : index
    %c0_97 = arith.constant 0 : index
    %96 = vector.load %arg11[%c2_95, %c0_96, %c0_97] : memref<7x8x32xbf16, #tpu.memory_space<vmem>>, vector<1x3x32xbf16>
    %97 = vector.shape_cast %96 : vector<1x3x32xbf16> to vector<3x32xbf16>
    %c2_98 = arith.constant 2 : index
    %c0_99 = arith.constant 0 : index
    %c0_100 = arith.constant 0 : index
    %98 = vector.load %arg5[%c2_98, %c0_99, %c0_100] : memref<9x32x32xbf16, #tpu.memory_space<vmem>>, vector<1x32x32xbf16>
    %99 = vector.shape_cast %98 : vector<1x32x32xbf16> to vector<32x32xbf16>
    %cst_101 = arith.constant dense<0.000000e+00> : vector<3x32xf32>
    %100 = tpu.matmul %97, %99, %cst_101 {dimension_numbers = #tpu.dot_dimension_numbers<[1], [0], [0], [1], [0, 0, 1, 1], [], []>} : vector<3x32xbf16>, vector<32x32xbf16>, vector<3x32xf32> -> vector<3x32xf32>
    %101 = arith.addf %95, %100 : vector<3x32xf32>
    %c0_102 = arith.constant 0 : index
    %c4_103 = arith.constant 4 : index
    %c0_104 = arith.constant 0 : index
    %102 = vector.load %arg11[%c0_102, %c4_103, %c0_104] : memref<7x8x32xbf16, #tpu.memory_space<vmem>>, vector<1x3x32xbf16>
    %103 = vector.shape_cast %102 : vector<1x3x32xbf16> to vector<3x32xbf16>
    %c3_105 = arith.constant 3 : index
    %c0_106 = arith.constant 0 : index
    %c0_107 = arith.constant 0 : index
    %104 = vector.load %arg5[%c3_105, %c0_106, %c0_107] : memref<9x32x32xbf16, #tpu.memory_space<vmem>>, vector<1x32x32xbf16>
    %105 = vector.shape_cast %104 : vector<1x32x32xbf16> to vector<32x32xbf16>
    %cst_108 = arith.constant dense<0.000000e+00> : vector<3x32xf32>
    %106 = tpu.matmul %103, %105, %cst_108 {dimension_numbers = #tpu.dot_dimension_numbers<[1], [0], [0], [1], [0, 0, 1, 1], [], []>} : vector<3x32xbf16>, vector<32x32xbf16>, vector<3x32xf32> -> vector<3x32xf32>
    %107 = arith.addf %101, %106 : vector<3x32xf32>
    %c1_109 = arith.constant 1 : index
    %c4_110 = arith.constant 4 : index
    %c0_111 = arith.constant 0 : index
    %108 = vector.load %arg11[%c1_109, %c4_110, %c0_111] : memref<7x8x32xbf16, #tpu.memory_space<vmem>>, vector<1x3x32xbf16>
    %109 = vector.shape_cast %108 : vector<1x3x32xbf16> to vector<3x32xbf16>
    %c4_112 = arith.constant 4 : index
    %c0_113 = arith.constant 0 : index
    %c0_114 = arith.constant 0 : index
    %110 = vector.load %arg5[%c4_112, %c0_113, %c0_114] : memref<9x32x32xbf16, #tpu.memory_space<vmem>>, vector<1x32x32xbf16>
    %111 = vector.shape_cast %110 : vector<1x32x32xbf16> to vector<32x32xbf16>
    %cst_115 = arith.constant dense<0.000000e+00> : vector<3x32xf32>
    %112 = tpu.matmul %109, %111, %cst_115 {dimension_numbers = #tpu.dot_dimension_numbers<[1], [0], [0], [1], [0, 0, 1, 1], [], []>} : vector<3x32xbf16>, vector<32x32xbf16>, vector<3x32xf32> -> vector<3x32xf32>
    %113 = arith.addf %107, %112 : vector<3x32xf32>
    %c2_116 = arith.constant 2 : index
    %c4_117 = arith.constant 4 : index
    %c0_118 = arith.constant 0 : index
    %114 = vector.load %arg11[%c2_116, %c4_117, %c0_118] : memref<7x8x32xbf16, #tpu.memory_space<vmem>>, vector<1x3x32xbf16>
    %115 = vector.shape_cast %114 : vector<1x3x32xbf16> to vector<3x32xbf16>
    %c5_119 = arith.constant 5 : index
    %c0_120 = arith.constant 0 : index
    %c0_121 = arith.constant 0 : index
    %116 = vector.load %arg5[%c5_119, %c0_120, %c0_121] : memref<9x32x32xbf16, #tpu.memory_space<vmem>>, vector<1x32x32xbf16>
    %117 = vector.shape_cast %116 : vector<1x32x32xbf16> to vector<32x32xbf16>
    %cst_122 = arith.constant dense<0.000000e+00> : vector<3x32xf32>
    %118 = tpu.matmul %115, %117, %cst_122 {dimension_numbers = #tpu.dot_dimension_numbers<[1], [0], [0], [1], [0, 0, 1, 1], [], []>} : vector<3x32xbf16>, vector<32x32xbf16>, vector<3x32xf32> -> vector<3x32xf32>
    %119 = arith.addf %113, %118 : vector<3x32xf32>
    %c0_123 = arith.constant 0 : index
    %c1_124 = arith.constant 1 : index
    %c0_125 = arith.constant 0 : index
    %120 = vector.load %arg11[%c0_123, %c1_124, %c0_125] : memref<7x8x32xbf16, #tpu.memory_space<vmem>>, vector<1x3x32xbf16>
    %121 = vector.shape_cast %120 : vector<1x3x32xbf16> to vector<3x32xbf16>
    %c6_126 = arith.constant 6 : index
    %c0_127 = arith.constant 0 : index
    %c0_128 = arith.constant 0 : index
    %122 = vector.load %arg5[%c6_126, %c0_127, %c0_128] : memref<9x32x32xbf16, #tpu.memory_space<vmem>>, vector<1x32x32xbf16>
    %123 = vector.shape_cast %122 : vector<1x32x32xbf16> to vector<32x32xbf16>
    %cst_129 = arith.constant dense<0.000000e+00> : vector<3x32xf32>
    %124 = tpu.matmul %121, %123, %cst_129 {dimension_numbers = #tpu.dot_dimension_numbers<[1], [0], [0], [1], [0, 0, 1, 1], [], []>} : vector<3x32xbf16>, vector<32x32xbf16>, vector<3x32xf32> -> vector<3x32xf32>
    %125 = arith.addf %119, %124 : vector<3x32xf32>
    %c1_130 = arith.constant 1 : index
    %c1_131 = arith.constant 1 : index
    %c0_132 = arith.constant 0 : index
    %126 = vector.load %arg11[%c1_130, %c1_131, %c0_132] : memref<7x8x32xbf16, #tpu.memory_space<vmem>>, vector<1x3x32xbf16>
    %127 = vector.shape_cast %126 : vector<1x3x32xbf16> to vector<3x32xbf16>
    %c7 = arith.constant 7 : index
    %c0_133 = arith.constant 0 : index
    %c0_134 = arith.constant 0 : index
    %128 = vector.load %arg5[%c7, %c0_133, %c0_134] : memref<9x32x32xbf16, #tpu.memory_space<vmem>>, vector<1x32x32xbf16>
    %129 = vector.shape_cast %128 : vector<1x32x32xbf16> to vector<32x32xbf16>
    %cst_135 = arith.constant dense<0.000000e+00> : vector<3x32xf32>
    %130 = tpu.matmul %127, %129, %cst_135 {dimension_numbers = #tpu.dot_dimension_numbers<[1], [0], [0], [1], [0, 0, 1, 1], [], []>} : vector<3x32xbf16>, vector<32x32xbf16>, vector<3x32xf32> -> vector<3x32xf32>
    %131 = arith.addf %125, %130 : vector<3x32xf32>
    %c2_136 = arith.constant 2 : index
    %c1_137 = arith.constant 1 : index
    %c0_138 = arith.constant 0 : index
    %132 = vector.load %arg11[%c2_136, %c1_137, %c0_138] : memref<7x8x32xbf16, #tpu.memory_space<vmem>>, vector<1x3x32xbf16>
    %133 = vector.shape_cast %132 : vector<1x3x32xbf16> to vector<3x32xbf16>
    %c8 = arith.constant 8 : index
    %c0_139 = arith.constant 0 : index
    %c0_140 = arith.constant 0 : index
    %134 = vector.load %arg5[%c8, %c0_139, %c0_140] : memref<9x32x32xbf16, #tpu.memory_space<vmem>>, vector<1x32x32xbf16>
    %135 = vector.shape_cast %134 : vector<1x32x32xbf16> to vector<32x32xbf16>
    %cst_141 = arith.constant dense<0.000000e+00> : vector<3x32xf32>
    %136 = tpu.matmul %133, %135, %cst_141 {dimension_numbers = #tpu.dot_dimension_numbers<[1], [0], [0], [1], [0, 0, 1, 1], [], []>} : vector<3x32xbf16>, vector<32x32xbf16>, vector<3x32xf32> -> vector<3x32xf32>
    %137 = arith.addf %131, %136 : vector<3x32xf32>
    %138 = arith.addf %137, %82 : vector<3x32xf32>
    %cst_142 = arith.constant 0.000000e+00 : f32
    %139 = vector.broadcast %cst_142 : f32 to vector<3x32xf32>
    %140 = arith.maximumf %138, %139 : vector<3x32xf32>
    %141 = arith.truncf %140 : vector<3x32xf32> to vector<3x32xbf16>
    %c0_143 = arith.constant 0 : index
    %c0_144 = arith.constant 0 : index
    %142 = vector.load %arg12[%c0_143, %c0_144] : memref<3x96xbf16, #tpu.memory_space<vmem>>, vector<3x32xbf16>
    tpu.vector_store %arg12[%c0_143, %c0_144], %141 {strides = array<i32>} : memref<3x96xbf16, #tpu.memory_space<vmem>>, vector<3x32xbf16>,
    %cst_145 = arith.constant 0.000000e+00 : f32
    %143 = vector.broadcast %cst_145 : f32 to vector<3x32xf32>
    %c2_146 = arith.constant 2 : index
    %c0_147 = arith.constant 0 : index
    %c0_148 = arith.constant 0 : index
    %144 = vector.load %arg11[%c2_146, %c0_147, %c0_148] : memref<7x8x32xbf16, #tpu.memory_space<vmem>>, vector<1x3x32xbf16>
    %145 = vector.shape_cast %144 : vector<1x3x32xbf16> to vector<3x32xbf16>
    %c0_149 = arith.constant 0 : index
    %c0_150 = arith.constant 0 : index
    %c0_151 = arith.constant 0 : index
    %146 = vector.load %arg5[%c0_149, %c0_150, %c0_151] : memref<9x32x32xbf16, #tpu.memory_space<vmem>>, vector<1x32x32xbf16>
    %147 = vector.shape_cast %146 : vector<1x32x32xbf16> to vector<32x32xbf16>
    %cst_152 = arith.constant dense<0.000000e+00> : vector<3x32xf32>
    %148 = tpu.matmul %145, %147, %cst_152 {dimension_numbers = #tpu.dot_dimension_numbers<[1], [0], [0], [1], [0, 0, 1, 1], [], []>} : vector<3x32xbf16>, vector<32x32xbf16>, vector<3x32xf32> -> vector<3x32xf32>
    %149 = arith.addf %143, %148 : vector<3x32xf32>
    %c3_153 = arith.constant 3 : index
    %c0_154 = arith.constant 0 : index
    %c0_155 = arith.constant 0 : index
    %150 = vector.load %arg11[%c3_153, %c0_154, %c0_155] : memref<7x8x32xbf16, #tpu.memory_space<vmem>>, vector<1x3x32xbf16>
    %151 = vector.shape_cast %150 : vector<1x3x32xbf16> to vector<3x32xbf16>
    %c1_156 = arith.constant 1 : index
    %c0_157 = arith.constant 0 : index
    %c0_158 = arith.constant 0 : index
    %152 = vector.load %arg5[%c1_156, %c0_157, %c0_158] : memref<9x32x32xbf16, #tpu.memory_space<vmem>>, vector<1x32x32xbf16>
    %153 = vector.shape_cast %152 : vector<1x32x32xbf16> to vector<32x32xbf16>
    %cst_159 = arith.constant dense<0.000000e+00> : vector<3x32xf32>
    %154 = tpu.matmul %151, %153, %cst_159 {dimension_numbers = #tpu.dot_dimension_numbers<[1], [0], [0], [1], [0, 0, 1, 1], [], []>} : vector<3x32xbf16>, vector<32x32xbf16>, vector<3x32xf32> -> vector<3x32xf32>
    %155 = arith.addf %149, %154 : vector<3x32xf32>
    %c4_160 = arith.constant 4 : index
    %c0_161 = arith.constant 0 : index
    %c0_162 = arith.constant 0 : index
    %156 = vector.load %arg11[%c4_160, %c0_161, %c0_162] : memref<7x8x32xbf16, #tpu.memory_space<vmem>>, vector<1x3x32xbf16>
    %157 = vector.shape_cast %156 : vector<1x3x32xbf16> to vector<3x32xbf16>
    %c2_163 = arith.constant 2 : index
    %c0_164 = arith.constant 0 : index
    %c0_165 = arith.constant 0 : index
    %158 = vector.load %arg5[%c2_163, %c0_164, %c0_165] : memref<9x32x32xbf16, #tpu.memory_space<vmem>>, vector<1x32x32xbf16>
    %159 = vector.shape_cast %158 : vector<1x32x32xbf16> to vector<32x32xbf16>
    %cst_166 = arith.constant dense<0.000000e+00> : vector<3x32xf32>
    %160 = tpu.matmul %157, %159, %cst_166 {dimension_numbers = #tpu.dot_dimension_numbers<[1], [0], [0], [1], [0, 0, 1, 1], [], []>} : vector<3x32xbf16>, vector<32x32xbf16>, vector<3x32xf32> -> vector<3x32xf32>
    %161 = arith.addf %155, %160 : vector<3x32xf32>
    %c2_167 = arith.constant 2 : index
    %c4_168 = arith.constant 4 : index
    %c0_169 = arith.constant 0 : index
    %162 = vector.load %arg11[%c2_167, %c4_168, %c0_169] : memref<7x8x32xbf16, #tpu.memory_space<vmem>>, vector<1x3x32xbf16>
    %163 = vector.shape_cast %162 : vector<1x3x32xbf16> to vector<3x32xbf16>
    %c3_170 = arith.constant 3 : index
    %c0_171 = arith.constant 0 : index
    %c0_172 = arith.constant 0 : index
    %164 = vector.load %arg5[%c3_170, %c0_171, %c0_172] : memref<9x32x32xbf16, #tpu.memory_space<vmem>>, vector<1x32x32xbf16>
    %165 = vector.shape_cast %164 : vector<1x32x32xbf16> to vector<32x32xbf16>
    %cst_173 = arith.constant dense<0.000000e+00> : vector<3x32xf32>
    %166 = tpu.matmul %163, %165, %cst_173 {dimension_numbers = #tpu.dot_dimension_numbers<[1], [0], [0], [1], [0, 0, 1, 1], [], []>} : vector<3x32xbf16>, vector<32x32xbf16>, vector<3x32xf32> -> vector<3x32xf32>
    %167 = arith.addf %161, %166 : vector<3x32xf32>
    %c3_174 = arith.constant 3 : index
    %c4_175 = arith.constant 4 : index
    %c0_176 = arith.constant 0 : index
    %168 = vector.load %arg11[%c3_174, %c4_175, %c0_176] : memref<7x8x32xbf16, #tpu.memory_space<vmem>>, vector<1x3x32xbf16>
    %169 = vector.shape_cast %168 : vector<1x3x32xbf16> to vector<3x32xbf16>
    %c4_177 = arith.constant 4 : index
    %c0_178 = arith.constant 0 : index
    %c0_179 = arith.constant 0 : index
    %170 = vector.load %arg5[%c4_177, %c0_178, %c0_179] : memref<9x32x32xbf16, #tpu.memory_space<vmem>>, vector<1x32x32xbf16>
    %171 = vector.shape_cast %170 : vector<1x32x32xbf16> to vector<32x32xbf16>
    %cst_180 = arith.constant dense<0.000000e+00> : vector<3x32xf32>
    %172 = tpu.matmul %169, %171, %cst_180 {dimension_numbers = #tpu.dot_dimension_numbers<[1], [0], [0], [1], [0, 0, 1, 1], [], []>} : vector<3x32xbf16>, vector<32x32xbf16>, vector<3x32xf32> -> vector<3x32xf32>
    %173 = arith.addf %167, %172 : vector<3x32xf32>
    %c4_181 = arith.constant 4 : index
    %c4_182 = arith.constant 4 : index
    %c0_183 = arith.constant 0 : index
    %174 = vector.load %arg11[%c4_181, %c4_182, %c0_183] : memref<7x8x32xbf16, #tpu.memory_space<vmem>>, vector<1x3x32xbf16>
    %175 = vector.shape_cast %174 : vector<1x3x32xbf16> to vector<3x32xbf16>
    %c5_184 = arith.constant 5 : index
    %c0_185 = arith.constant 0 : index
    %c0_186 = arith.constant 0 : index
    %176 = vector.load %arg5[%c5_184, %c0_185, %c0_186] : memref<9x32x32xbf16, #tpu.memory_space<vmem>>, vector<1x32x32xbf16>
    %177 = vector.shape_cast %176 : vector<1x32x32xbf16> to vector<32x32xbf16>
    %cst_187 = arith.constant dense<0.000000e+00> : vector<3x32xf32>
    %178 = tpu.matmul %175, %177, %cst_187 {dimension_numbers = #tpu.dot_dimension_numbers<[1], [0], [0], [1], [0, 0, 1, 1], [], []>} : vector<3x32xbf16>, vector<32x32xbf16>, vector<3x32xf32> -> vector<3x32xf32>
    %179 = arith.addf %173, %178 : vector<3x32xf32>
    %c2_188 = arith.constant 2 : index
    %c1_189 = arith.constant 1 : index
    %c0_190 = arith.constant 0 : index
    %180 = vector.load %arg11[%c2_188, %c1_189, %c0_190] : memref<7x8x32xbf16, #tpu.memory_space<vmem>>, vector<1x3x32xbf16>
    %181 = vector.shape_cast %180 : vector<1x3x32xbf16> to vector<3x32xbf16>
    %c6_191 = arith.constant 6 : index
    %c0_192 = arith.constant 0 : index
    %c0_193 = arith.constant 0 : index
    %182 = vector.load %arg5[%c6_191, %c0_192, %c0_193] : memref<9x32x32xbf16, #tpu.memory_space<vmem>>, vector<1x32x32xbf16>
    %183 = vector.shape_cast %182 : vector<1x32x32xbf16> to vector<32x32xbf16>
    %cst_194 = arith.constant dense<0.000000e+00> : vector<3x32xf32>
    %184 = tpu.matmul %181, %183, %cst_194 {dimension_numbers = #tpu.dot_dimension_numbers<[1], [0], [0], [1], [0, 0, 1, 1], [], []>} : vector<3x32xbf16>, vector<32x32xbf16>, vector<3x32xf32> -> vector<3x32xf32>
    %185 = arith.addf %179, %184 : vector<3x32xf32>
    %c3_195 = arith.constant 3 : index
    %c1_196 = arith.constant 1 : index
    %c0_197 = arith.constant 0 : index
    %186 = vector.load %arg11[%c3_195, %c1_196, %c0_197] : memref<7x8x32xbf16, #tpu.memory_space<vmem>>, vector<1x3x32xbf16>
    %187 = vector.shape_cast %186 : vector<1x3x32xbf16> to vector<3x32xbf16>
    %c7_198 = arith.constant 7 : index
    %c0_199 = arith.constant 0 : index
    %c0_200 = arith.constant 0 : index
    %188 = vector.load %arg5[%c7_198, %c0_199, %c0_200] : memref<9x32x32xbf16, #tpu.memory_space<vmem>>, vector<1x32x32xbf16>
    %189 = vector.shape_cast %188 : vector<1x32x32xbf16> to vector<32x32xbf16>
    %cst_201 = arith.constant dense<0.000000e+00> : vector<3x32xf32>
    %190 = tpu.matmul %187, %189, %cst_201 {dimension_numbers = #tpu.dot_dimension_numbers<[1], [0], [0], [1], [0, 0, 1, 1], [], []>} : vector<3x32xbf16>, vector<32x32xbf16>, vector<3x32xf32> -> vector<3x32xf32>
    %191 = arith.addf %185, %190 : vector<3x32xf32>
    %c4_202 = arith.constant 4 : index
    %c1_203 = arith.constant 1 : index
    %c0_204 = arith.constant 0 : index
    %192 = vector.load %arg11[%c4_202, %c1_203, %c0_204] : memref<7x8x32xbf16, #tpu.memory_space<vmem>>, vector<1x3x32xbf16>
    %193 = vector.shape_cast %192 : vector<1x3x32xbf16> to vector<3x32xbf16>
    %c8_205 = arith.constant 8 : index
    %c0_206 = arith.constant 0 : index
    %c0_207 = arith.constant 0 : index
    %194 = vector.load %arg5[%c8_205, %c0_206, %c0_207] : memref<9x32x32xbf16, #tpu.memory_space<vmem>>, vector<1x32x32xbf16>
    %195 = vector.shape_cast %194 : vector<1x32x32xbf16> to vector<32x32xbf16>
    %cst_208 = arith.constant dense<0.000000e+00> : vector<3x32xf32>
    %196 = tpu.matmul %193, %195, %cst_208 {dimension_numbers = #tpu.dot_dimension_numbers<[1], [0], [0], [1], [0, 0, 1, 1], [], []>} : vector<3x32xbf16>, vector<32x32xbf16>, vector<3x32xf32> -> vector<3x32xf32>
    %197 = arith.addf %191, %196 : vector<3x32xf32>
    %198 = arith.addf %197, %82 : vector<3x32xf32>
    %cst_209 = arith.constant 0.000000e+00 : f32
    %199 = vector.broadcast %cst_209 : f32 to vector<3x32xf32>
    %200 = arith.maximumf %198, %199 : vector<3x32xf32>
    %201 = arith.truncf %200 : vector<3x32xf32> to vector<3x32xbf16>
    %c0_210 = arith.constant 0 : index
    %c32 = arith.constant 32 : index
    %202 = vector.load %arg12[%c0_210, %c32] : memref<3x96xbf16, #tpu.memory_space<vmem>>, vector<3x32xbf16>
    tpu.vector_store %arg12[%c0_210, %c32], %201 {strides = array<i32>} : memref<3x96xbf16, #tpu.memory_space<vmem>>, vector<3x32xbf16>,
    %cst_211 = arith.constant 0.000000e+00 : f32
    %203 = vector.broadcast %cst_211 : f32 to vector<3x32xf32>
    %c4_212 = arith.constant 4 : index
    %c0_213 = arith.constant 0 : index
    %c0_214 = arith.constant 0 : index
    %204 = vector.load %arg11[%c4_212, %c0_213, %c0_214] : memref<7x8x32xbf16, #tpu.memory_space<vmem>>, vector<1x3x32xbf16>
    %205 = vector.shape_cast %204 : vector<1x3x32xbf16> to vector<3x32xbf16>
    %c0_215 = arith.constant 0 : index
    %c0_216 = arith.constant 0 : index
    %c0_217 = arith.constant 0 : index
    %206 = vector.load %arg5[%c0_215, %c0_216, %c0_217] : memref<9x32x32xbf16, #tpu.memory_space<vmem>>, vector<1x32x32xbf16>
    %207 = vector.shape_cast %206 : vector<1x32x32xbf16> to vector<32x32xbf16>
    %cst_218 = arith.constant dense<0.000000e+00> : vector<3x32xf32>
    %208 = tpu.matmul %205, %207, %cst_218 {dimension_numbers = #tpu.dot_dimension_numbers<[1], [0], [0], [1], [0, 0, 1, 1], [], []>} : vector<3x32xbf16>, vector<32x32xbf16>, vector<3x32xf32> -> vector<3x32xf32>
    %209 = arith.addf %203, %208 : vector<3x32xf32>
    %c5_219 = arith.constant 5 : index
    %c0_220 = arith.constant 0 : index
    %c0_221 = arith.constant 0 : index
    %210 = vector.load %arg11[%c5_219, %c0_220, %c0_221] : memref<7x8x32xbf16, #tpu.memory_space<vmem>>, vector<1x3x32xbf16>
    %211 = vector.shape_cast %210 : vector<1x3x32xbf16> to vector<3x32xbf16>
    %c1_222 = arith.constant 1 : index
    %c0_223 = arith.constant 0 : index
    %c0_224 = arith.constant 0 : index
    %212 = vector.load %arg5[%c1_222, %c0_223, %c0_224] : memref<9x32x32xbf16, #tpu.memory_space<vmem>>, vector<1x32x32xbf16>
    %213 = vector.shape_cast %212 : vector<1x32x32xbf16> to vector<32x32xbf16>
    %cst_225 = arith.constant dense<0.000000e+00> : vector<3x32xf32>
    %214 = tpu.matmul %211, %213, %cst_225 {dimension_numbers = #tpu.dot_dimension_numbers<[1], [0], [0], [1], [0, 0, 1, 1], [], []>} : vector<3x32xbf16>, vector<32x32xbf16>, vector<3x32xf32> -> vector<3x32xf32>
    %215 = arith.addf %209, %214 : vector<3x32xf32>
    %c6_226 = arith.constant 6 : index
    %c0_227 = arith.constant 0 : index
    %c0_228 = arith.constant 0 : index
    %216 = vector.load %arg11[%c6_226, %c0_227, %c0_228] : memref<7x8x32xbf16, #tpu.memory_space<vmem>>, vector<1x3x32xbf16>
    %217 = vector.shape_cast %216 : vector<1x3x32xbf16> to vector<3x32xbf16>
    %c2_229 = arith.constant 2 : index
    %c0_230 = arith.constant 0 : index
    %c0_231 = arith.constant 0 : index
    %218 = vector.load %arg5[%c2_229, %c0_230, %c0_231] : memref<9x32x32xbf16, #tpu.memory_space<vmem>>, vector<1x32x32xbf16>
    %219 = vector.shape_cast %218 : vector<1x32x32xbf16> to vector<32x32xbf16>
    %cst_232 = arith.constant dense<0.000000e+00> : vector<3x32xf32>
    %220 = tpu.matmul %217, %219, %cst_232 {dimension_numbers = #tpu.dot_dimension_numbers<[1], [0], [0], [1], [0, 0, 1, 1], [], []>} : vector<3x32xbf16>, vector<32x32xbf16>, vector<3x32xf32> -> vector<3x32xf32>
    %221 = arith.addf %215, %220 : vector<3x32xf32>
    %c4_233 = arith.constant 4 : index
    %c4_234 = arith.constant 4 : index
    %c0_235 = arith.constant 0 : index
    %222 = vector.load %arg11[%c4_233, %c4_234, %c0_235] : memref<7x8x32xbf16, #tpu.memory_space<vmem>>, vector<1x3x32xbf16>
    %223 = vector.shape_cast %222 : vector<1x3x32xbf16> to vector<3x32xbf16>
    %c3_236 = arith.constant 3 : index
    %c0_237 = arith.constant 0 : index
    %c0_238 = arith.constant 0 : index
    %224 = vector.load %arg5[%c3_236, %c0_237, %c0_238] : memref<9x32x32xbf16, #tpu.memory_space<vmem>>, vector<1x32x32xbf16>
    %225 = vector.shape_cast %224 : vector<1x32x32xbf16> to vector<32x32xbf16>
    %cst_239 = arith.constant dense<0.000000e+00> : vector<3x32xf32>
    %226 = tpu.matmul %223, %225, %cst_239 {dimension_numbers = #tpu.dot_dimension_numbers<[1], [0], [0], [1], [0, 0, 1, 1], [], []>} : vector<3x32xbf16>, vector<32x32xbf16>, vector<3x32xf32> -> vector<3x32xf32>
    %227 = arith.addf %221, %226 : vector<3x32xf32>
    %c5_240 = arith.constant 5 : index
    %c4_241 = arith.constant 4 : index
    %c0_242 = arith.constant 0 : index
    %228 = vector.load %arg11[%c5_240, %c4_241, %c0_242] : memref<7x8x32xbf16, #tpu.memory_space<vmem>>, vector<1x3x32xbf16>
    %229 = vector.shape_cast %228 : vector<1x3x32xbf16> to vector<3x32xbf16>
    %c4_243 = arith.constant 4 : index
    %c0_244 = arith.constant 0 : index
    %c0_245 = arith.constant 0 : index
    %230 = vector.load %arg5[%c4_243, %c0_244, %c0_245] : memref<9x32x32xbf16, #tpu.memory_space<vmem>>, vector<1x32x32xbf16>
    %231 = vector.shape_cast %230 : vector<1x32x32xbf16> to vector<32x32xbf16>
    %cst_246 = arith.constant dense<0.000000e+00> : vector<3x32xf32>
    %232 = tpu.matmul %229, %231, %cst_246 {dimension_numbers = #tpu.dot_dimension_numbers<[1], [0], [0], [1], [0, 0, 1, 1], [], []>} : vector<3x32xbf16>, vector<32x32xbf16>, vector<3x32xf32> -> vector<3x32xf32>
    %233 = arith.addf %227, %232 : vector<3x32xf32>
    %c6_247 = arith.constant 6 : index
    %c4_248 = arith.constant 4 : index
    %c0_249 = arith.constant 0 : index
    %234 = vector.load %arg11[%c6_247, %c4_248, %c0_249] : memref<7x8x32xbf16, #tpu.memory_space<vmem>>, vector<1x3x32xbf16>
    %235 = vector.shape_cast %234 : vector<1x3x32xbf16> to vector<3x32xbf16>
    %c5_250 = arith.constant 5 : index
    %c0_251 = arith.constant 0 : index
    %c0_252 = arith.constant 0 : index
    %236 = vector.load %arg5[%c5_250, %c0_251, %c0_252] : memref<9x32x32xbf16, #tpu.memory_space<vmem>>, vector<1x32x32xbf16>
    %237 = vector.shape_cast %236 : vector<1x32x32xbf16> to vector<32x32xbf16>
    %cst_253 = arith.constant dense<0.000000e+00> : vector<3x32xf32>
    %238 = tpu.matmul %235, %237, %cst_253 {dimension_numbers = #tpu.dot_dimension_numbers<[1], [0], [0], [1], [0, 0, 1, 1], [], []>} : vector<3x32xbf16>, vector<32x32xbf16>, vector<3x32xf32> -> vector<3x32xf32>
    %239 = arith.addf %233, %238 : vector<3x32xf32>
    %c4_254 = arith.constant 4 : index
    %c1_255 = arith.constant 1 : index
    %c0_256 = arith.constant 0 : index
    %240 = vector.load %arg11[%c4_254, %c1_255, %c0_256] : memref<7x8x32xbf16, #tpu.memory_space<vmem>>, vector<1x3x32xbf16>
    %241 = vector.shape_cast %240 : vector<1x3x32xbf16> to vector<3x32xbf16>
    %c6_257 = arith.constant 6 : index
    %c0_258 = arith.constant 0 : index
    %c0_259 = arith.constant 0 : index
    %242 = vector.load %arg5[%c6_257, %c0_258, %c0_259] : memref<9x32x32xbf16, #tpu.memory_space<vmem>>, vector<1x32x32xbf16>
    %243 = vector.shape_cast %242 : vector<1x32x32xbf16> to vector<32x32xbf16>
    %cst_260 = arith.constant dense<0.000000e+00> : vector<3x32xf32>
    %244 = tpu.matmul %241, %243, %cst_260 {dimension_numbers = #tpu.dot_dimension_numbers<[1], [0], [0], [1], [0, 0, 1, 1], [], []>} : vector<3x32xbf16>, vector<32x32xbf16>, vector<3x32xf32> -> vector<3x32xf32>
    %245 = arith.addf %239, %244 : vector<3x32xf32>
    %c5_261 = arith.constant 5 : index
    %c1_262 = arith.constant 1 : index
    %c0_263 = arith.constant 0 : index
    %246 = vector.load %arg11[%c5_261, %c1_262, %c0_263] : memref<7x8x32xbf16, #tpu.memory_space<vmem>>, vector<1x3x32xbf16>
    %247 = vector.shape_cast %246 : vector<1x3x32xbf16> to vector<3x32xbf16>
    %c7_264 = arith.constant 7 : index
    %c0_265 = arith.constant 0 : index
    %c0_266 = arith.constant 0 : index
    %248 = vector.load %arg5[%c7_264, %c0_265, %c0_266] : memref<9x32x32xbf16, #tpu.memory_space<vmem>>, vector<1x32x32xbf16>
    %249 = vector.shape_cast %248 : vector<1x32x32xbf16> to vector<32x32xbf16>
    %cst_267 = arith.constant dense<0.000000e+00> : vector<3x32xf32>
    %250 = tpu.matmul %247, %249, %cst_267 {dimension_numbers = #tpu.dot_dimension_numbers<[1], [0], [0], [1], [0, 0, 1, 1], [], []>} : vector<3x32xbf16>, vector<32x32xbf16>, vector<3x32xf32> -> vector<3x32xf32>
    %251 = arith.addf %245, %250 : vector<3x32xf32>
    %c6_268 = arith.constant 6 : index
    %c1_269 = arith.constant 1 : index
    %c0_270 = arith.constant 0 : index
    %252 = vector.load %arg11[%c6_268, %c1_269, %c0_270] : memref<7x8x32xbf16, #tpu.memory_space<vmem>>, vector<1x3x32xbf16>
    %253 = vector.shape_cast %252 : vector<1x3x32xbf16> to vector<3x32xbf16>
    %c8_271 = arith.constant 8 : index
    %c0_272 = arith.constant 0 : index
    %c0_273 = arith.constant 0 : index
    %254 = vector.load %arg5[%c8_271, %c0_272, %c0_273] : memref<9x32x32xbf16, #tpu.memory_space<vmem>>, vector<1x32x32xbf16>
    %255 = vector.shape_cast %254 : vector<1x32x32xbf16> to vector<32x32xbf16>
    %cst_274 = arith.constant dense<0.000000e+00> : vector<3x32xf32>
    %256 = tpu.matmul %253, %255, %cst_274 {dimension_numbers = #tpu.dot_dimension_numbers<[1], [0], [0], [1], [0, 0, 1, 1], [], []>} : vector<3x32xbf16>, vector<32x32xbf16>, vector<3x32xf32> -> vector<3x32xf32>
    %257 = arith.addf %251, %256 : vector<3x32xf32>
    %258 = arith.addf %257, %82 : vector<3x32xf32>
    %cst_275 = arith.constant 0.000000e+00 : f32
    %259 = vector.broadcast %cst_275 : f32 to vector<3x32xf32>
    %260 = arith.maximumf %258, %259 : vector<3x32xf32>
    %261 = arith.truncf %260 : vector<3x32xf32> to vector<3x32xbf16>
    %c0_276 = arith.constant 0 : index
    %c64 = arith.constant 64 : index
    %262 = vector.load %arg12[%c0_276, %c64] : memref<3x96xbf16, #tpu.memory_space<vmem>>, vector<3x32xbf16>
    tpu.vector_store %arg12[%c0_276, %c64], %261 {strides = array<i32>} : memref<3x96xbf16, #tpu.memory_space<vmem>>, vector<3x32xbf16>,
    %c0_277 = arith.constant 0 : index
    %c0_278 = arith.constant 0 : index
    %263 = vector.load %arg12[%c0_277, %c0_278] : memref<3x96xbf16, #tpu.memory_space<vmem>>, vector<3x96xbf16>
    %c0_279 = arith.constant 0 : index
    %c0_280 = arith.constant 0 : index
    %264 = vector.load %arg7[%c0_279, %c0_280] : memref<96x32xbf16, #tpu.memory_space<vmem>>, vector<96x32xbf16>
    %cst_281 = arith.constant dense<0.000000e+00> : vector<3x32xf32>
    %265 = tpu.matmul %263, %264, %cst_281 {dimension_numbers = #tpu.dot_dimension_numbers<[1], [0], [0], [1], [0, 0, 1, 1], [], []>} : vector<3x96xbf16>, vector<96x32xbf16>, vector<3x32xf32> -> vector<3x32xf32>
    %c0_282 = arith.constant 0 : index
    %c0_283 = arith.constant 0 : index
    %266 = vector.load %arg8[%c0_282, %c0_283] : memref<1x32xf32, #tpu.memory_space<vmem>>, vector<1x32xf32>
    %267 = vector.broadcast %266 : vector<1x32xf32> to vector<3x32xf32>
    %268 = arith.addf %265, %267 : vector<3x32xf32>
    %cst_284 = arith.constant 5.65685415 : f32
    %269 = vector.broadcast %cst_284 : f32 to vector<3x32xf32>
    %270 = arith.mulf %268, %269 : vector<3x32xf32>
    %c0_285 = arith.constant 0 : index
    %c0_286 = arith.constant 0 : index
    %271 = vector.load %arg9[%c0_285, %c0_286] : memref<3x32xf32, #tpu.memory_space<vmem>>, vector<3x32xf32>
    %272 = arith.addf %270, %271 : vector<3x32xf32>
    %c0_287 = arith.constant 0 : index
    %c0_288 = arith.constant 0 : index
    %c0_289 = arith.constant 0 : index
    %273 = vector.load %arg10[%c0_287, %c0_288, %c0_289] : memref<1x3x32xf32, #tpu.memory_space<vmem>>, vector<1x3x32xf32>
    %274 = vector.shape_cast %273 : vector<1x3x32xf32> to vector<3x32xf32>
    %275 = vector.shape_cast %272 : vector<3x32xf32> to vector<1x3x32xf32>
    tpu.vector_store %arg10[%c0_287, %c0_288, %c0_289], %275 {strides = array<i32>} : memref<1x3x32xf32, #tpu.memory_space<vmem>>, vector<1x3x32xf32>,
    return
  }
  func.func @transform_0(%arg0: i32, %arg1: i32) -> (i32, i32, i32, i32, i32) {
    %c0_i32 = arith.constant 0 : i32
    %c0_i32_0 = arith.constant 0 : i32
    %c0_i32_1 = arith.constant 0 : i32
    %c0_i32_2 = arith.constant 0 : i32
    return %arg0, %arg1, %c0_i32, %c0_i32_0, %c0_i32_1 : i32, i32, i32, i32, i32
  }
  func.func @transform_1(%arg0: i32, %arg1: i32) -> (i32, i32) {
    %c0_i32 = arith.constant 0 : i32
    %c0_i32_0 = arith.constant 0 : i32
    %c0_i32_1 = arith.constant 0 : i32
    return %c0_i32, %c0_i32_0 : i32, i32
  }
  func.func @transform_2(%arg0: i32, %arg1: i32) -> (i32, i32) {
    %c0_i32 = arith.constant 0 : i32
    %c0_i32_0 = arith.constant 0 : i32
    %c0_i32_1 = arith.constant 0 : i32
    return %c0_i32, %c0_i32_0 : i32, i32
  }
  func.func @transform_3(%arg0: i32, %arg1: i32) -> (i32, i32, i32) {
    %c0_i32 = arith.constant 0 : i32
    %c0_i32_0 = arith.constant 0 : i32
    %c0_i32_1 = arith.constant 0 : i32
    %c0_i32_2 = arith.constant 0 : i32
    return %c0_i32, %c0_i32_0, %c0_i32_1 : i32, i32, i32
  }
  func.func @transform_4(%arg0: i32, %arg1: i32) -> (i32, i32) {
    %c0_i32 = arith.constant 0 : i32
    %c0_i32_0 = arith.constant 0 : i32
    %c0_i32_1 = arith.constant 0 : i32
    return %c0_i32, %c0_i32_0 : i32, i32
  }
  func.func @transform_5(%arg0: i32, %arg1: i32) -> (i32, i32) {
    %c0_i32 = arith.constant 0 : i32
    %c0_i32_0 = arith.constant 0 : i32
    %c0_i32_1 = arith.constant 0 : i32
    return %c0_i32, %c0_i32_0 : i32, i32
  }
  func.func @transform_6(%arg0: i32, %arg1: i32) -> (i32, i32) {
    %c0_i32 = arith.constant 0 : i32
    %c0_i32_0 = arith.constant 0 : i32
    %c0_i32_1 = arith.constant 0 : i32
    return %c0_i32, %c0_i32_0 : i32, i32
  }
  func.func @transform_7(%arg0: i32, %arg1: i32) -> (i32, i32) {
    %c0_i32 = arith.constant 0 : i32
    %c0_i32_0 = arith.constant 0 : i32
    return %arg1, %c0_i32 : i32, i32
  }
  func.func @transform_8(%arg0: i32, %arg1: i32) -> (i32, i32, i32) {
    %c0_i32 = arith.constant 0 : i32
    %c0_i32_0 = arith.constant 0 : i32
    return %arg0, %arg1, %c0_i32 : i32, i32, i32
  }
}

</mosaic_0001>

<llo_original>
// kernel: conv2d_subsampling_forward.1
$region0: #{conv2d_subsampling_forward.1}
  #allocation0 [shape = 'u32[]', space=smem, size = 0x4, offset = 0x4, fixed_abs, tag = 'smem constant byte address 0x4 - core index']
  #allocation1 [shape = 'u32[144,128]{1,0:T(1,128)}', space=vmem, size = 0x12000, scoped, tag = 'internal scratch']
  #allocation2 [shape = 'bf16[7,8,32]{2,1,0:T(8,128)(2,1)}', space=vmem, size = 0x3800, scoped, tag = 'scratch operand']
  #allocation3 [shape = 'bf16[3,96]{1,0:T(4,128)(2,1)}', space=vmem, size = 0x400, scoped, tag = 'scratch operand']
  %s0 = inlined_call_operand.vmem [shape: bf16[2,1,7,8,9], index: 0, kind: input, shape index: {}]
  %s1 = inlined_call_operand.vmem [shape: bf16[9,32], index: 1, kind: input, shape index: {}]
  %s2 = inlined_call_operand.vmem [shape: f32[1,32], index: 2, kind: input, shape index: {}]
  %s3 = inlined_call_operand.vmem [shape: bf16[9,32,32], index: 3, kind: input, shape index: {}]
  %s4 = inlined_call_operand.vmem [shape: f32[1,32], index: 4, kind: input, shape index: {}]
  %s5 = inlined_call_operand.vmem [shape: bf16[96,32], index: 5, kind: input, shape index: {}]
  %s6 = inlined_call_operand.vmem [shape: f32[1,32], index: 6, kind: input, shape index: {}]
  %s7 = inlined_call_operand.vmem [shape: f32[3,32], index: 7, kind: input, shape index: {}]
  %s8 = inlined_call_operand.vmem [shape: f32[2,3,32], index: 8, kind: output, shape index: {}]
  %s9 = sld [smem:[#allocation0]]
  $region65: #{conv2d_subsampling_forward.1} parent=0
    _
  %s11 = ssub.s32 1, %s9
  %s12 = scalar_select 0, %s11, %s9
  loop: start=0, step=1, limit=4
  $region2: #{conv2d_subsampling_forward.1} parent=0 // loop_pre_header
    _
  $region3: #{conv2d_subsampling_forward.1} parent=0 // loop_header
    %s14 = sphi 0, %s18
    %p15 = scmp.ge.s32.totalorder %s14, 4
    %s21 = sphi 0, %s33
    %s22 = sphi 0, %s29
    %s23 = sphi 0, %s21
    %s24 = sphi 0, %s22
    %s25 = sphi 0, %s23
    %s26 = sphi 0, %s24
    %s38 = sphi 0, %s40
    %s41 = sphi 0, %s38
    %s42 = sphi 0, %s41
    %s58 = sphi 0, %s42
    %s62 = sphi 0, %s62
    %s64 = sphi 0, %s62
    %s65 = sphi 0, %s64
    %s79 = sphi 0, %s65
    %s83 = sphi 0, %s83
    %s85 = sphi 0, %s83
    %s86 = sphi 0, %s85
    %s100 = sphi 0, %s86
    %s104 = sphi 0, %s104
    %s106 = sphi 0, %s104
    %s107 = sphi 0, %s106
    %s121 = sphi 0, %s107
    %s125 = sphi 0, %s125
    %s127 = sphi 0, %s125
    %s128 = sphi 0, %s127
    %s142 = sphi 0, %s128
    %s146 = sphi 0, %s146
    %s148 = sphi 0, %s146
    %s149 = sphi 0, %s148
    %s163 = sphi 0, %s149
    %s167 = sphi 0, %s167
    %s169 = sphi 0, %s167
    %s170 = sphi 0, %s169
    %s184 = sphi 0, %s170
    %s190 = sphi 0, %s192
    %s193 = sphi 0, %s190
    %s194 = sphi 0, %s193
    %s210 = sphi 0, %s194
    %s218 = sphi 0, %s220
    %s221 = sphi 0, %s218
    %s222 = sphi 0, %s221
    %s238 = sphi 0, %s222
  $region4: #{conv2d_subsampling_forward.1} parent=0 // loop_header_branch
    %17 = sbr.rel (%p15) target = $region8
  $region5: #{conv2d_subsampling_forward.1} parent=0 // loop_body
    %s19 = ssub.s32 %s14, 1
    %s20 = ssub.s32 %s14, 2
    %s27 = sadd.s32 1, %s22
    %p28 = scmp.ge.s32.totalorder %s27, 1
    %s29 = scalar_select %p28, 0, %s27
    %s30 = sadd.s32 1, %s21
    %s31 = scalar_select %p28, %s30, %s21
    %p32 = scmp.ge.s32.totalorder %s31, 2
    %s33 = scalar_select %p32, 0, %s31
    %s34 = ssub.s32 %s21, %s33
    %s35 = ssub.s32 %s22, %s29
    %s36 = sor.u32 %s34, %s35
    %p37 = scmp.eq.s32.totalorder %s36, 0
    %s39 = sadd.s32 %s38, 1
    %s40 = scalar_select %p37, %s38, %s39
    %p43 = pneg %p37
    %p44 = scmp.eq.s32.totalorder %s14, 1
    %p45 = por %p43, %p44
    %p46 = scmp.ne.s32.totalorder %s38, %s41
    %p47 = scmp.eq.s32.totalorder %s14, 0
    %p48 = por %p46, %p47
    %p49 = scmp.ne.s32.totalorder %s38, %s41
    %p50 = scmp.eq.s32.totalorder %s19, 1
    %p51 = por %p49, %p50
    %p52 = scmp.ne.s32.totalorder %s41, %s42
    %p53 = scmp.eq.s32.totalorder %s19, 0
    %p54 = por %p52, %p53
    %p55 = scmp.ne.s32.totalorder %s41, %s42
    %p56 = scmp.eq.s32.totalorder %s20, 1
    %p57 = por %p55, %p56
    %p59 = scmp.ne.s32.totalorder %s42, %s58
    %p60 = scmp.eq.s32.totalorder %s20, 0
    %p61 = por %p59, %p60
    %s63 = sadd.s32 %s62, 1
    %p66 = scmp.eq.s32.totalorder %s14, 1
    %p67 = scmp.ne.s32.totalorder %s62, %s64
    %p68 = scmp.eq.s32.totalorder %s14, 0
    %p69 = por %p67, %p68
    %p70 = scmp.ne.s32.totalorder %s62, %s64
    %p71 = scmp.eq.s32.totalorder %s19, 1
    %p72 = por %p70, %p71
    %p73 = scmp.ne.s32.totalorder %s64, %s65
    %p74 = scmp.eq.s32.totalorder %s19, 0
    %p75 = por %p73, %p74
    %p76 = scmp.ne.s32.totalorder %s64, %s65
    %p77 = scmp.eq.s32.totalorder %s20, 1
    %p78 = por %p76, %p77
    %p80 = scmp.ne.s32.totalorder %s65, %s79
    %p81 = scmp.eq.s32.totalorder %s20, 0
    %p82 = por %p80, %p81
    %s84 = sadd.s32 %s83, 1
    %p87 = scmp.eq.s32.totalorder %s14, 1
    %p88 = scmp.ne.s32.totalorder %s83, %s85
    %p89 = scmp.eq.s32.totalorder %s14, 0
    %p90 = por %p88, %p89
    %p91 = scmp.ne.s32.totalorder %s83, %s85
    %p92 = scmp.eq.s32.totalorder %s19, 1
    %p93 = por %p91, %p92
    %p94 = scmp.ne.s32.totalorder %s85, %s86
    %p95 = scmp.eq.s32.totalorder %s19, 0
    %p96 = por %p94, %p95
    %p97 = scmp.ne.s32.totalorder %s85, %s86
    %p98 = scmp.eq.s32.totalorder %s20, 1
    %p99 = por %p97, %p98
    %p101 = scmp.ne.s32.totalorder %s86, %s100
    %p102 = scmp.eq.s32.totalorder %s20, 0
    %p103 = por %p101, %p102
    %s105 = sadd.s32 %s104, 1
    %p108 = scmp.eq.s32.totalorder %s14, 1
    %p109 = scmp.ne.s32.totalorder %s104, %s106
    %p110 = scmp.eq.s32.totalorder %s14, 0
    %p111 = por %p109, %p110
    %p112 = scmp.ne.s32.totalorder %s104, %s106
    %p113 = scmp.eq.s32.totalorder %s19, 1
    %p114 = por %p112, %p113
    %p115 = scmp.ne.s32.totalorder %s106, %s107
    %p116 = scmp.eq.s32.totalorder %s19, 0
    %p117 = por %p115, %p116
    %p118 = scmp.ne.s32.totalorder %s106, %s107
    %p119 = scmp.eq.s32.totalorder %s20, 1
    %p120 = por %p118, %p119
    %p122 = scmp.ne.s32.totalorder %s107, %s121
    %p123 = scmp.eq.s32.totalorder %s20, 0
    %p124 = por %p122, %p123
    %s126 = sadd.s32 %s125, 1
    %p129 = scmp.eq.s32.totalorder %s14, 1
    %p130 = scmp.ne.s32.totalorder %s125, %s127
    %p131 = scmp.eq.s32.totalorder %s14, 0
    %p132 = por %p130, %p131
    %p133 = scmp.ne.s32.totalorder %s125, %s127
    %p134 = scmp.eq.s32.totalorder %s19, 1
    %p135 = por %p133, %p134
    %p136 = scmp.ne.s32.totalorder %s127, %s128
    %p137 = scmp.eq.s32.totalorder %s19, 0
    %p138 = por %p136, %p137
    %p139 = scmp.ne.s32.totalorder %s127, %s128
    %p140 = scmp.eq.s32.totalorder %s20, 1
    %p141 = por %p139, %p140
    %p143 = scmp.ne.s32.totalorder %s128, %s142
    %p144 = scmp.eq.s32.totalorder %s20, 0
    %p145 = por %p143, %p144
    %s147 = sadd.s32 %s146, 1
    %p150 = scmp.eq.s32.totalorder %s14, 1
    %p151 = scmp.ne.s32.totalorder %s146, %s148
    %p152 = scmp.eq.s32.totalorder %s14, 0
    %p153 = por %p151, %p152
    %p154 = scmp.ne.s32.totalorder %s146, %s148
    %p155 = scmp.eq.s32.totalorder %s19, 1
    %p156 = por %p154, %p155
    %p157 = scmp.ne.s32.totalorder %s148, %s149
    %p158 = scmp.eq.s32.totalorder %s19, 0
    %p159 = por %p157, %p158
    %p160 = scmp.ne.s32.totalorder %s148, %s149
    %p161 = scmp.eq.s32.totalorder %s20, 1
    %p162 = por %p160, %p161
    %p164 = scmp.ne.s32.totalorder %s149, %s163
    %p165 = scmp.eq.s32.totalorder %s20, 0
    %p166 = por %p164, %p165
    %s168 = sadd.s32 %s167, 1
    %p171 = scmp.eq.s32.totalorder %s14, 1
    %p172 = scmp.ne.s32.totalorder %s167, %s169
    %p173 = scmp.eq.s32.totalorder %s14, 0
    %p174 = por %p172, %p173
    %p175 = scmp.ne.s32.totalorder %s167, %s169
    %p176 = scmp.eq.s32.totalorder %s19, 1
    %p177 = por %p175, %p176
    %p178 = scmp.ne.s32.totalorder %s169, %s170
    %p179 = scmp.eq.s32.totalorder %s19, 0
    %p180 = por %p178, %p179
    %p181 = scmp.ne.s32.totalorder %s169, %s170
    %p182 = scmp.eq.s32.totalorder %s20, 1
    %p183 = por %p181, %p182
    %p185 = scmp.ne.s32.totalorder %s170, %s184
    %p186 = scmp.eq.s32.totalorder %s20, 0
    %p187 = por %p185, %p186
    %s188 = ssub.s32 %s22, %s29
    %p189 = scmp.eq.s32.totalorder %s188, 0
    %s191 = sadd.s32 %s190, 1
    %s192 = scalar_select %p189, %s190, %s191
    %p195 = pneg %p189
    %p196 = scmp.eq.s32.totalorder %s14, 1
    %p197 = por %p195, %p196
    %p198 = scmp.ne.s32.totalorder %s190, %s193
    %p199 = scmp.eq.s32.totalorder %s14, 0
    %p200 = por %p198, %p199
    %p201 = scmp.ne.s32.totalorder %s190, %s193
    %p202 = scmp.eq.s32.totalorder %s19, 1
    %p203 = por %p201, %p202
    %p204 = scmp.ne.s32.totalorder %s193, %s194
    %p205 = scmp.eq.s32.totalorder %s19, 0
    %p206 = por %p204, %p205
    %p207 = scmp.ne.s32.totalorder %s193, %s194
    %p208 = scmp.eq.s32.totalorder %s20, 1
    %p209 = por %p207, %p208
    %p211 = scmp.ne.s32.totalorder %s194, %s210
    %p212 = scmp.eq.s32.totalorder %s20, 0
    %p213 = por %p211, %p212
    %s214 = ssub.s32 %s21, %s33
    %s215 = ssub.s32 %s22, %s29
    %s216 = sor.u32 %s214, %s215
    %p217 = scmp.eq.s32.totalorder %s216, 0
    %s219 = sadd.s32 %s218, 1
    %s220 = scalar_select %p217, %s218, %s219
    %p223 = pneg %p217
    %p224 = scmp.eq.s32.totalorder %s14, 1
    %p225 = por %p223, %p224
    %p226 = scmp.ne.s32.totalorder %s218, %s221
    %p227 = scmp.eq.s32.totalorder %s14, 0
    %p228 = por %p226, %p227
    %p229 = scmp.ne.s32.totalorder %s218, %s221
    %p230 = scmp.eq.s32.totalorder %s19, 1
    %p231 = por %p229, %p230
    %p232 = scmp.ne.s32.totalorder %s221, %s222
    %p233 = scmp.eq.s32.totalorder %s19, 0
    %p234 = por %p232, %p233
    %p235 = scmp.ne.s32.totalorder %s221, %s222
    %p236 = scmp.eq.s32.totalorder %s20, 1
    %p237 = por %p235, %p236
    %p239 = scmp.ne.s32.totalorder %s222, %s238
    %p240 = scmp.eq.s32.totalorder %s20, 0
    %p241 = por %p239, %p240
    %p242 = scmp.le.s32.totalorder 1, %s14
    %p243 = scmp.lt.s32.totalorder %s14, 3
    %p244 = pnand %p242, %p243
    %p245 = pneg %p244
    // Predicated region
    $region9: #{conv2d_subsampling_forward.1} parent=5 // pred_check
      _
    $region10: #{conv2d_subsampling_forward.1} parent=5 // pred_check_branch
      %247 = sbr.rel (%p244) target = $region12
    $region11: #{conv2d_subsampling_forward.1} parent=5 // pred_region
      %s248 = ssub.s32 %s14, 1
      // Predicated region
      $region13: #{conv2d_subsampling_forward.1} parent=11 // pred_check
        %p249 = pneg %p75
      $region14: #{conv2d_subsampling_forward.1} parent=11 // pred_check_branch
        %251 = sbr.rel (%p249) target = $region16
      $region15: #{conv2d_subsampling_forward.1} parent=11 // pred_region
        _
      $region16: #{conv2d_subsampling_forward.1} parent=11 // pred_fallthru
        _
      // Predicated region
      $region17: #{conv2d_subsampling_forward.1} parent=11 // pred_check
        %p252 = pneg %p96
      $region18: #{conv2d_subsampling_forward.1} parent=11 // pred_check_branch
        %254 = sbr.rel (%p252) target = $region20
      $region19: #{conv2d_subsampling_forward.1} parent=11 // pred_region
        _
      $region20: #{conv2d_subsampling_forward.1} parent=11 // pred_fallthru
        _
      // Predicated region
      $region21: #{conv2d_subsampling_forward.1} parent=11 // pred_check
        %p255 = pneg %p117
      $region22: #{conv2d_subsampling_forward.1} parent=11 // pred_check_branch
        %257 = sbr.rel (%p255) target = $region24
      $region23: #{conv2d_subsampling_forward.1} parent=11 // pred_region
        _
      $region24: #{conv2d_subsampling_forward.1} parent=11 // pred_fallthru
        _
      // Predicated region
      $region25: #{conv2d_subsampling_forward.1} parent=11 // pred_check
        %p258 = pneg %p138
      $region26: #{conv2d_subsampling_forward.1} parent=11 // pred_check_branch
        %260 = sbr.rel (%p258) target = $region28
      $region27: #{conv2d_subsampling_forward.1} parent=11 // pred_region
        _
      $region28: #{conv2d_subsampling_forward.1} parent=11 // pred_fallthru
        _
      // Predicated region
      $region29: #{conv2d_subsampling_forward.1} parent=11 // pred_check
        %p261 = pneg %p159
      $region30: #{conv2d_subsampling_forward.1} parent=11 // pred_check_branch
        %263 = sbr.rel (%p261) target = $region32
      $region31: #{conv2d_subsampling_forward.1} parent=11 // pred_region
        _
      $region32: #{conv2d_subsampling_forward.1} parent=11 // pred_fallthru
        _
      // Predicated region
      $region33: #{conv2d_subsampling_forward.1} parent=11 // pred_check
        %p264 = pneg %p180
      $region34: #{conv2d_subsampling_forward.1} parent=11 // pred_check_branch
        %266 = sbr.rel (%p264) target = $region36
      $region35: #{conv2d_subsampling_forward.1} parent=11 // pred_region
        _
      $region36: #{conv2d_subsampling_forward.1} parent=11 // pred_fallthru
        _
      // Predicated region
      $region37: #{conv2d_subsampling_forward.1} parent=11 // pred_check
        %p267 = pneg %p206
      $region38: #{conv2d_subsampling_forward.1} parent=11 // pred_check_branch
        %269 = sbr.rel (%p267) target = $region40
      $region39: #{conv2d_subsampling_forward.1} parent=11 // pred_region
        %p270 = scmp.lt.s32.totalorder %s24, 0
        %s271 = scalar_select %p270, %s24, 0
        %s272 = smul.addr %s271, 4
        %s273 = scalar_lea.vmem %s7, %s272
      $region40: #{conv2d_subsampling_forward.1} parent=11 // pred_fallthru
        _
    $region12: #{conv2d_subsampling_forward.1} parent=5 // pred_fallthru
      _
    %p274 = scmp.lt.s32.totalorder %s14, 2
    // Predicated region
    $region41: #{conv2d_subsampling_forward.1} parent=5 // pred_check
      %p275 = pneg %p274
    $region42: #{conv2d_subsampling_forward.1} parent=5 // pred_check_branch
      %277 = sbr.rel (%p275) target = $region44
    $region43: #{conv2d_subsampling_forward.1} parent=5 // pred_region
      // Predicated region
      $region45: #{conv2d_subsampling_forward.1} parent=43 // pred_check
        %p278 = pneg %p48
      $region46: #{conv2d_subsampling_forward.1} parent=43 // pred_check_branch
        %280 = sbr.rel (%p278) target = $region48
      $region47: #{conv2d_subsampling_forward.1} parent=43 // pred_region
        %p281 = scmp.lt.s32.totalorder %s21, 1
        %s282 = scalar_select %p281, %s21, 1
        %p283 = scmp.lt.s32.totalorder %s22, 0
        %s284 = scalar_select %p283, %s22, 0
        %s285 = smul.addr %s284, 7
        %s286 = smul.addr %s282, 7
        %s287 = sadd.s32 %s285, %s286
        %s288 = smul.addr %s287, 4
        %s289 = scalar_lea.vmem %s0, %s288
      $region48: #{conv2d_subsampling_forward.1} parent=43 // pred_fallthru
        _
    $region44: #{conv2d_subsampling_forward.1} parent=5 // pred_fallthru
      _
    %p290 = scmp.le.s32.totalorder 1, %s14
    %p291 = scmp.lt.s32.totalorder %s14, 3
    %p292 = pnand %p290, %p291
    %p293 = pneg %p292
    // Predicated region
    $region49: #{conv2d_subsampling_forward.1} parent=5 // pred_check
      _
    $region50: #{conv2d_subsampling_forward.1} parent=5 // pred_check_branch
      %295 = sbr.rel (%p292) target = $region52
    $region51: #{conv2d_subsampling_forward.1} parent=5 // pred_region
      %s296 = ssub.s32 %s14, 1
      %p297 = scmp.lt.s32.totalorder %s23, 1
      %s298 = scalar_select %p297, %s23, 1
      %p299 = scmp.lt.s32.totalorder %s24, 0
      %s300 = scalar_select %p299, %s24, 0
      %s301 = smul.addr %s300, 7
      %s302 = smul.addr %s298, 7
      %s303 = sadd.s32 %s301, %s302
      %s304 = smul.addr %s303, 4
      %s305 = scalar_lea.vmem %s0, %s304
      %p306 = pneg %p54
      %p307 = pneg %p51
      %p308 = pneg %p75
      %p309 = pneg %p72
      %p310 = pneg %p96
      %p311 = pneg %p93
      %p312 = pneg %p117
      %p313 = pneg %p114
      %p314 = pneg %p138
      %p315 = pneg %p135
      %p316 = pneg %p159
      %p317 = pneg %p156
      %p318 = pneg %p180
      %p319 = pneg %p177
      %p320 = scmp.lt.s32.totalorder %s24, 0
      %s321 = scalar_select %p320, %s24, 0
      %s322 = smul.addr %s321, 4
      %s323 = scalar_lea.vmem %s7, %s322
      %p324 = pneg %p206
      %p325 = pneg %p203
      %p326 = pneg %p234
      %p327 = pneg %p231
      %p328 = scmp.lt.s32.totalorder %s23, 1
      %s329 = scalar_select %p328, %s23, 1
      %p330 = scmp.lt.s32.totalorder %s24, 0
      %s331 = scalar_select %p330, %s24, 0
      %s332 = sadd.s32 %s331, %s329
      %s333 = smul.addr %s332, 4
      %s334 = scalar_lea.vmem %s8, %s333
      %p335 = scmp.lt.s32.totalorder %s23, 1
      %s336 = scalar_select %p335, %s23, 1
      %p337 = scmp.lt.s32.totalorder %s24, 0
      %s338 = scalar_select %p337, %s24, 0
      %s339 = smul.addr %s338, 7
      %s340 = smul.addr %s336, 7
      %s341 = sadd.s32 %s339, %s340
      %s342 = smul.addr %s341, 4
      %s343 = scalar_lea.vmem %s0, %s342
      %p344 = scmp.lt.s32.totalorder %s24, 0
      %s345 = scalar_select %p344, %s24, 0
      %s346 = smul.addr %s345, 4
      %s347 = scalar_lea.vmem %s7, %s346
      %p348 = scmp.lt.s32.totalorder %s23, 1
      %s349 = scalar_select %p348, %s23, 1
      %p350 = scmp.lt.s32.totalorder %s24, 0
      %s351 = scalar_select %p350, %s24, 0
      %s352 = sadd.s32 %s351, %s349
      %s353 = smul.addr %s352, 4
      %s354 = scalar_lea.vmem %s8, %s353
      %v356 = vld [vmem:[%s2] sm:$0x1]
      %v358 = vlaneseq
      %v359 = vshrl.u32 %v358, 7
      %v360 = vsub.s32 0, %v359
      %v361 = vrot.slane %v356, %v360
      %v363 = vld [vmem:[%s343] sm:$0xf]
      %v364 = vld [vmem:[%s1] sm:$0xf]
      %v365 = vld [vmem:[%s1 + $0x4] sm:$0x1]
      %v368 = vunpack.c.l.b16 %v364
      %v369 = vunpack.c.l.b16 %v365
      %v370 = vpack.c.b16 %v369, %v368
      %vm371 = vcmask 72704
      %v373 = vsel %vm371, %v363, 0
      %vm375 = vcmask 1043456
      %vm376 = vcmask 1044480
      %v377 = vsel %vm375, 4294967295, 65535
      %v378 = vsel %vm376, %v377, 0
      %v380 = vand.u32 %v370, %v378
      %382 = vmatprep.subr.bf16.mxu0 0
      %383 = vmatpush1.bf16.msra.mxu0 0
      %384 = vmatprep.subr.bf16.mxu0 0
      %385 = vmatpush1.bf16.msra.mxu0 0
      %386 = vmatprep.subr.bf16.mxu0 0
      %387 = vmatpush1.bf16.msra.mxu0 0
      %388 = vmatprep.subr.bf16.mxu0 0
      %389 = vmatpush1.bf16.msra.mxu0 0
      %390 = vmatprep.subr.bf16.mxu0 0
      %391 = vmatpush1.bf16.msra.mxu0 0
      %392 = vmatprep.subr.bf16.mxu0 0
      %393 = vmatpush1.bf16.msra.mxu0 0
      %394 = vmatprep.subr.bf16.mxu0 0
      %395 = vmatpush1.bf16.msra.mxu0 0
      %396 = vmatprep.subr.bf16.mxu0 0
      %397 = vmatpush1.bf16.msra.mxu0 %v380
      %398 = vmatprep.subr.bf16.mxu0 0
      %399 = vmatpush2.bf16.msra.mxu0 0
      %400 = vmatprep.subr.bf16.mxu0 0
      %401 = vmatpush2.bf16.msra.mxu0 0
      %402 = vmatprep.subr.bf16.mxu0 0
      %403 = vmatpush2.bf16.msra.mxu0 0
      %404 = vmatprep.subr.bf16.mxu0 0
      %405 = vmatpush2.bf16.msra.mxu0 0
      %406 = vmatprep.subr.bf16.mxu0 0
      %407 = vmatpush2.bf16.msra.mxu0 0
      %408 = vmatprep.subr.bf16.mxu0 0
      %409 = vmatpush2.bf16.msra.mxu0 0
      %410 = vmatprep.subr.bf16.mxu0 0
      %411 = vmatpush2.bf16.msra.mxu0 0
      %412 = vmatprep.subr.bf16.mxu0 0
      %413 = vmatpush2.bf16.msra.mxu0 0
      %414 = vmatprep.mubr.bf16.mxu0 0
      %415 = vmatmul.mubr.bf16.gmra.mxu0 %v373
      %v416 = vpop.f32.mrf.mxu0
      %v417 = vadd.f32 %v361, %v416
      %v418 = vpop.f32.mrf.mxu0
      %v419 = vpop.f32.mrf.mxu0
      %v420 = vpop.f32.mrf.mxu0
      %421 = vdwg.mxu0
      %v422 = vmax.f32 %v417, 0.0
      %v423 = vpack.c.bf16 %v422, %v422
      %vm424 = vcmask 257024
      %425 = vst.msk [vmem:[#allocation2] sm:$0xf] %vm424, %v423
      %s426 = scalar_lea.vmem %s343, 4
      %v427 = vld [vmem:[%s426] sm:$0xf]
      %v428 = vld [vmem:[%s1] sm:$0xf]
      %v429 = vld [vmem:[%s1 + $0x4] sm:$0x1]
      %v432 = vunpack.c.l.b16 %v428
      %v433 = vunpack.c.l.b16 %v429
      %v434 = vpack.c.b16 %v433, %v432
      %v436 = vsel %vm371, %v427, 0
      %v439 = vand.u32 %v434, %v378
      %441 = vmatprep.subr.bf16.mxu0 0
      %442 = vmatpush1.bf16.msra.mxu0 0
      %443 = vmatprep.subr.bf16.mxu0 0
      %444 = vmatpush1.bf16.msra.mxu0 0
      %445 = vmatprep.subr.bf16.mxu0 0
      %446 = vmatpush1.bf16.msra.mxu0 0
      %447 = vmatprep.subr.bf16.mxu0 0
      %448 = vmatpush1.bf16.msra.mxu0 0
      %449 = vmatprep.subr.bf16.mxu0 0
      %450 = vmatpush1.bf16.msra.mxu0 0
      %451 = vmatprep.subr.bf16.mxu0 0
      %452 = vmatpush1.bf16.msra.mxu0 0
      %453 = vmatprep.subr.bf16.mxu0 0
      %454 = vmatpush1.bf16.msra.mxu0 0
      %455 = vmatprep.subr.bf16.mxu0 0
      %456 = vmatpush1.bf16.msra.mxu0 %v439
      %457 = vmatprep.subr.bf16.mxu0 0
      %458 = vmatpush2.bf16.msra.mxu0 0
      %459 = vmatprep.subr.bf16.mxu0 0
      %460 = vmatpush2.bf16.msra.mxu0 0
      %461 = vmatprep.subr.bf16.mxu0 0
      %462 = vmatpush2.bf16.msra.mxu0 0
      %463 = vmatprep.subr.bf16.mxu0 0
      %464 = vmatpush2.bf16.msra.mxu0 0
      %465 = vmatprep.subr.bf16.mxu0 0
      %466 = vmatpush2.bf16.msra.mxu0 0
      %467 = vmatprep.subr.bf16.mxu0 0
      %468 = vmatpush2.bf16.msra.mxu0 0
      %469 = vmatprep.subr.bf16.mxu0 0
      %470 = vmatpush2.bf16.msra.mxu0 0
      %471 = vmatprep.subr.bf16.mxu0 0
      %472 = vmatpush2.bf16.msra.mxu0 0
      %473 = vmatprep.mubr.bf16.mxu0 0
      %474 = vmatmul.mubr.bf16.gmra.mxu0 %v436
      %v475 = vpop.f32.mrf.mxu0
      %v476 = vadd.f32 %v361, %v475
      %v477 = vpop.f32.mrf.mxu0
      %v478 = vpop.f32.mrf.mxu0
      %v479 = vpop.f32.mrf.mxu0
      %480 = vdwg.mxu0
      %v481 = vmax.f32 %v476, 0.0
      %v482 = vpack.c.bf16 %v481, %v481
      %s483 = scalar_lea.vmem [#allocation2], 4
      %484 = vst.msk [vmem:[%s483] sm:$0xf] %vm424, %v482
      %s485 = scalar_lea.vmem %s343, 8
      %v486 = vld [vmem:[%s485] sm:$0xf]
      %v487 = vld [vmem:[%s1] sm:$0xf]
      %v488 = vld [vmem:[%s1 + $0x4] sm:$0x1]
      %v491 = vunpack.c.l.b16 %v487
      %v492 = vunpack.c.l.b16 %v488
      %v493 = vpack.c.b16 %v492, %v491
      %v495 = vsel %vm371, %v486, 0
      %v498 = vand.u32 %v493, %v378
      %500 = vmatprep.subr.bf16.mxu0 0
      %501 = vmatpush1.bf16.msra.mxu0 0
      %502 = vmatprep.subr.bf16.mxu0 0
      %503 = vmatpush1.bf16.msra.mxu0 0
      %504 = vmatprep.subr.bf16.mxu0 0
      %505 = vmatpush1.bf16.msra.mxu0 0
      %506 = vmatprep.subr.bf16.mxu0 0
      %507 = vmatpush1.bf16.msra.mxu0 0
      %508 = vmatprep.subr.bf16.mxu0 0
      %509 = vmatpush1.bf16.msra.mxu0 0
      %510 = vmatprep.subr.bf16.mxu0 0
      %511 = vmatpush1.bf16.msra.mxu0 0
      %512 = vmatprep.subr.bf16.mxu0 0
      %513 = vmatpush1.bf16.msra.mxu0 0
      %514 = vmatprep.subr.bf16.mxu0 0
      %515 = vmatpush1.bf16.msra.mxu0 %v498
      %516 = vmatprep.subr.bf16.mxu0 0
      %517 = vmatpush2.bf16.msra.mxu0 0
      %518 = vmatprep.subr.bf16.mxu0 0
      %519 = vmatpush2.bf16.msra.mxu0 0
      %520 = vmatprep.subr.bf16.mxu0 0
      %521 = vmatpush2.bf16.msra.mxu0 0
      %522 = vmatprep.subr.bf16.mxu0 0
      %523 = vmatpush2.bf16.msra.mxu0 0
      %524 = vmatprep.subr.bf16.mxu0 0
      %525 = vmatpush2.bf16.msra.mxu0 0
      %526 = vmatprep.subr.bf16.mxu0 0
      %527 = vmatpush2.bf16.msra.mxu0 0
      %528 = vmatprep.subr.bf16.mxu0 0
      %529 = vmatpush2.bf16.msra.mxu0 0
      %530 = vmatprep.subr.bf16.mxu0 0
      %531 = vmatpush2.bf16.msra.mxu0 0
      %532 = vmatprep.mubr.bf16.mxu0 0
      %533 = vmatmul.mubr.bf16.gmra.mxu0 %v495
      %v534 = vpop.f32.mrf.mxu0
      %v535 = vadd.f32 %v361, %v534
      %v536 = vpop.f32.mrf.mxu0
      %v537 = vpop.f32.mrf.mxu0
      %v538 = vpop.f32.mrf.mxu0
      %539 = vdwg.mxu0
      %v540 = vmax.f32 %v535, 0.0
      %v541 = vpack.c.bf16 %v540, %v540
      %s542 = scalar_lea.vmem [#allocation2], 8
      %543 = vst.msk [vmem:[%s542] sm:$0xf] %vm424, %v541
      %s544 = scalar_lea.vmem %s343, 12
      %v545 = vld [vmem:[%s544] sm:$0xf]
      %v546 = vld [vmem:[%s1] sm:$0xf]
      %v547 = vld [vmem:[%s1 + $0x4] sm:$0x1]
      %v550 = vunpack.c.l.b16 %v546
      %v551 = vunpack.c.l.b16 %v547
      %v552 = vpack.c.b16 %v551, %v550
      %v554 = vsel %vm371, %v545, 0
      %v557 = vand.u32 %v552, %v378
      %559 = vmatprep.subr.bf16.mxu0 0
      %560 = vmatpush1.bf16.msra.mxu0 0
      %561 = vmatprep.subr.bf16.mxu0 0
      %562 = vmatpush1.bf16.msra.mxu0 0
      %563 = vmatprep.subr.bf16.mxu0 0
      %564 = vmatpush1.bf16.msra.mxu0 0
      %565 = vmatprep.subr.bf16.mxu0 0
      %566 = vmatpush1.bf16.msra.mxu0 0
      %567 = vmatprep.subr.bf16.mxu0 0
      %568 = vmatpush1.bf16.msra.mxu0 0
      %569 = vmatprep.subr.bf16.mxu0 0
      %570 = vmatpush1.bf16.msra.mxu0 0
      %571 = vmatprep.subr.bf16.mxu0 0
      %572 = vmatpush1.bf16.msra.mxu0 0
      %573 = vmatprep.subr.bf16.mxu0 0
      %574 = vmatpush1.bf16.msra.mxu0 %v557
      %575 = vmatprep.subr.bf16.mxu0 0
      %576 = vmatpush2.bf16.msra.mxu0 0
      %577 = vmatprep.subr.bf16.mxu0 0
      %578 = vmatpush2.bf16.msra.mxu0 0
      %579 = vmatprep.subr.bf16.mxu0 0
      %580 = vmatpush2.bf16.msra.mxu0 0
      %581 = vmatprep.subr.bf16.mxu0 0
      %582 = vmatpush2.bf16.msra.mxu0 0
      %583 = vmatprep.subr.bf16.mxu0 0
      %584 = vmatpush2.bf16.msra.mxu0 0
      %585 = vmatprep.subr.bf16.mxu0 0
      %586 = vmatpush2.bf16.msra.mxu0 0
      %587 = vmatprep.subr.bf16.mxu0 0
      %588 = vmatpush2.bf16.msra.mxu0 0
      %589 = vmatprep.subr.bf16.mxu0 0
      %590 = vmatpush2.bf16.msra.mxu0 0
      %591 = vmatprep.mubr.bf16.mxu0 0
      %592 = vmatmul.mubr.bf16.gmra.mxu0 %v554
      %v593 = vpop.f32.mrf.mxu0
      %v594 = vadd.f32 %v361, %v593
      %v595 = vpop.f32.mrf.mxu0
      %v596 = vpop.f32.mrf.mxu0
      %v597 = vpop.f32.mrf.mxu0
      %598 = vdwg.mxu0
      %v599 = vmax.f32 %v594, 0.0
      %v600 = vpack.c.bf16 %v599, %v599
      %s601 = scalar_lea.vmem [#allocation2], 12
      %602 = vst.msk [vmem:[%s601] sm:$0xf] %vm424, %v600
      %s603 = scalar_lea.vmem %s343, 16
      %v604 = vld [vmem:[%s603] sm:$0xf]
      %v605 = vld [vmem:[%s1] sm:$0xf]
      %v606 = vld [vmem:[%s1 + $0x4] sm:$0x1]
      %v609 = vunpack.c.l.b16 %v605
      %v610 = vunpack.c.l.b16 %v606
      %v611 = vpack.c.b16 %v610, %v609
      %v613 = vsel %vm371, %v604, 0
      %v616 = vand.u32 %v611, %v378
      %618 = vmatprep.subr.bf16.mxu0 0
      %619 = vmatpush1.bf16.msra.mxu0 0
      %620 = vmatprep.subr.bf16.mxu0 0
      %621 = vmatpush1.bf16.msra.mxu0 0
      %622 = vmatprep.subr.bf16.mxu0 0
      %623 = vmatpush1.bf16.msra.mxu0 0
      %624 = vmatprep.subr.bf16.mxu0 0
      %625 = vmatpush1.bf16.msra.mxu0 0
      %626 = vmatprep.subr.bf16.mxu0 0
      %627 = vmatpush1.bf16.msra.mxu0 0
      %628 = vmatprep.subr.bf16.mxu0 0
      %629 = vmatpush1.bf16.msra.mxu0 0
      %630 = vmatprep.subr.bf16.mxu0 0
      %631 = vmatpush1.bf16.msra.mxu0 0
      %632 = vmatprep.subr.bf16.mxu0 0
      %633 = vmatpush1.bf16.msra.mxu0 %v616
      %634 = vmatprep.subr.bf16.mxu0 0
      %635 = vmatpush2.bf16.msra.mxu0 0
      %636 = vmatprep.subr.bf16.mxu0 0
      %637 = vmatpush2.bf16.msra.mxu0 0
      %638 = vmatprep.subr.bf16.mxu0 0
      %639 = vmatpush2.bf16.msra.mxu0 0
      %640 = vmatprep.subr.bf16.mxu0 0
      %641 = vmatpush2.bf16.msra.mxu0 0
      %642 = vmatprep.subr.bf16.mxu0 0
      %643 = vmatpush2.bf16.msra.mxu0 0
      %644 = vmatprep.subr.bf16.mxu0 0
      %645 = vmatpush2.bf16.msra.mxu0 0
      %646 = vmatprep.subr.bf16.mxu0 0
      %647 = vmatpush2.bf16.msra.mxu0 0
      %648 = vmatprep.subr.bf16.mxu0 0
      %649 = vmatpush2.bf16.msra.mxu0 0
      %650 = vmatprep.mubr.bf16.mxu0 0
      %651 = vmatmul.mubr.bf16.gmra.mxu0 %v613
      %v652 = vpop.f32.mrf.mxu0
      %v653 = vadd.f32 %v361, %v652
      %v654 = vpop.f32.mrf.mxu0
      %v655 = vpop.f32.mrf.mxu0
      %v656 = vpop.f32.mrf.mxu0
      %657 = vdwg.mxu0
      %v658 = vmax.f32 %v653, 0.0
      %v659 = vpack.c.bf16 %v658, %v658
      %s660 = scalar_lea.vmem [#allocation2], 16
      %661 = vst.msk [vmem:[%s660] sm:$0xf] %vm424, %v659
      %s662 = scalar_lea.vmem %s343, 20
      %v663 = vld [vmem:[%s662] sm:$0xf]
      %v664 = vld [vmem:[%s1] sm:$0xf]
      %v665 = vld [vmem:[%s1 + $0x4] sm:$0x1]
      %v668 = vunpack.c.l.b16 %v664
      %v669 = vunpack.c.l.b16 %v665
      %v670 = vpack.c.b16 %v669, %v668
      %v672 = vsel %vm371, %v663, 0
      %v675 = vand.u32 %v670, %v378
      %677 = vmatprep.subr.bf16.mxu0 0
      %678 = vmatpush1.bf16.msra.mxu0 0
      %679 = vmatprep.subr.bf16.mxu0 0
      %680 = vmatpush1.bf16.msra.mxu0 0
      %681 = vmatprep.subr.bf16.mxu0 0
      %682 = vmatpush1.bf16.msra.mxu0 0
      %683 = vmatprep.subr.bf16.mxu0 0
      %684 = vmatpush1.bf16.msra.mxu0 0
      %685 = vmatprep.subr.bf16.mxu0 0
      %686 = vmatpush1.bf16.msra.mxu0 0
      %687 = vmatprep.subr.bf16.mxu0 0
      %688 = vmatpush1.bf16.msra.mxu0 0
      %689 = vmatprep.subr.bf16.mxu0 0
      %690 = vmatpush1.bf16.msra.mxu0 0
      %691 = vmatprep.subr.bf16.mxu0 0
      %692 = vmatpush1.bf16.msra.mxu0 %v675
      %693 = vmatprep.subr.bf16.mxu0 0
      %694 = vmatpush2.bf16.msra.mxu0 0
      %695 = vmatprep.subr.bf16.mxu0 0
      %696 = vmatpush2.bf16.msra.mxu0 0
      %697 = vmatprep.subr.bf16.mxu0 0
      %698 = vmatpush2.bf16.msra.mxu0 0
      %699 = vmatprep.subr.bf16.mxu0 0
      %700 = vmatpush2.bf16.msra.mxu0 0
      %701 = vmatprep.subr.bf16.mxu0 0
      %702 = vmatpush2.bf16.msra.mxu0 0
      %703 = vmatprep.subr.bf16.mxu0 0
      %704 = vmatpush2.bf16.msra.mxu0 0
      %705 = vmatprep.subr.bf16.mxu0 0
      %706 = vmatpush2.bf16.msra.mxu0 0
      %707 = vmatprep.subr.bf16.mxu0 0
      %708 = vmatpush2.bf16.msra.mxu0 0
      %709 = vmatprep.mubr.bf16.mxu0 0
      %710 = vmatmul.mubr.bf16.gmra.mxu0 %v672
      %v711 = vpop.f32.mrf.mxu0
      %v712 = vadd.f32 %v361, %v711
      %v713 = vpop.f32.mrf.mxu0
      %v714 = vpop.f32.mrf.mxu0
      %v715 = vpop.f32.mrf.mxu0
      %716 = vdwg.mxu0
      %v717 = vmax.f32 %v712, 0.0
      %v718 = vpack.c.bf16 %v717, %v717
      %s719 = scalar_lea.vmem [#allocation2], 20
      %720 = vst.msk [vmem:[%s719] sm:$0xf] %vm424, %v718
      %s721 = scalar_lea.vmem %s343, 24
      %v722 = vld [vmem:[%s721] sm:$0xf]
      %v723 = vld [vmem:[%s1] sm:$0xf]
      %v724 = vld [vmem:[%s1 + $0x4] sm:$0x1]
      %v727 = vunpack.c.l.b16 %v723
      %v728 = vunpack.c.l.b16 %v724
      %v729 = vpack.c.b16 %v728, %v727
      %v731 = vsel %vm371, %v722, 0
      %v734 = vand.u32 %v729, %v378
      %736 = vmatprep.subr.bf16.mxu0 0
      %737 = vmatpush1.bf16.msra.mxu0 0
      %738 = vmatprep.subr.bf16.mxu0 0
      %739 = vmatpush1.bf16.msra.mxu0 0
      %740 = vmatprep.subr.bf16.mxu0 0
      %741 = vmatpush1.bf16.msra.mxu0 0
      %742 = vmatprep.subr.bf16.mxu0 0
      %743 = vmatpush1.bf16.msra.mxu0 0
      %744 = vmatprep.subr.bf16.mxu0 0
      %745 = vmatpush1.bf16.msra.mxu0 0
      %746 = vmatprep.subr.bf16.mxu0 0
      %747 = vmatpush1.bf16.msra.mxu0 0
      %748 = vmatprep.subr.bf16.mxu0 0
      %749 = vmatpush1.bf16.msra.mxu0 0
      %750 = vmatprep.subr.bf16.mxu0 0
      %751 = vmatpush1.bf16.msra.mxu0 %v734
      %752 = vmatprep.subr.bf16.mxu0 0
      %753 = vmatpush2.bf16.msra.mxu0 0
      %754 = vmatprep.subr.bf16.mxu0 0
      %755 = vmatpush2.bf16.msra.mxu0 0
      %756 = vmatprep.subr.bf16.mxu0 0
      %757 = vmatpush2.bf16.msra.mxu0 0
      %758 = vmatprep.subr.bf16.mxu0 0
      %759 = vmatpush2.bf16.msra.mxu0 0
      %760 = vmatprep.subr.bf16.mxu0 0
      %761 = vmatpush2.bf16.msra.mxu0 0
      %762 = vmatprep.subr.bf16.mxu0 0
      %763 = vmatpush2.bf16.msra.mxu0 0
      %764 = vmatprep.subr.bf16.mxu0 0
      %765 = vmatpush2.bf16.msra.mxu0 0
      %766 = vmatprep.subr.bf16.mxu0 0
      %767 = vmatpush2.bf16.msra.mxu0 0
      %768 = vmatprep.mubr.bf16.mxu0 0
      %769 = vmatmul.mubr.bf16.gmra.mxu0 %v731
      %v770 = vpop.f32.mrf.mxu0
      %v771 = vadd.f32 %v361, %v770
      %v772 = vpop.f32.mrf.mxu0
      %v773 = vpop.f32.mrf.mxu0
      %v774 = vpop.f32.mrf.mxu0
      %775 = vdwg.mxu0
      %v776 = vmax.f32 %v771, 0.0
      %v777 = vpack.c.bf16 %v776, %v776
      %s778 = scalar_lea.vmem [#allocation2], 24
      %779 = vst.msk [vmem:[%s778] sm:$0xf] %vm424, %v777
      %v780 = vld [vmem:[%s4] sm:$0x1]
      %v782 = vlaneseq
      %v783 = vshrl.u32 %v782, 7
      %v784 = vsub.s32 0, %v783
      %v785 = vrot.slane %v780, %v784
      %v787 = vld [vmem:[#allocation2] sm:$0x3]
      %v788 = vld [vmem:[%s3] sm:$0xf]
      %v789 = vld [vmem:[%s3 + $0x4] sm:$0xf]
      %v790 = vld [vmem:[%s3 + $0x8] sm:$0xf]
      %v791 = vld [vmem:[%s3 + $0xc] sm:$0xf]
      %v792 = vld [vmem:[%s483] sm:$0x3]
      %s793 = scalar_lea.vmem %s3, 16
      %v794 = vld [vmem:[%s793] sm:$0xf]
      %v795 = vld [vmem:[%s793 + $0x4] sm:$0xf]
      %v796 = vld [vmem:[%s793 + $0x8] sm:$0xf]
      %v797 = vld [vmem:[%s793 + $0xc] sm:$0xf]
      %v802 = vunpack.c.l.b16 %v794
      %v803 = vunpack.c.l.b16 %v795
      %v804 = vunpack.c.l.b16 %v796
      %v805 = vunpack.c.l.b16 %v797
      %v806 = vpack.c.b16 %v803, %v802
      %v807 = vpack.c.b16 %v805, %v804
      %vm810 = vcmask 261120
      %v812 = vsel %vm810, %v792, 0
      %814 = vmatprep.subr.bf16.mxu0 0
      %815 = vmatpush1.bf16.msra.mxu0 0
      %816 = vmatprep.subr.bf16.mxu0 0
      %817 = vmatpush1.bf16.msra.mxu0 0
      %818 = vmatprep.subr.bf16.mxu0 0
      %819 = vmatpush1.bf16.msra.mxu0 0
      %820 = vmatprep.subr.bf16.mxu0 0
      %821 = vmatpush1.bf16.msra.mxu0 0
      %822 = vmatprep.subr.bf16.mxu0 0
      %823 = vmatpush1.bf16.msra.mxu0 0
      %824 = vmatprep.subr.bf16.mxu0 0
      %825 = vmatpush1.bf16.msra.mxu0 0
      %826 = vmatprep.subr.bf16.mxu0 0
      %827 = vmatpush1.bf16.msra.mxu0 %v807
      %828 = vmatprep.subr.bf16.mxu0 0
      %829 = vmatpush1.bf16.msra.mxu0 %v806
      %830 = vmatprep.subr.bf16.mxu0 0
      %831 = vmatpush2.bf16.msra.mxu0 0
      %832 = vmatprep.subr.bf16.mxu0 0
      %833 = vmatpush2.bf16.msra.mxu0 0
      %834 = vmatprep.subr.bf16.mxu0 0
      %835 = vmatpush2.bf16.msra.mxu0 0
      %836 = vmatprep.subr.bf16.mxu0 0
      %837 = vmatpush2.bf16.msra.mxu0 0
      %838 = vmatprep.subr.bf16.mxu0 0
      %839 = vmatpush2.bf16.msra.mxu0 0
      %840 = vmatprep.subr.bf16.mxu0 0
      %841 = vmatpush2.bf16.msra.mxu0 0
      %842 = vmatprep.subr.bf16.mxu0 0
      %843 = vmatpush2.bf16.msra.mxu0 0
      %844 = vmatprep.subr.bf16.mxu0 0
      %845 = vmatpush2.bf16.msra.mxu0 0
      %846 = vmatprep.mubr.bf16.mxu0 0
      %847 = vmatmul.mubr.bf16.gmra.mxu0 %v812
      %v848 = vpop.f32.mrf.mxu0
      %v849 = vadd.f32 0.0, %v848
      %v850 = vpop.f32.mrf.mxu0
      %v851 = vpop.f32.mrf.mxu0
      %v852 = vpop.f32.mrf.mxu0
      %853 = vdwg.mxu0
      %v858 = vunpack.c.l.b16 %v788
      %v859 = vunpack.c.l.b16 %v789
      %v860 = vunpack.c.l.b16 %v790
      %v861 = vunpack.c.l.b16 %v791
      %v862 = vpack.c.b16 %v859, %v858
      %v863 = vpack.c.b16 %v861, %v860
      %v867 = vsel %vm810, %v787, 0
      %869 = vmatprep.subr.bf16.mxu0 0
      %870 = vmatpush1.bf16.msra.mxu0 0
      %871 = vmatprep.subr.bf16.mxu0 0
      %872 = vmatpush1.bf16.msra.mxu0 0
      %873 = vmatprep.subr.bf16.mxu0 0
      %874 = vmatpush1.bf16.msra.mxu0 0
      %875 = vmatprep.subr.bf16.mxu0 0
      %876 = vmatpush1.bf16.msra.mxu0 0
      %877 = vmatprep.subr.bf16.mxu0 0
      %878 = vmatpush1.bf16.msra.mxu0 0
      %879 = vmatprep.subr.bf16.mxu0 0
      %880 = vmatpush1.bf16.msra.mxu0 0
      %881 = vmatprep.subr.bf16.mxu0 0
      %882 = vmatpush1.bf16.msra.mxu0 %v863
      %883 = vmatprep.subr.bf16.mxu0 0
      %884 = vmatpush1.bf16.msra.mxu0 %v862
      %885 = vmatprep.subr.bf16.mxu0 0
      %886 = vmatpush2.bf16.msra.mxu0 0
      %887 = vmatprep.subr.bf16.mxu0 0
      %888 = vmatpush2.bf16.msra.mxu0 0
      %889 = vmatprep.subr.bf16.mxu0 0
      %890 = vmatpush2.bf16.msra.mxu0 0
      %891 = vmatprep.subr.bf16.mxu0 0
      %892 = vmatpush2.bf16.msra.mxu0 0
      %893 = vmatprep.subr.bf16.mxu0 0
      %894 = vmatpush2.bf16.msra.mxu0 0
      %895 = vmatprep.subr.bf16.mxu0 0
      %896 = vmatpush2.bf16.msra.mxu0 0
      %897 = vmatprep.subr.bf16.mxu0 0
      %898 = vmatpush2.bf16.msra.mxu0 0
      %899 = vmatprep.subr.bf16.mxu0 0
      %900 = vmatpush2.bf16.msra.mxu0 0
      %901 = vmatprep.mubr.bf16.mxu0 0
      %902 = vmatmul.mubr.bf16.gmra.mxu0 %v867
      %v903 = vpop.f32.mrf.mxu0
      %v904 = vadd.f32 %v849, %v903
      %v905 = vpop.f32.mrf.mxu0
      %v906 = vpop.f32.mrf.mxu0
      %v907 = vpop.f32.mrf.mxu0
      %908 = vdwg.mxu0
      %v909 = vld [vmem:[%s542] sm:$0x3]
      %s910 = scalar_lea.vmem %s3, 32
      %v911 = vld [vmem:[%s910] sm:$0xf]
      %v912 = vld [vmem:[%s910 + $0x4] sm:$0xf]
      %v913 = vld [vmem:[%s910 + $0x8] sm:$0xf]
      %v914 = vld [vmem:[%s910 + $0xc] sm:$0xf]
      %v919 = vunpack.c.l.b16 %v911
      %v920 = vunpack.c.l.b16 %v912
      %v921 = vunpack.c.l.b16 %v913
      %v922 = vunpack.c.l.b16 %v914
      %v923 = vpack.c.b16 %v920, %v919
      %v924 = vpack.c.b16 %v922, %v921
      %v928 = vsel %vm810, %v909, 0
      %930 = vmatprep.subr.bf16.mxu0 0
      %931 = vmatpush1.bf16.msra.mxu0 0
      %932 = vmatprep.subr.bf16.mxu0 0
      %933 = vmatpush1.bf16.msra.mxu0 0
      %934 = vmatprep.subr.bf16.mxu0 0
      %935 = vmatpush1.bf16.msra.mxu0 0
      %936 = vmatprep.subr.bf16.mxu0 0
      %937 = vmatpush1.bf16.msra.mxu0 0
      %938 = vmatprep.subr.bf16.mxu0 0
      %939 = vmatpush1.bf16.msra.mxu0 0
      %940 = vmatprep.subr.bf16.mxu0 0
      %941 = vmatpush1.bf16.msra.mxu0 0
      %942 = vmatprep.subr.bf16.mxu0 0
      %943 = vmatpush1.bf16.msra.mxu0 %v924
      %944 = vmatprep.subr.bf16.mxu0 0
      %945 = vmatpush1.bf16.msra.mxu0 %v923
      %946 = vmatprep.subr.bf16.mxu0 0
      %947 = vmatpush2.bf16.msra.mxu0 0
      %948 = vmatprep.subr.bf16.mxu0 0
      %949 = vmatpush2.bf16.msra.mxu0 0
      %950 = vmatprep.subr.bf16.mxu0 0
      %951 = vmatpush2.bf16.msra.mxu0 0
      %952 = vmatprep.subr.bf16.mxu0 0
      %953 = vmatpush2.bf16.msra.mxu0 0
      %954 = vmatprep.subr.bf16.mxu0 0
      %955 = vmatpush2.bf16.msra.mxu0 0
      %956 = vmatprep.subr.bf16.mxu0 0
      %957 = vmatpush2.bf16.msra.mxu0 0
      %958 = vmatprep.subr.bf16.mxu0 0
      %959 = vmatpush2.bf16.msra.mxu0 0
      %960 = vmatprep.subr.bf16.mxu0 0
      %961 = vmatpush2.bf16.msra.mxu0 0
      %962 = vmatprep.mubr.bf16.mxu0 0
      %963 = vmatmul.mubr.bf16.gmra.mxu0 %v928
      %v964 = vpop.f32.mrf.mxu0
      %v965 = vadd.f32 0.0, %v964
      %v966 = vpop.f32.mrf.mxu0
      %v967 = vpop.f32.mrf.mxu0
      %v968 = vpop.f32.mrf.mxu0
      %969 = vdwg.mxu0
      %v970 = vadd.f32 %v904, %v965
      %v971 = vld [vmem:[#allocation2] sm:$0xc]
      %s972 = scalar_lea.vmem %s3, 48
      %v973 = vld [vmem:[%s972] sm:$0xf]
      %v974 = vld [vmem:[%s972 + $0x4] sm:$0xf]
      %v975 = vld [vmem:[%s972 + $0x8] sm:$0xf]
      %v976 = vld [vmem:[%s972 + $0xc] sm:$0xf]
      %v978 = vunpack.c.l.b16 %v971
      %v979 = vpack.c.b16 %v978, %v978
      %v980 = vrot.slane %v979, 2
      %v985 = vunpack.c.l.b16 %v973
      %v986 = vunpack.c.l.b16 %v974
      %v987 = vunpack.c.l.b16 %v975
      %v988 = vunpack.c.l.b16 %v976
      %v989 = vpack.c.b16 %v986, %v985
      %v990 = vpack.c.b16 %v988, %v987
      %v994 = vsel %vm810, %v980, 0
      %996 = vmatprep.subr.bf16.mxu0 0
      %997 = vmatpush1.bf16.msra.mxu0 0
      %998 = vmatprep.subr.bf16.mxu0 0
      %999 = vmatpush1.bf16.msra.mxu0 0
      %1000 = vmatprep.subr.bf16.mxu0 0
      %1001 = vmatpush1.bf16.msra.mxu0 0
      %1002 = vmatprep.subr.bf16.mxu0 0
      %1003 = vmatpush1.bf16.msra.mxu0 0
      %1004 = vmatprep.subr.bf16.mxu0 0
      %1005 = vmatpush1.bf16.msra.mxu0 0
      %1006 = vmatprep.subr.bf16.mxu0 0
      %1007 = vmatpush1.bf16.msra.mxu0 0
      %1008 = vmatprep.subr.bf16.mxu0 0
      %1009 = vmatpush1.bf16.msra.mxu0 %v990
      %1010 = vmatprep.subr.bf16.mxu0 0
      %1011 = vmatpush1.bf16.msra.mxu0 %v989
      %1012 = vmatprep.subr.bf16.mxu0 0
      %1013 = vmatpush2.bf16.msra.mxu0 0
      %1014 = vmatprep.subr.bf16.mxu0 0
      %1015 = vmatpush2.bf16.msra.mxu0 0
      %1016 = vmatprep.subr.bf16.mxu0 0
      %1017 = vmatpush2.bf16.msra.mxu0 0
      %1018 = vmatprep.subr.bf16.mxu0 0
      %1019 = vmatpush2.bf16.msra.mxu0 0
      %1020 = vmatprep.subr.bf16.mxu0 0
      %1021 = vmatpush2.bf16.msra.mxu0 0
      %1022 = vmatprep.subr.bf16.mxu0 0
      %1023 = vmatpush2.bf16.msra.mxu0 0
      %1024 = vmatprep.subr.bf16.mxu0 0
      %1025 = vmatpush2.bf16.msra.mxu0 0
      %1026 = vmatprep.subr.bf16.mxu0 0
      %1027 = vmatpush2.bf16.msra.mxu0 0
      %1028 = vmatprep.mubr.bf16.mxu0 0
      %1029 = vmatmul.mubr.bf16.gmra.mxu0 %v994
      %v1030 = vpop.f32.mrf.mxu0
      %v1031 = vadd.f32 0.0, %v1030
      %v1032 = vpop.f32.mrf.mxu0
      %v1033 = vpop.f32.mrf.mxu0
      %v1034 = vpop.f32.mrf.mxu0
      %1035 = vdwg.mxu0
      %v1036 = vadd.f32 %v970, %v1031
      %v1037 = vld [vmem:[%s483] sm:$0xc]
      %s1038 = scalar_lea.vmem %s3, 64
      %v1039 = vld [vmem:[%s1038] sm:$0xf]
      %v1040 = vld [vmem:[%s1038 + $0x4] sm:$0xf]
      %v1041 = vld [vmem:[%s1038 + $0x8] sm:$0xf]
      %v1042 = vld [vmem:[%s1038 + $0xc] sm:$0xf]
      %v1044 = vunpack.c.l.b16 %v1037
      %v1045 = vpack.c.b16 %v1044, %v1044
      %v1046 = vrot.slane %v1045, 2
      %v1051 = vunpack.c.l.b16 %v1039
      %v1052 = vunpack.c.l.b16 %v1040
      %v1053 = vunpack.c.l.b16 %v1041
      %v1054 = vunpack.c.l.b16 %v1042
      %v1055 = vpack.c.b16 %v1052, %v1051
      %v1056 = vpack.c.b16 %v1054, %v1053
      %v1060 = vsel %vm810, %v1046, 0
      %1062 = vmatprep.subr.bf16.mxu0 0
      %1063 = vmatpush1.bf16.msra.mxu0 0
      %1064 = vmatprep.subr.bf16.mxu0 0
      %1065 = vmatpush1.bf16.msra.mxu0 0
      %1066 = vmatprep.subr.bf16.mxu0 0
      %1067 = vmatpush1.bf16.msra.mxu0 0
      %1068 = vmatprep.subr.bf16.mxu0 0
      %1069 = vmatpush1.bf16.msra.mxu0 0
      %1070 = vmatprep.subr.bf16.mxu0 0
      %1071 = vmatpush1.bf16.msra.mxu0 0
      %1072 = vmatprep.subr.bf16.mxu0 0
      %1073 = vmatpush1.bf16.msra.mxu0 0
      %1074 = vmatprep.subr.bf16.mxu0 0
      %1075 = vmatpush1.bf16.msra.mxu0 %v1056
      %1076 = vmatprep.subr.bf16.mxu0 0
      %1077 = vmatpush1.bf16.msra.mxu0 %v1055
      %1078 = vmatprep.subr.bf16.mxu0 0
      %1079 = vmatpush2.bf16.msra.mxu0 0
      %1080 = vmatprep.subr.bf16.mxu0 0
      %1081 = vmatpush2.bf16.msra.mxu0 0
      %1082 = vmatprep.subr.bf16.mxu0 0
      %1083 = vmatpush2.bf16.msra.mxu0 0
      %1084 = vmatprep.subr.bf16.mxu0 0
      %1085 = vmatpush2.bf16.msra.mxu0 0
      %1086 = vmatprep.subr.bf16.mxu0 0
      %1087 = vmatpush2.bf16.msra.mxu0 0
      %1088 = vmatprep.subr.bf16.mxu0 0
      %1089 = vmatpush2.bf16.msra.mxu0 0
      %1090 = vmatprep.subr.bf16.mxu0 0
      %1091 = vmatpush2.bf16.msra.mxu0 0
      %1092 = vmatprep.subr.bf16.mxu0 0
      %1093 = vmatpush2.bf16.msra.mxu0 0
      %1094 = vmatprep.mubr.bf16.mxu0 0
      %1095 = vmatmul.mubr.bf16.gmra.mxu0 %v1060
      %v1096 = vpop.f32.mrf.mxu0
      %v1097 = vadd.f32 0.0, %v1096
      %v1098 = vpop.f32.mrf.mxu0
      %v1099 = vpop.f32.mrf.mxu0
      %v1100 = vpop.f32.mrf.mxu0
      %1101 = vdwg.mxu0
      %v1102 = vadd.f32 %v1036, %v1097
      %v1103 = vld [vmem:[%s542] sm:$0xc]
      %s1104 = scalar_lea.vmem %s3, 80
      %v1105 = vld [vmem:[%s1104] sm:$0xf]
      %v1106 = vld [vmem:[%s1104 + $0x4] sm:$0xf]
      %v1107 = vld [vmem:[%s1104 + $0x8] sm:$0xf]
      %v1108 = vld [vmem:[%s1104 + $0xc] sm:$0xf]
      %v1110 = vunpack.c.l.b16 %v1103
      %v1111 = vpack.c.b16 %v1110, %v1110
      %v1112 = vrot.slane %v1111, 2
      %v1117 = vunpack.c.l.b16 %v1105
      %v1118 = vunpack.c.l.b16 %v1106
      %v1119 = vunpack.c.l.b16 %v1107
      %v1120 = vunpack.c.l.b16 %v1108
      %v1121 = vpack.c.b16 %v1118, %v1117
      %v1122 = vpack.c.b16 %v1120, %v1119
      %v1126 = vsel %vm810, %v1112, 0
      %1128 = vmatprep.subr.bf16.mxu0 0
      %1129 = vmatpush1.bf16.msra.mxu0 0
      %1130 = vmatprep.subr.bf16.mxu0 0
      %1131 = vmatpush1.bf16.msra.mxu0 0
      %1132 = vmatprep.subr.bf16.mxu0 0
      %1133 = vmatpush1.bf16.msra.mxu0 0
      %1134 = vmatprep.subr.bf16.mxu0 0
      %1135 = vmatpush1.bf16.msra.mxu0 0
      %1136 = vmatprep.subr.bf16.mxu0 0
      %1137 = vmatpush1.bf16.msra.mxu0 0
      %1138 = vmatprep.subr.bf16.mxu0 0
      %1139 = vmatpush1.bf16.msra.mxu0 0
      %1140 = vmatprep.subr.bf16.mxu0 0
      %1141 = vmatpush1.bf16.msra.mxu0 %v1122
      %1142 = vmatprep.subr.bf16.mxu0 0
      %1143 = vmatpush1.bf16.msra.mxu0 %v1121
      %1144 = vmatprep.subr.bf16.mxu0 0
      %1145 = vmatpush2.bf16.msra.mxu0 0
      %1146 = vmatprep.subr.bf16.mxu0 0
      %1147 = vmatpush2.bf16.msra.mxu0 0
      %1148 = vmatprep.subr.bf16.mxu0 0
      %1149 = vmatpush2.bf16.msra.mxu0 0
      %1150 = vmatprep.subr.bf16.mxu0 0
      %1151 = vmatpush2.bf16.msra.mxu0 0
      %1152 = vmatprep.subr.bf16.mxu0 0
      %1153 = vmatpush2.bf16.msra.mxu0 0
      %1154 = vmatprep.subr.bf16.mxu0 0
      %1155 = vmatpush2.bf16.msra.mxu0 0
      %1156 = vmatprep.subr.bf16.mxu0 0
      %1157 = vmatpush2.bf16.msra.mxu0 0
      %1158 = vmatprep.subr.bf16.mxu0 0
      %1159 = vmatpush2.bf16.msra.mxu0 0
      %1160 = vmatprep.mubr.bf16.mxu0 0
      %1161 = vmatmul.mubr.bf16.gmra.mxu0 %v1126
      %v1162 = vpop.f32.mrf.mxu0
      %v1163 = vadd.f32 0.0, %v1162
      %v1164 = vpop.f32.mrf.mxu0
      %v1165 = vpop.f32.mrf.mxu0
      %v1166 = vpop.f32.mrf.mxu0
      %1167 = vdwg.mxu0
      %v1168 = vadd.f32 %v1102, %v1163
      %s1169 = scalar_lea.vmem %s3, 96
      %v1170 = vld [vmem:[%s1169] sm:$0xf]
      %v1171 = vld [vmem:[%s1169 + $0x4] sm:$0xf]
      %v1172 = vld [vmem:[%s1169 + $0x8] sm:$0xf]
      %v1173 = vld [vmem:[%s1169 + $0xc] sm:$0xf]
      %v1175 = vunpack.c.l.b16 %v787
      %v1176 = vpack.c.b16 %v1175, %v1175
      %v1178 = vshrl.u32 %v1176, 16
      %v1180 = vshll.u32 %v1176, 16
      %v1182 = vrot.slane %v1180, 1
      %v1183 = vor.u32 %v1178, %v1182
      %v1188 = vunpack.c.l.b16 %v1170
      %v1189 = vunpack.c.l.b16 %v1171
      %v1190 = vunpack.c.l.b16 %v1172
      %v1191 = vunpack.c.l.b16 %v1173
      %v1192 = vpack.c.b16 %v1189, %v1188
      %v1193 = vpack.c.b16 %v1191, %v1190
      %v1197 = vsel %vm810, %v1183, 0
      %1199 = vmatprep.subr.bf16.mxu0 0
      %1200 = vmatpush1.bf16.msra.mxu0 0
      %1201 = vmatprep.subr.bf16.mxu0 0
      %1202 = vmatpush1.bf16.msra.mxu0 0
      %1203 = vmatprep.subr.bf16.mxu0 0
      %1204 = vmatpush1.bf16.msra.mxu0 0
      %1205 = vmatprep.subr.bf16.mxu0 0
      %1206 = vmatpush1.bf16.msra.mxu0 0
      %1207 = vmatprep.subr.bf16.mxu0 0
      %1208 = vmatpush1.bf16.msra.mxu0 0
      %1209 = vmatprep.subr.bf16.mxu0 0
      %1210 = vmatpush1.bf16.msra.mxu0 0
      %1211 = vmatprep.subr.bf16.mxu0 0
      %1212 = vmatpush1.bf16.msra.mxu0 %v1193
      %1213 = vmatprep.subr.bf16.mxu0 0
      %1214 = vmatpush1.bf16.msra.mxu0 %v1192
      %1215 = vmatprep.subr.bf16.mxu0 0
      %1216 = vmatpush2.bf16.msra.mxu0 0
      %1217 = vmatprep.subr.bf16.mxu0 0
      %1218 = vmatpush2.bf16.msra.mxu0 0
      %1219 = vmatprep.subr.bf16.mxu0 0
      %1220 = vmatpush2.bf16.msra.mxu0 0
      %1221 = vmatprep.subr.bf16.mxu0 0
      %1222 = vmatpush2.bf16.msra.mxu0 0
      %1223 = vmatprep.subr.bf16.mxu0 0
      %1224 = vmatpush2.bf16.msra.mxu0 0
      %1225 = vmatprep.subr.bf16.mxu0 0
      %1226 = vmatpush2.bf16.msra.mxu0 0
      %1227 = vmatprep.subr.bf16.mxu0 0
      %1228 = vmatpush2.bf16.msra.mxu0 0
      %1229 = vmatprep.subr.bf16.mxu0 0
      %1230 = vmatpush2.bf16.msra.mxu0 0
      %1231 = vmatprep.mubr.bf16.mxu0 0
      %1232 = vmatmul.mubr.bf16.gmra.mxu0 %v1197
      %v1233 = vpop.f32.mrf.mxu0
      %v1234 = vadd.f32 0.0, %v1233
      %v1235 = vpop.f32.mrf.mxu0
      %v1236 = vpop.f32.mrf.mxu0
      %v1237 = vpop.f32.mrf.mxu0
      %1238 = vdwg.mxu0
      %v1239 = vadd.f32 %v1168, %v1234
      %s1240 = scalar_lea.vmem %s3, 112
      %v1241 = vld [vmem:[%s1240] sm:$0xf]
      %v1242 = vld [vmem:[%s1240 + $0x4] sm:$0xf]
      %v1243 = vld [vmem:[%s1240 + $0x8] sm:$0xf]
      %v1244 = vld [vmem:[%s1240 + $0xc] sm:$0xf]
      %v1246 = vunpack.c.l.b16 %v792
      %v1247 = vpack.c.b16 %v1246, %v1246
      %v1249 = vshrl.u32 %v1247, 16
      %v1251 = vshll.u32 %v1247, 16
      %v1253 = vrot.slane %v1251, 1
      %v1254 = vor.u32 %v1249, %v1253
      %v1259 = vunpack.c.l.b16 %v1241
      %v1260 = vunpack.c.l.b16 %v1242
      %v1261 = vunpack.c.l.b16 %v1243
      %v1262 = vunpack.c.l.b16 %v1244
      %v1263 = vpack.c.b16 %v1260, %v1259
      %v1264 = vpack.c.b16 %v1262, %v1261
      %v1268 = vsel %vm810, %v1254, 0
      %1270 = vmatprep.subr.bf16.mxu0 0
      %1271 = vmatpush1.bf16.msra.mxu0 0
      %1272 = vmatprep.subr.bf16.mxu0 0
      %1273 = vmatpush1.bf16.msra.mxu0 0
      %1274 = vmatprep.subr.bf16.mxu0 0
      %1275 = vmatpush1.bf16.msra.mxu0 0
      %1276 = vmatprep.subr.bf16.mxu0 0
      %1277 = vmatpush1.bf16.msra.mxu0 0
      %1278 = vmatprep.subr.bf16.mxu0 0
      %1279 = vmatpush1.bf16.msra.mxu0 0
      %1280 = vmatprep.subr.bf16.mxu0 0
      %1281 = vmatpush1.bf16.msra.mxu0 0
      %1282 = vmatprep.subr.bf16.mxu0 0
      %1283 = vmatpush1.bf16.msra.mxu0 %v1264
      %1284 = vmatprep.subr.bf16.mxu0 0
      %1285 = vmatpush1.bf16.msra.mxu0 %v1263
      %1286 = vmatprep.subr.bf16.mxu0 0
      %1287 = vmatpush2.bf16.msra.mxu0 0
      %1288 = vmatprep.subr.bf16.mxu0 0
      %1289 = vmatpush2.bf16.msra.mxu0 0
      %1290 = vmatprep.subr.bf16.mxu0 0
      %1291 = vmatpush2.bf16.msra.mxu0 0
      %1292 = vmatprep.subr.bf16.mxu0 0
      %1293 = vmatpush2.bf16.msra.mxu0 0
      %1294 = vmatprep.subr.bf16.mxu0 0
      %1295 = vmatpush2.bf16.msra.mxu0 0
      %1296 = vmatprep.subr.bf16.mxu0 0
      %1297 = vmatpush2.bf16.msra.mxu0 0
      %1298 = vmatprep.subr.bf16.mxu0 0
      %1299 = vmatpush2.bf16.msra.mxu0 0
      %1300 = vmatprep.subr.bf16.mxu0 0
      %1301 = vmatpush2.bf16.msra.mxu0 0
      %1302 = vmatprep.mubr.bf16.mxu0 0
      %1303 = vmatmul.mubr.bf16.gmra.mxu0 %v1268
      %v1304 = vpop.f32.mrf.mxu0
      %v1305 = vadd.f32 0.0, %v1304
      %v1306 = vpop.f32.mrf.mxu0
      %v1307 = vpop.f32.mrf.mxu0
      %v1308 = vpop.f32.mrf.mxu0
      %1309 = vdwg.mxu0
      %v1310 = vadd.f32 %v1239, %v1305
      %s1311 = scalar_lea.vmem %s3, 128
      %v1312 = vld [vmem:[%s1311] sm:$0xf]
      %v1313 = vld [vmem:[%s1311 + $0x4] sm:$0xf]
      %v1314 = vld [vmem:[%s1311 + $0x8] sm:$0xf]
      %v1315 = vld [vmem:[%s1311 + $0xc] sm:$0xf]
      %v1317 = vunpack.c.l.b16 %v909
      %v1318 = vpack.c.b16 %v1317, %v1317
      %v1320 = vshrl.u32 %v1318, 16
      %v1322 = vshll.u32 %v1318, 16
      %v1324 = vrot.slane %v1322, 1
      %v1325 = vor.u32 %v1320, %v1324
      %v1330 = vunpack.c.l.b16 %v1312
      %v1331 = vunpack.c.l.b16 %v1313
      %v1332 = vunpack.c.l.b16 %v1314
      %v1333 = vunpack.c.l.b16 %v1315
      %v1334 = vpack.c.b16 %v1331, %v1330
      %v1335 = vpack.c.b16 %v1333, %v1332
      %v1339 = vsel %vm810, %v1325, 0
      %1341 = vmatprep.subr.bf16.mxu0 0
      %1342 = vmatpush1.bf16.msra.mxu0 0
      %1343 = vmatprep.subr.bf16.mxu0 0
      %1344 = vmatpush1.bf16.msra.mxu0 0
      %1345 = vmatprep.subr.bf16.mxu0 0
      %1346 = vmatpush1.bf16.msra.mxu0 0
      %1347 = vmatprep.subr.bf16.mxu0 0
      %1348 = vmatpush1.bf16.msra.mxu0 0
      %1349 = vmatprep.subr.bf16.mxu0 0
      %1350 = vmatpush1.bf16.msra.mxu0 0
      %1351 = vmatprep.subr.bf16.mxu0 0
      %1352 = vmatpush1.bf16.msra.mxu0 0
      %1353 = vmatprep.subr.bf16.mxu0 0
      %1354 = vmatpush1.bf16.msra.mxu0 %v1335
      %1355 = vmatprep.subr.bf16.mxu0 0
      %1356 = vmatpush1.bf16.msra.mxu0 %v1334
      %1357 = vmatprep.subr.bf16.mxu0 0
      %1358 = vmatpush2.bf16.msra.mxu0 0
      %1359 = vmatprep.subr.bf16.mxu0 0
      %1360 = vmatpush2.bf16.msra.mxu0 0
      %1361 = vmatprep.subr.bf16.mxu0 0
      %1362 = vmatpush2.bf16.msra.mxu0 0
      %1363 = vmatprep.subr.bf16.mxu0 0
      %1364 = vmatpush2.bf16.msra.mxu0 0
      %1365 = vmatprep.subr.bf16.mxu0 0
      %1366 = vmatpush2.bf16.msra.mxu0 0
      %1367 = vmatprep.subr.bf16.mxu0 0
      %1368 = vmatpush2.bf16.msra.mxu0 0
      %1369 = vmatprep.subr.bf16.mxu0 0
      %1370 = vmatpush2.bf16.msra.mxu0 0
      %1371 = vmatprep.subr.bf16.mxu0 0
      %1372 = vmatpush2.bf16.msra.mxu0 0
      %1373 = vmatprep.mubr.bf16.mxu0 0
      %1374 = vmatmul.mubr.bf16.gmra.mxu0 %v1339
      %v1375 = vpop.f32.mrf.mxu0
      %v1376 = vadd.f32 0.0, %v1375
      %v1377 = vpop.f32.mrf.mxu0
      %v1378 = vpop.f32.mrf.mxu0
      %v1379 = vpop.f32.mrf.mxu0
      %1380 = vdwg.mxu0
      %v1381 = vadd.f32 %v1310, %v1376
      %v1382 = vadd.f32 %v1381, %v785
      %v1383 = vmax.f32 %v1382, 0.0
      %v1384 = vpack.c.bf16 %v1383, %v1383
      %vm1385 = vcmask 254976
      %vm1386 = vsmask.f32 1280
      %vm1387 = vmand %vm1385, %vm1386
      %v1388 = vld [vmem:[#allocation3] sm:$0x3]
      %v1389 = vsel %vm1387, %v1384, %v1388
      %1390 = vst [vmem:[#allocation3] sm:$0x3] %v1389
      %v1391 = vld [vmem:[%s542] sm:$0x3]
      %v1392 = vld [vmem:[%s3] sm:$0xf]
      %v1393 = vld [vmem:[%s3 + $0x4] sm:$0xf]
      %v1394 = vld [vmem:[%s3 + $0x8] sm:$0xf]
      %v1395 = vld [vmem:[%s3 + $0xc] sm:$0xf]
      %v1396 = vld [vmem:[%s601] sm:$0x3]
      %v1397 = vld [vmem:[%s793] sm:$0xf]
      %v1398 = vld [vmem:[%s793 + $0x4] sm:$0xf]
      %v1399 = vld [vmem:[%s793 + $0x8] sm:$0xf]
      %v1400 = vld [vmem:[%s793 + $0xc] sm:$0xf]
      %v1405 = vunpack.c.l.b16 %v1397
      %v1406 = vunpack.c.l.b16 %v1398
      %v1407 = vunpack.c.l.b16 %v1399
      %v1408 = vunpack.c.l.b16 %v1400
      %v1409 = vpack.c.b16 %v1406, %v1405
      %v1410 = vpack.c.b16 %v1408, %v1407
      %v1414 = vsel %vm810, %v1396, 0
      %1416 = vmatprep.subr.bf16.mxu0 0
      %1417 = vmatpush1.bf16.msra.mxu0 0
      %1418 = vmatprep.subr.bf16.mxu0 0
      %1419 = vmatpush1.bf16.msra.mxu0 0
      %1420 = vmatprep.subr.bf16.mxu0 0
      %1421 = vmatpush1.bf16.msra.mxu0 0
      %1422 = vmatprep.subr.bf16.mxu0 0
      %1423 = vmatpush1.bf16.msra.mxu0 0
      %1424 = vmatprep.subr.bf16.mxu0 0
      %1425 = vmatpush1.bf16.msra.mxu0 0
      %1426 = vmatprep.subr.bf16.mxu0 0
      %1427 = vmatpush1.bf16.msra.mxu0 0
      %1428 = vmatprep.subr.bf16.mxu0 0
      %1429 = vmatpush1.bf16.msra.mxu0 %v1410
      %1430 = vmatprep.subr.bf16.mxu0 0
      %1431 = vmatpush1.bf16.msra.mxu0 %v1409
      %1432 = vmatprep.subr.bf16.mxu0 0
      %1433 = vmatpush2.bf16.msra.mxu0 0
      %1434 = vmatprep.subr.bf16.mxu0 0
      %1435 = vmatpush2.bf16.msra.mxu0 0
      %1436 = vmatprep.subr.bf16.mxu0 0
      %1437 = vmatpush2.bf16.msra.mxu0 0
      %1438 = vmatprep.subr.bf16.mxu0 0
      %1439 = vmatpush2.bf16.msra.mxu0 0
      %1440 = vmatprep.subr.bf16.mxu0 0
      %1441 = vmatpush2.bf16.msra.mxu0 0
      %1442 = vmatprep.subr.bf16.mxu0 0
      %1443 = vmatpush2.bf16.msra.mxu0 0
      %1444 = vmatprep.subr.bf16.mxu0 0
      %1445 = vmatpush2.bf16.msra.mxu0 0
      %1446 = vmatprep.subr.bf16.mxu0 0
      %1447 = vmatpush2.bf16.msra.mxu0 0
      %1448 = vmatprep.mubr.bf16.mxu0 0
      %1449 = vmatmul.mubr.bf16.gmra.mxu0 %v1414
      %v1450 = vpop.f32.mrf.mxu0
      %v1451 = vadd.f32 0.0, %v1450
      %v1452 = vpop.f32.mrf.mxu0
      %v1453 = vpop.f32.mrf.mxu0
      %v1454 = vpop.f32.mrf.mxu0
      %1455 = vdwg.mxu0
      %v1460 = vunpack.c.l.b16 %v1392
      %v1461 = vunpack.c.l.b16 %v1393
      %v1462 = vunpack.c.l.b16 %v1394
      %v1463 = vunpack.c.l.b16 %v1395
      %v1464 = vpack.c.b16 %v1461, %v1460
      %v1465 = vpack.c.b16 %v1463, %v1462
      %v1469 = vsel %vm810, %v1391, 0
      %1471 = vmatprep.subr.bf16.mxu0 0
      %1472 = vmatpush1.bf16.msra.mxu0 0
      %1473 = vmatprep.subr.bf16.mxu0 0
      %1474 = vmatpush1.bf16.msra.mxu0 0
      %1475 = vmatprep.subr.bf16.mxu0 0
      %1476 = vmatpush1.bf16.msra.mxu0 0
      %1477 = vmatprep.subr.bf16.mxu0 0
      %1478 = vmatpush1.bf16.msra.mxu0 0
      %1479 = vmatprep.subr.bf16.mxu0 0
      %1480 = vmatpush1.bf16.msra.mxu0 0
      %1481 = vmatprep.subr.bf16.mxu0 0
      %1482 = vmatpush1.bf16.msra.mxu0 0
      %1483 = vmatprep.subr.bf16.mxu0 0
      %1484 = vmatpush1.bf16.msra.mxu0 %v1465
      %1485 = vmatprep.subr.bf16.mxu0 0
      %1486 = vmatpush1.bf16.msra.mxu0 %v1464
      %1487 = vmatprep.subr.bf16.mxu0 0
      %1488 = vmatpush2.bf16.msra.mxu0 0
      %1489 = vmatprep.subr.bf16.mxu0 0
      %1490 = vmatpush2.bf16.msra.mxu0 0
      %1491 = vmatprep.subr.bf16.mxu0 0
      %1492 = vmatpush2.bf16.msra.mxu0 0
      %1493 = vmatprep.subr.bf16.mxu0 0
      %1494 = vmatpush2.bf16.msra.mxu0 0
      %1495 = vmatprep.subr.bf16.mxu0 0
      %1496 = vmatpush2.bf16.msra.mxu0 0
      %1497 = vmatprep.subr.bf16.mxu0 0
      %1498 = vmatpush2.bf16.msra.mxu0 0
      %1499 = vmatprep.subr.bf16.mxu0 0
      %1500 = vmatpush2.bf16.msra.mxu0 0
      %1501 = vmatprep.subr.bf16.mxu0 0
      %1502 = vmatpush2.bf16.msra.mxu0 0
      %1503 = vmatprep.mubr.bf16.mxu0 0
      %1504 = vmatmul.mubr.bf16.gmra.mxu0 %v1469
      %v1505 = vpop.f32.mrf.mxu0
      %v1506 = vadd.f32 %v1451, %v1505
      %v1507 = vpop.f32.mrf.mxu0
      %v1508 = vpop.f32.mrf.mxu0
      %v1509 = vpop.f32.mrf.mxu0
      %1510 = vdwg.mxu0
      %v1511 = vld [vmem:[%s660] sm:$0x3]
      %v1512 = vld [vmem:[%s910] sm:$0xf]
      %v1513 = vld [vmem:[%s910 + $0x4] sm:$0xf]
      %v1514 = vld [vmem:[%s910 + $0x8] sm:$0xf]
      %v1515 = vld [vmem:[%s910 + $0xc] sm:$0xf]
      %v1520 = vunpack.c.l.b16 %v1512
      %v1521 = vunpack.c.l.b16 %v1513
      %v1522 = vunpack.c.l.b16 %v1514
      %v1523 = vunpack.c.l.b16 %v1515
      %v1524 = vpack.c.b16 %v1521, %v1520
      %v1525 = vpack.c.b16 %v1523, %v1522
      %v1529 = vsel %vm810, %v1511, 0
      %1531 = vmatprep.subr.bf16.mxu0 0
      %1532 = vmatpush1.bf16.msra.mxu0 0
      %1533 = vmatprep.subr.bf16.mxu0 0
      %1534 = vmatpush1.bf16.msra.mxu0 0
      %1535 = vmatprep.subr.bf16.mxu0 0
      %1536 = vmatpush1.bf16.msra.mxu0 0
      %1537 = vmatprep.subr.bf16.mxu0 0
      %1538 = vmatpush1.bf16.msra.mxu0 0
      %1539 = vmatprep.subr.bf16.mxu0 0
      %1540 = vmatpush1.bf16.msra.mxu0 0
      %1541 = vmatprep.subr.bf16.mxu0 0
      %1542 = vmatpush1.bf16.msra.mxu0 0
      %1543 = vmatprep.subr.bf16.mxu0 0
      %1544 = vmatpush1.bf16.msra.mxu0 %v1525
      %1545 = vmatprep.subr.bf16.mxu0 0
      %1546 = vmatpush1.bf16.msra.mxu0 %v1524
      %1547 = vmatprep.subr.bf16.mxu0 0
      %1548 = vmatpush2.bf16.msra.mxu0 0
      %1549 = vmatprep.subr.bf16.mxu0 0
      %1550 = vmatpush2.bf16.msra.mxu0 0
      %1551 = vmatprep.subr.bf16.mxu0 0
      %1552 = vmatpush2.bf16.msra.mxu0 0
      %1553 = vmatprep.subr.bf16.mxu0 0
      %1554 = vmatpush2.bf16.msra.mxu0 0
      %1555 = vmatprep.subr.bf16.mxu0 0
      %1556 = vmatpush2.bf16.msra.mxu0 0
      %1557 = vmatprep.subr.bf16.mxu0 0
      %1558 = vmatpush2.bf16.msra.mxu0 0
      %1559 = vmatprep.subr.bf16.mxu0 0
      %1560 = vmatpush2.bf16.msra.mxu0 0
      %1561 = vmatprep.subr.bf16.mxu0 0
      %1562 = vmatpush2.bf16.msra.mxu0 0
      %1563 = vmatprep.mubr.bf16.mxu0 0
      %1564 = vmatmul.mubr.bf16.gmra.mxu0 %v1529
      %v1565 = vpop.f32.mrf.mxu0
      %v1566 = vadd.f32 0.0, %v1565
      %v1567 = vpop.f32.mrf.mxu0
      %v1568 = vpop.f32.mrf.mxu0
      %v1569 = vpop.f32.mrf.mxu0
      %1570 = vdwg.mxu0
      %v1571 = vadd.f32 %v1506, %v1566
      %v1572 = vld [vmem:[%s542] sm:$0xc]
      %v1573 = vld [vmem:[%s972] sm:$0xf]
      %v1574 = vld [vmem:[%s972 + $0x4] sm:$0xf]
      %v1575 = vld [vmem:[%s972 + $0x8] sm:$0xf]
      %v1576 = vld [vmem:[%s972 + $0xc] sm:$0xf]
      %v1578 = vunpack.c.l.b16 %v1572
      %v1579 = vpack.c.b16 %v1578, %v1578
      %v1580 = vrot.slane %v1579, 2
      %v1585 = vunpack.c.l.b16 %v1573
      %v1586 = vunpack.c.l.b16 %v1574
      %v1587 = vunpack.c.l.b16 %v1575
      %v1588 = vunpack.c.l.b16 %v1576
      %v1589 = vpack.c.b16 %v1586, %v1585
      %v1590 = vpack.c.b16 %v1588, %v1587
      %v1594 = vsel %vm810, %v1580, 0
      %1596 = vmatprep.subr.bf16.mxu0 0
      %1597 = vmatpush1.bf16.msra.mxu0 0
      %1598 = vmatprep.subr.bf16.mxu0 0
      %1599 = vmatpush1.bf16.msra.mxu0 0
      %1600 = vmatprep.subr.bf16.mxu0 0
      %1601 = vmatpush1.bf16.msra.mxu0 0
      %1602 = vmatprep.subr.bf16.mxu0 0
      %1603 = vmatpush1.bf16.msra.mxu0 0
      %1604 = vmatprep.subr.bf16.mxu0 0
      %1605 = vmatpush1.bf16.msra.mxu0 0
      %1606 = vmatprep.subr.bf16.mxu0 0
      %1607 = vmatpush1.bf16.msra.mxu0 0
      %1608 = vmatprep.subr.bf16.mxu0 0
      %1609 = vmatpush1.bf16.msra.mxu0 %v1590
      %1610 = vmatprep.subr.bf16.mxu0 0
      %1611 = vmatpush1.bf16.msra.mxu0 %v1589
      %1612 = vmatprep.subr.bf16.mxu0 0
      %1613 = vmatpush2.bf16.msra.mxu0 0
      %1614 = vmatprep.subr.bf16.mxu0 0
      %1615 = vmatpush2.bf16.msra.mxu0 0
      %1616 = vmatprep.subr.bf16.mxu0 0
      %1617 = vmatpush2.bf16.msra.mxu0 0
      %1618 = vmatprep.subr.bf16.mxu0 0
      %1619 = vmatpush2.bf16.msra.mxu0 0
      %1620 = vmatprep.subr.bf16.mxu0 0
      %1621 = vmatpush2.bf16.msra.mxu0 0
      %1622 = vmatprep.subr.bf16.mxu0 0
      %1623 = vmatpush2.bf16.msra.mxu0 0
      %1624 = vmatprep.subr.bf16.mxu0 0
      %1625 = vmatpush2.bf16.msra.mxu0 0
      %1626 = vmatprep.subr.bf16.mxu0 0
      %1627 = vmatpush2.bf16.msra.mxu0 0
      %1628 = vmatprep.mubr.bf16.mxu0 0
      %1629 = vmatmul.mubr.bf16.gmra.mxu0 %v1594
      %v1630 = vpop.f32.mrf.mxu0
      %v1631 = vadd.f32 0.0, %v1630
      %v1632 = vpop.f32.mrf.mxu0
      %v1633 = vpop.f32.mrf.mxu0
      %v1634 = vpop.f32.mrf.mxu0
      %1635 = vdwg.mxu0
      %v1636 = vadd.f32 %v1571, %v1631
      %v1637 = vld [vmem:[%s601] sm:$0xc]
      %v1638 = vld [vmem:[%s1038] sm:$0xf]
      %v1639 = vld [vmem:[%s1038 + $0x4] sm:$0xf]
      %v1640 = vld [vmem:[%s1038 + $0x8] sm:$0xf]
      %v1641 = vld [vmem:[%s1038 + $0xc] sm:$0xf]
      %v1643 = vunpack.c.l.b16 %v1637
      %v1644 = vpack.c.b16 %v1643, %v1643
      %v1645 = vrot.slane %v1644, 2
      %v1650 = vunpack.c.l.b16 %v1638
      %v1651 = vunpack.c.l.b16 %v1639
      %v1652 = vunpack.c.l.b16 %v1640
      %v1653 = vunpack.c.l.b16 %v1641
      %v1654 = vpack.c.b16 %v1651, %v1650
      %v1655 = vpack.c.b16 %v1653, %v1652
      %v1659 = vsel %vm810, %v1645, 0
      %1661 = vmatprep.subr.bf16.mxu0 0
      %1662 = vmatpush1.bf16.msra.mxu0 0
      %1663 = vmatprep.subr.bf16.mxu0 0
      %1664 = vmatpush1.bf16.msra.mxu0 0
      %1665 = vmatprep.subr.bf16.mxu0 0
      %1666 = vmatpush1.bf16.msra.mxu0 0
      %1667 = vmatprep.subr.bf16.mxu0 0
      %1668 = vmatpush1.bf16.msra.mxu0 0
      %1669 = vmatprep.subr.bf16.mxu0 0
      %1670 = vmatpush1.bf16.msra.mxu0 0
      %1671 = vmatprep.subr.bf16.mxu0 0
      %1672 = vmatpush1.bf16.msra.mxu0 0
      %1673 = vmatprep.subr.bf16.mxu0 0
      %1674 = vmatpush1.bf16.msra.mxu0 %v1655
      %1675 = vmatprep.subr.bf16.mxu0 0
      %1676 = vmatpush1.bf16.msra.mxu0 %v1654
      %1677 = vmatprep.subr.bf16.mxu0 0
      %1678 = vmatpush2.bf16.msra.mxu0 0
      %1679 = vmatprep.subr.bf16.mxu0 0
      %1680 = vmatpush2.bf16.msra.mxu0 0
      %1681 = vmatprep.subr.bf16.mxu0 0
      %1682 = vmatpush2.bf16.msra.mxu0 0
      %1683 = vmatprep.subr.bf16.mxu0 0
      %1684 = vmatpush2.bf16.msra.mxu0 0
      %1685 = vmatprep.subr.bf16.mxu0 0
      %1686 = vmatpush2.bf16.msra.mxu0 0
      %1687 = vmatprep.subr.bf16.mxu0 0
      %1688 = vmatpush2.bf16.msra.mxu0 0
      %1689 = vmatprep.subr.bf16.mxu0 0
      %1690 = vmatpush2.bf16.msra.mxu0 0
      %1691 = vmatprep.subr.bf16.mxu0 0
      %1692 = vmatpush2.bf16.msra.mxu0 0
      %1693 = vmatprep.mubr.bf16.mxu0 0
      %1694 = vmatmul.mubr.bf16.gmra.mxu0 %v1659
      %v1695 = vpop.f32.mrf.mxu0
      %v1696 = vadd.f32 0.0, %v1695
      %v1697 = vpop.f32.mrf.mxu0
      %v1698 = vpop.f32.mrf.mxu0
      %v1699 = vpop.f32.mrf.mxu0
      %1700 = vdwg.mxu0
      %v1701 = vadd.f32 %v1636, %v1696
      %v1702 = vld [vmem:[%s660] sm:$0xc]
      %v1703 = vld [vmem:[%s1104] sm:$0xf]
      %v1704 = vld [vmem:[%s1104 + $0x4] sm:$0xf]
      %v1705 = vld [vmem:[%s1104 + $0x8] sm:$0xf]
      %v1706 = vld [vmem:[%s1104 + $0xc] sm:$0xf]
      %v1708 = vunpack.c.l.b16 %v1702
      %v1709 = vpack.c.b16 %v1708, %v1708
      %v1710 = vrot.slane %v1709, 2
      %v1715 = vunpack.c.l.b16 %v1703
      %v1716 = vunpack.c.l.b16 %v1704
      %v1717 = vunpack.c.l.b16 %v1705
      %v1718 = vunpack.c.l.b16 %v1706
      %v1719 = vpack.c.b16 %v1716, %v1715
      %v1720 = vpack.c.b16 %v1718, %v1717
      %v1724 = vsel %vm810, %v1710, 0
      %1726 = vmatprep.subr.bf16.mxu0 0
      %1727 = vmatpush1.bf16.msra.mxu0 0
      %1728 = vmatprep.subr.bf16.mxu0 0
      %1729 = vmatpush1.bf16.msra.mxu0 0
      %1730 = vmatprep.subr.bf16.mxu0 0
      %1731 = vmatpush1.bf16.msra.mxu0 0
      %1732 = vmatprep.subr.bf16.mxu0 0
      %1733 = vmatpush1.bf16.msra.mxu0 0
      %1734 = vmatprep.subr.bf16.mxu0 0
      %1735 = vmatpush1.bf16.msra.mxu0 0
      %1736 = vmatprep.subr.bf16.mxu0 0
      %1737 = vmatpush1.bf16.msra.mxu0 0
      %1738 = vmatprep.subr.bf16.mxu0 0
      %1739 = vmatpush1.bf16.msra.mxu0 %v1720
      %1740 = vmatprep.subr.bf16.mxu0 0
      %1741 = vmatpush1.bf16.msra.mxu0 %v1719
      %1742 = vmatprep.subr.bf16.mxu0 0
      %1743 = vmatpush2.bf16.msra.mxu0 0
      %1744 = vmatprep.subr.bf16.mxu0 0
      %1745 = vmatpush2.bf16.msra.mxu0 0
      %1746 = vmatprep.subr.bf16.mxu0 0
      %1747 = vmatpush2.bf16.msra.mxu0 0
      %1748 = vmatprep.subr.bf16.mxu0 0
      %1749 = vmatpush2.bf16.msra.mxu0 0
      %1750 = vmatprep.subr.bf16.mxu0 0
      %1751 = vmatpush2.bf16.msra.mxu0 0
      %1752 = vmatprep.subr.bf16.mxu0 0
      %1753 = vmatpush2.bf16.msra.mxu0 0
      %1754 = vmatprep.subr.bf16.mxu0 0
      %1755 = vmatpush2.bf16.msra.mxu0 0
      %1756 = vmatprep.subr.bf16.mxu0 0
      %1757 = vmatpush2.bf16.msra.mxu0 0
      %1758 = vmatprep.mubr.bf16.mxu0 0
      %1759 = vmatmul.mubr.bf16.gmra.mxu0 %v1724
      %v1760 = vpop.f32.mrf.mxu0
      %v1761 = vadd.f32 0.0, %v1760
      %v1762 = vpop.f32.mrf.mxu0
      %v1763 = vpop.f32.mrf.mxu0
      %v1764 = vpop.f32.mrf.mxu0
      %1765 = vdwg.mxu0
      %v1766 = vadd.f32 %v1701, %v1761
      %v1767 = vld [vmem:[%s1169] sm:$0xf]
      %v1768 = vld [vmem:[%s1169 + $0x4] sm:$0xf]
      %v1769 = vld [vmem:[%s1169 + $0x8] sm:$0xf]
      %v1770 = vld [vmem:[%s1169 + $0xc] sm:$0xf]
      %v1772 = vunpack.c.l.b16 %v1391
      %v1773 = vpack.c.b16 %v1772, %v1772
      %v1775 = vshrl.u32 %v1773, 16
      %v1777 = vshll.u32 %v1773, 16
      %v1779 = vrot.slane %v1777, 1
      %v1780 = vor.u32 %v1775, %v1779
      %v1785 = vunpack.c.l.b16 %v1767
      %v1786 = vunpack.c.l.b16 %v1768
      %v1787 = vunpack.c.l.b16 %v1769
      %v1788 = vunpack.c.l.b16 %v1770
      %v1789 = vpack.c.b16 %v1786, %v1785
      %v1790 = vpack.c.b16 %v1788, %v1787
      %v1794 = vsel %vm810, %v1780, 0
      %1796 = vmatprep.subr.bf16.mxu0 0
      %1797 = vmatpush1.bf16.msra.mxu0 0
      %1798 = vmatprep.subr.bf16.mxu0 0
      %1799 = vmatpush1.bf16.msra.mxu0 0
      %1800 = vmatprep.subr.bf16.mxu0 0
      %1801 = vmatpush1.bf16.msra.mxu0 0
      %1802 = vmatprep.subr.bf16.mxu0 0
      %1803 = vmatpush1.bf16.msra.mxu0 0
      %1804 = vmatprep.subr.bf16.mxu0 0
      %1805 = vmatpush1.bf16.msra.mxu0 0
      %1806 = vmatprep.subr.bf16.mxu0 0
      %1807 = vmatpush1.bf16.msra.mxu0 0
      %1808 = vmatprep.subr.bf16.mxu0 0
      %1809 = vmatpush1.bf16.msra.mxu0 %v1790
      %1810 = vmatprep.subr.bf16.mxu0 0
      %1811 = vmatpush1.bf16.msra.mxu0 %v1789
      %1812 = vmatprep.subr.bf16.mxu0 0
      %1813 = vmatpush2.bf16.msra.mxu0 0
      %1814 = vmatprep.subr.bf16.mxu0 0
      %1815 = vmatpush2.bf16.msra.mxu0 0
      %1816 = vmatprep.subr.bf16.mxu0 0
      %1817 = vmatpush2.bf16.msra.mxu0 0
      %1818 = vmatprep.subr.bf16.mxu0 0
      %1819 = vmatpush2.bf16.msra.mxu0 0
      %1820 = vmatprep.subr.bf16.mxu0 0
      %1821 = vmatpush2.bf16.msra.mxu0 0
      %1822 = vmatprep.subr.bf16.mxu0 0
      %1823 = vmatpush2.bf16.msra.mxu0 0
      %1824 = vmatprep.subr.bf16.mxu0 0
      %1825 = vmatpush2.bf16.msra.mxu0 0
      %1826 = vmatprep.subr.bf16.mxu0 0
      %1827 = vmatpush2.bf16.msra.mxu0 0
      %1828 = vmatprep.mubr.bf16.mxu0 0
      %1829 = vmatmul.mubr.bf16.gmra.mxu0 %v1794
      %v1830 = vpop.f32.mrf.mxu0
      %v1831 = vadd.f32 0.0, %v1830
      %v1832 = vpop.f32.mrf.mxu0
      %v1833 = vpop.f32.mrf.mxu0
      %v1834 = vpop.f32.mrf.mxu0
      %1835 = vdwg.mxu0
      %v1836 = vadd.f32 %v1766, %v1831
      %v1837 = vld [vmem:[%s1240] sm:$0xf]
      %v1838 = vld [vmem:[%s1240 + $0x4] sm:$0xf]
      %v1839 = vld [vmem:[%s1240 + $0x8] sm:$0xf]
      %v1840 = vld [vmem:[%s1240 + $0xc] sm:$0xf]
      %v1842 = vunpack.c.l.b16 %v1396
      %v1843 = vpack.c.b16 %v1842, %v1842
      %v1845 = vshrl.u32 %v1843, 16
      %v1847 = vshll.u32 %v1843, 16
      %v1849 = vrot.slane %v1847, 1
      %v1850 = vor.u32 %v1845, %v1849
      %v1855 = vunpack.c.l.b16 %v1837
      %v1856 = vunpack.c.l.b16 %v1838
      %v1857 = vunpack.c.l.b16 %v1839
      %v1858 = vunpack.c.l.b16 %v1840
      %v1859 = vpack.c.b16 %v1856, %v1855
      %v1860 = vpack.c.b16 %v1858, %v1857
      %v1864 = vsel %vm810, %v1850, 0
      %1866 = vmatprep.subr.bf16.mxu0 0
      %1867 = vmatpush1.bf16.msra.mxu0 0
      %1868 = vmatprep.subr.bf16.mxu0 0
      %1869 = vmatpush1.bf16.msra.mxu0 0
      %1870 = vmatprep.subr.bf16.mxu0 0
      %1871 = vmatpush1.bf16.msra.mxu0 0
      %1872 = vmatprep.subr.bf16.mxu0 0
      %1873 = vmatpush1.bf16.msra.mxu0 0
      %1874 = vmatprep.subr.bf16.mxu0 0
      %1875 = vmatpush1.bf16.msra.mxu0 0
      %1876 = vmatprep.subr.bf16.mxu0 0
      %1877 = vmatpush1.bf16.msra.mxu0 0
      %1878 = vmatprep.subr.bf16.mxu0 0
      %1879 = vmatpush1.bf16.msra.mxu0 %v1860
      %1880 = vmatprep.subr.bf16.mxu0 0
      %1881 = vmatpush1.bf16.msra.mxu0 %v1859
      %1882 = vmatprep.subr.bf16.mxu0 0
      %1883 = vmatpush2.bf16.msra.mxu0 0
      %1884 = vmatprep.subr.bf16.mxu0 0
      %1885 = vmatpush2.bf16.msra.mxu0 0
      %1886 = vmatprep.subr.bf16.mxu0 0
      %1887 = vmatpush2.bf16.msra.mxu0 0
      %1888 = vmatprep.subr.bf16.mxu0 0
      %1889 = vmatpush2.bf16.msra.mxu0 0
      %1890 = vmatprep.subr.bf16.mxu0 0
      %1891 = vmatpush2.bf16.msra.mxu0 0
      %1892 = vmatprep.subr.bf16.mxu0 0
      %1893 = vmatpush2.bf16.msra.mxu0 0
      %1894 = vmatprep.subr.bf16.mxu0 0
      %1895 = vmatpush2.bf16.msra.mxu0 0
      %1896 = vmatprep.subr.bf16.mxu0 0
      %1897 = vmatpush2.bf16.msra.mxu0 0
      %1898 = vmatprep.mubr.bf16.mxu0 0
      %1899 = vmatmul.mubr.bf16.gmra.mxu0 %v1864
      %v1900 = vpop.f32.mrf.mxu0
      %v1901 = vadd.f32 0.0, %v1900
      %v1902 = vpop.f32.mrf.mxu0
      %v1903 = vpop.f32.mrf.mxu0
      %v1904 = vpop.f32.mrf.mxu0
      %1905 = vdwg.mxu0
      %v1906 = vadd.f32 %v1836, %v1901
      %v1907 = vld [vmem:[%s1311] sm:$0xf]
      %v1908 = vld [vmem:[%s1311 + $0x4] sm:$0xf]
      %v1909 = vld [vmem:[%s1311 + $0x8] sm:$0xf]
      %v1910 = vld [vmem:[%s1311 + $0xc] sm:$0xf]
      %v1912 = vunpack.c.l.b16 %v1511
      %v1913 = vpack.c.b16 %v1912, %v1912
      %v1915 = vshrl.u32 %v1913, 16
      %v1917 = vshll.u32 %v1913, 16
      %v1919 = vrot.slane %v1917, 1
      %v1920 = vor.u32 %v1915, %v1919
      %v1925 = vunpack.c.l.b16 %v1907
      %v1926 = vunpack.c.l.b16 %v1908
      %v1927 = vunpack.c.l.b16 %v1909
      %v1928 = vunpack.c.l.b16 %v1910
      %v1929 = vpack.c.b16 %v1926, %v1925
      %v1930 = vpack.c.b16 %v1928, %v1927
      %v1934 = vsel %vm810, %v1920, 0
      %1936 = vmatprep.subr.bf16.mxu0 0
      %1937 = vmatpush1.bf16.msra.mxu0 0
      %1938 = vmatprep.subr.bf16.mxu0 0
      %1939 = vmatpush1.bf16.msra.mxu0 0
      %1940 = vmatprep.subr.bf16.mxu0 0
      %1941 = vmatpush1.bf16.msra.mxu0 0
      %1942 = vmatprep.subr.bf16.mxu0 0
      %1943 = vmatpush1.bf16.msra.mxu0 0
      %1944 = vmatprep.subr.bf16.mxu0 0
      %1945 = vmatpush1.bf16.msra.mxu0 0
      %1946 = vmatprep.subr.bf16.mxu0 0
      %1947 = vmatpush1.bf16.msra.mxu0 0
      %1948 = vmatprep.subr.bf16.mxu0 0
      %1949 = vmatpush1.bf16.msra.mxu0 %v1930
      %1950 = vmatprep.subr.bf16.mxu0 0
      %1951 = vmatpush1.bf16.msra.mxu0 %v1929
      %1952 = vmatprep.subr.bf16.mxu0 0
      %1953 = vmatpush2.bf16.msra.mxu0 0
      %1954 = vmatprep.subr.bf16.mxu0 0
      %1955 = vmatpush2.bf16.msra.mxu0 0
      %1956 = vmatprep.subr.bf16.mxu0 0
      %1957 = vmatpush2.bf16.msra.mxu0 0
      %1958 = vmatprep.subr.bf16.mxu0 0
      %1959 = vmatpush2.bf16.msra.mxu0 0
      %1960 = vmatprep.subr.bf16.mxu0 0
      %1961 = vmatpush2.bf16.msra.mxu0 0
      %1962 = vmatprep.subr.bf16.mxu0 0
      %1963 = vmatpush2.bf16.msra.mxu0 0
      %1964 = vmatprep.subr.bf16.mxu0 0
      %1965 = vmatpush2.bf16.msra.mxu0 0
      %1966 = vmatprep.subr.bf16.mxu0 0
      %1967 = vmatpush2.bf16.msra.mxu0 0
      %1968 = vmatprep.mubr.bf16.mxu0 0
      %1969 = vmatmul.mubr.bf16.gmra.mxu0 %v1934
      %v1970 = vpop.f32.mrf.mxu0
      %v1971 = vadd.f32 0.0, %v1970
      %v1972 = vpop.f32.mrf.mxu0
      %v1973 = vpop.f32.mrf.mxu0
      %v1974 = vpop.f32.mrf.mxu0
      %1975 = vdwg.mxu0
      %v1976 = vadd.f32 %v1906, %v1971
      %v1977 = vadd.f32 %v1976, %v785
      %v1978 = vmax.f32 %v1977, 0.0
      %v1979 = vpack.c.bf16 %v1978, %v1978
      %v1982 = vunpack.c.l.s4 1983009808
      %v1983 = vunpack.c.0.s8 %v1982
      %v1984 = vlaneseq
      %v1985 = vshrl.u32 %v1984, 7
      %v1986 = vsub.s32 %v1983, %v1985
      %v1987 = vrot.slane %v1979, %v1986
      %1988 = vrot.lane.b32.xlu0 %v1987, 32
      %v1989 = vpop.permute.xlu0 %1988
      %vm1991 = vcmask 517376
      %vm1992 = vmand %vm1991, %vm1386
      %v1993 = vld [vmem:[#allocation3] sm:$0x3]
      %v1994 = vsel %vm1992, %v1989, %v1993
      %1995 = vst [vmem:[#allocation3] sm:$0x3] %v1994
      %v1996 = vld [vmem:[%s660] sm:$0x3]
      %v1997 = vld [vmem:[%s3] sm:$0xf]
      %v1998 = vld [vmem:[%s3 + $0x4] sm:$0xf]
      %v1999 = vld [vmem:[%s3 + $0x8] sm:$0xf]
      %v2000 = vld [vmem:[%s3 + $0xc] sm:$0xf]
      %v2001 = vld [vmem:[%s719] sm:$0x3]
      %v2002 = vld [vmem:[%s793] sm:$0xf]
      %v2003 = vld [vmem:[%s793 + $0x4] sm:$0xf]
      %v2004 = vld [vmem:[%s793 + $0x8] sm:$0xf]
      %v2005 = vld [vmem:[%s793 + $0xc] sm:$0xf]
      %v2010 = vunpack.c.l.b16 %v2002
      %v2011 = vunpack.c.l.b16 %v2003
      %v2012 = vunpack.c.l.b16 %v2004
      %v2013 = vunpack.c.l.b16 %v2005
      %v2014 = vpack.c.b16 %v2011, %v2010
      %v2015 = vpack.c.b16 %v2013, %v2012
      %v2019 = vsel %vm810, %v2001, 0
      %2021 = vmatprep.subr.bf16.mxu0 0
      %2022 = vmatpush1.bf16.msra.mxu0 0
      %2023 = vmatprep.subr.bf16.mxu0 0
      %2024 = vmatpush1.bf16.msra.mxu0 0
      %2025 = vmatprep.subr.bf16.mxu0 0
      %2026 = vmatpush1.bf16.msra.mxu0 0
      %2027 = vmatprep.subr.bf16.mxu0 0
      %2028 = vmatpush1.bf16.msra.mxu0 0
      %2029 = vmatprep.subr.bf16.mxu0 0
      %2030 = vmatpush1.bf16.msra.mxu0 0
      %2031 = vmatprep.subr.bf16.mxu0 0
      %2032 = vmatpush1.bf16.msra.mxu0 0
      %2033 = vmatprep.subr.bf16.mxu0 0
      %2034 = vmatpush1.bf16.msra.mxu0 %v2015
      %2035 = vmatprep.subr.bf16.mxu0 0
      %2036 = vmatpush1.bf16.msra.mxu0 %v2014
      %2037 = vmatprep.subr.bf16.mxu0 0
      %2038 = vmatpush2.bf16.msra.mxu0 0
      %2039 = vmatprep.subr.bf16.mxu0 0
      %2040 = vmatpush2.bf16.msra.mxu0 0
      %2041 = vmatprep.subr.bf16.mxu0 0
      %2042 = vmatpush2.bf16.msra.mxu0 0
      %2043 = vmatprep.subr.bf16.mxu0 0
      %2044 = vmatpush2.bf16.msra.mxu0 0
      %2045 = vmatprep.subr.bf16.mxu0 0
      %2046 = vmatpush2.bf16.msra.mxu0 0
      %2047 = vmatprep.subr.bf16.mxu0 0
      %2048 = vmatpush2.bf16.msra.mxu0 0
      %2049 = vmatprep.subr.bf16.mxu0 0
      %2050 = vmatpush2.bf16.msra.mxu0 0
      %2051 = vmatprep.subr.bf16.mxu0 0
      %2052 = vmatpush2.bf16.msra.mxu0 0
      %2053 = vmatprep.mubr.bf16.mxu0 0
      %2054 = vmatmul.mubr.bf16.gmra.mxu0 %v2019
      %v2055 = vpop.f32.mrf.mxu0
      %v2056 = vadd.f32 0.0, %v2055
      %v2057 = vpop.f32.mrf.mxu0
      %v2058 = vpop.f32.mrf.mxu0
      %v2059 = vpop.f32.mrf.mxu0
      %2060 = vdwg.mxu0
      %v2065 = vunpack.c.l.b16 %v1997
      %v2066 = vunpack.c.l.b16 %v1998
      %v2067 = vunpack.c.l.b16 %v1999
      %v2068 = vunpack.c.l.b16 %v2000
      %v2069 = vpack.c.b16 %v2066, %v2065
      %v2070 = vpack.c.b16 %v2068, %v2067
      %v2074 = vsel %vm810, %v1996, 0
      %2076 = vmatprep.subr.bf16.mxu0 0
      %2077 = vmatpush1.bf16.msra.mxu0 0
      %2078 = vmatprep.subr.bf16.mxu0 0
      %2079 = vmatpush1.bf16.msra.mxu0 0
      %2080 = vmatprep.subr.bf16.mxu0 0
      %2081 = vmatpush1.bf16.msra.mxu0 0
      %2082 = vmatprep.subr.bf16.mxu0 0
      %2083 = vmatpush1.bf16.msra.mxu0 0
      %2084 = vmatprep.subr.bf16.mxu0 0
      %2085 = vmatpush1.bf16.msra.mxu0 0
      %2086 = vmatprep.subr.bf16.mxu0 0
      %2087 = vmatpush1.bf16.msra.mxu0 0
      %2088 = vmatprep.subr.bf16.mxu0 0
      %2089 = vmatpush1.bf16.msra.mxu0 %v2070
      %2090 = vmatprep.subr.bf16.mxu0 0
      %2091 = vmatpush1.bf16.msra.mxu0 %v2069
      %2092 = vmatprep.subr.bf16.mxu0 0
      %2093 = vmatpush2.bf16.msra.mxu0 0
      %2094 = vmatprep.subr.bf16.mxu0 0
      %2095 = vmatpush2.bf16.msra.mxu0 0
      %2096 = vmatprep.subr.bf16.mxu0 0
      %2097 = vmatpush2.bf16.msra.mxu0 0
      %2098 = vmatprep.subr.bf16.mxu0 0
      %2099 = vmatpush2.bf16.msra.mxu0 0
      %2100 = vmatprep.subr.bf16.mxu0 0
      %2101 = vmatpush2.bf16.msra.mxu0 0
      %2102 = vmatprep.subr.bf16.mxu0 0
      %2103 = vmatpush2.bf16.msra.mxu0 0
      %2104 = vmatprep.subr.bf16.mxu0 0
      %2105 = vmatpush2.bf16.msra.mxu0 0
      %2106 = vmatprep.subr.bf16.mxu0 0
      %2107 = vmatpush2.bf16.msra.mxu0 0
      %2108 = vmatprep.mubr.bf16.mxu0 0
      %2109 = vmatmul.mubr.bf16.gmra.mxu0 %v2074
      %v2110 = vpop.f32.mrf.mxu0
      %v2111 = vadd.f32 %v2056, %v2110
      %v2112 = vpop.f32.mrf.mxu0
      %v2113 = vpop.f32.mrf.mxu0
      %v2114 = vpop.f32.mrf.mxu0
      %2115 = vdwg.mxu0
      %v2116 = vld [vmem:[%s778] sm:$0x3]
      %v2117 = vld [vmem:[%s910] sm:$0xf]
      %v2118 = vld [vmem:[%s910 + $0x4] sm:$0xf]
      %v2119 = vld [vmem:[%s910 + $0x8] sm:$0xf]
      %v2120 = vld [vmem:[%s910 + $0xc] sm:$0xf]
      %v2125 = vunpack.c.l.b16 %v2117
      %v2126 = vunpack.c.l.b16 %v2118
      %v2127 = vunpack.c.l.b16 %v2119
      %v2128 = vunpack.c.l.b16 %v2120
      %v2129 = vpack.c.b16 %v2126, %v2125
      %v2130 = vpack.c.b16 %v2128, %v2127
      %v2134 = vsel %vm810, %v2116, 0
      %2136 = vmatprep.subr.bf16.mxu0 0
      %2137 = vmatpush1.bf16.msra.mxu0 0
      %2138 = vmatprep.subr.bf16.mxu0 0
      %2139 = vmatpush1.bf16.msra.mxu0 0
      %2140 = vmatprep.subr.bf16.mxu0 0
      %2141 = vmatpush1.bf16.msra.mxu0 0
      %2142 = vmatprep.subr.bf16.mxu0 0
      %2143 = vmatpush1.bf16.msra.mxu0 0
      %2144 = vmatprep.subr.bf16.mxu0 0
      %2145 = vmatpush1.bf16.msra.mxu0 0
      %2146 = vmatprep.subr.bf16.mxu0 0
      %2147 = vmatpush1.bf16.msra.mxu0 0
      %2148 = vmatprep.subr.bf16.mxu0 0
      %2149 = vmatpush1.bf16.msra.mxu0 %v2130
      %2150 = vmatprep.subr.bf16.mxu0 0
      %2151 = vmatpush1.bf16.msra.mxu0 %v2129
      %2152 = vmatprep.subr.bf16.mxu0 0
      %2153 = vmatpush2.bf16.msra.mxu0 0
      %2154 = vmatprep.subr.bf16.mxu0 0
      %2155 = vmatpush2.bf16.msra.mxu0 0
      %2156 = vmatprep.subr.bf16.mxu0 0
      %2157 = vmatpush2.bf16.msra.mxu0 0
      %2158 = vmatprep.subr.bf16.mxu0 0
      %2159 = vmatpush2.bf16.msra.mxu0 0
      %2160 = vmatprep.subr.bf16.mxu0 0
      %2161 = vmatpush2.bf16.msra.mxu0 0
      %2162 = vmatprep.subr.bf16.mxu0 0
      %2163 = vmatpush2.bf16.msra.mxu0 0
      %2164 = vmatprep.subr.bf16.mxu0 0
      %2165 = vmatpush2.bf16.msra.mxu0 0
      %2166 = vmatprep.subr.bf16.mxu0 0
      %2167 = vmatpush2.bf16.msra.mxu0 0
      %2168 = vmatprep.mubr.bf16.mxu0 0
      %2169 = vmatmul.mubr.bf16.gmra.mxu0 %v2134
      %v2170 = vpop.f32.mrf.mxu0
      %v2171 = vadd.f32 0.0, %v2170
      %v2172 = vpop.f32.mrf.mxu0
      %v2173 = vpop.f32.mrf.mxu0
      %v2174 = vpop.f32.mrf.mxu0
      %2175 = vdwg.mxu0
      %v2176 = vadd.f32 %v2111, %v2171
      %v2177 = vld [vmem:[%s660] sm:$0xc]
      %v2178 = vld [vmem:[%s972] sm:$0xf]
      %v2179 = vld [vmem:[%s972 + $0x4] sm:$0xf]
      %v2180 = vld [vmem:[%s972 + $0x8] sm:$0xf]
      %v2181 = vld [vmem:[%s972 + $0xc] sm:$0xf]
      %v2183 = vunpack.c.l.b16 %v2177
      %v2184 = vpack.c.b16 %v2183, %v2183
      %v2185 = vrot.slane %v2184, 2
      %v2190 = vunpack.c.l.b16 %v2178
      %v2191 = vunpack.c.l.b16 %v2179
      %v2192 = vunpack.c.l.b16 %v2180
      %v2193 = vunpack.c.l.b16 %v2181
      %v2194 = vpack.c.b16 %v2191, %v2190
      %v2195 = vpack.c.b16 %v2193, %v2192
      %v2199 = vsel %vm810, %v2185, 0
      %2201 = vmatprep.subr.bf16.mxu0 0
      %2202 = vmatpush1.bf16.msra.mxu0 0
      %2203 = vmatprep.subr.bf16.mxu0 0
      %2204 = vmatpush1.bf16.msra.mxu0 0
      %2205 = vmatprep.subr.bf16.mxu0 0
      %2206 = vmatpush1.bf16.msra.mxu0 0
      %2207 = vmatprep.subr.bf16.mxu0 0
      %2208 = vmatpush1.bf16.msra.mxu0 0
      %2209 = vmatprep.subr.bf16.mxu0 0
      %2210 = vmatpush1.bf16.msra.mxu0 0
      %2211 = vmatprep.subr.bf16.mxu0 0
      %2212 = vmatpush1.bf16.msra.mxu0 0
      %2213 = vmatprep.subr.bf16.mxu0 0
      %2214 = vmatpush1.bf16.msra.mxu0 %v2195
      %2215 = vmatprep.subr.bf16.mxu0 0
      %2216 = vmatpush1.bf16.msra.mxu0 %v2194
      %2217 = vmatprep.subr.bf16.mxu0 0
      %2218 = vmatpush2.bf16.msra.mxu0 0
      %2219 = vmatprep.subr.bf16.mxu0 0
      %2220 = vmatpush2.bf16.msra.mxu0 0
      %2221 = vmatprep.subr.bf16.mxu0 0
      %2222 = vmatpush2.bf16.msra.mxu0 0
      %2223 = vmatprep.subr.bf16.mxu0 0
      %2224 = vmatpush2.bf16.msra.mxu0 0
      %2225 = vmatprep.subr.bf16.mxu0 0
      %2226 = vmatpush2.bf16.msra.mxu0 0
      %2227 = vmatprep.subr.bf16.mxu0 0
      %2228 = vmatpush2.bf16.msra.mxu0 0
      %2229 = vmatprep.subr.bf16.mxu0 0
      %2230 = vmatpush2.bf16.msra.mxu0 0
      %2231 = vmatprep.subr.bf16.mxu0 0
      %2232 = vmatpush2.bf16.msra.mxu0 0
      %2233 = vmatprep.mubr.bf16.mxu0 0
      %2234 = vmatmul.mubr.bf16.gmra.mxu0 %v2199
      %v2235 = vpop.f32.mrf.mxu0
      %v2236 = vadd.f32 0.0, %v2235
      %v2237 = vpop.f32.mrf.mxu0
      %v2238 = vpop.f32.mrf.mxu0
      %v2239 = vpop.f32.mrf.mxu0
      %2240 = vdwg.mxu0
      %v2241 = vadd.f32 %v2176, %v2236
      %v2242 = vld [vmem:[%s719] sm:$0xc]
      %v2243 = vld [vmem:[%s1038] sm:$0xf]
      %v2244 = vld [vmem:[%s1038 + $0x4] sm:$0xf]
      %v2245 = vld [vmem:[%s1038 + $0x8] sm:$0xf]
      %v2246 = vld [vmem:[%s1038 + $0xc] sm:$0xf]
      %v2248 = vunpack.c.l.b16 %v2242
      %v2249 = vpack.c.b16 %v2248, %v2248
      %v2250 = vrot.slane %v2249, 2
      %v2255 = vunpack.c.l.b16 %v2243
      %v2256 = vunpack.c.l.b16 %v2244
      %v2257 = vunpack.c.l.b16 %v2245
      %v2258 = vunpack.c.l.b16 %v2246
      %v2259 = vpack.c.b16 %v2256, %v2255
      %v2260 = vpack.c.b16 %v2258, %v2257
      %v2264 = vsel %vm810, %v2250, 0
      %2266 = vmatprep.subr.bf16.mxu0 0
      %2267 = vmatpush1.bf16.msra.mxu0 0
      %2268 = vmatprep.subr.bf16.mxu0 0
      %2269 = vmatpush1.bf16.msra.mxu0 0
      %2270 = vmatprep.subr.bf16.mxu0 0
      %2271 = vmatpush1.bf16.msra.mxu0 0
      %2272 = vmatprep.subr.bf16.mxu0 0
      %2273 = vmatpush1.bf16.msra.mxu0 0
      %2274 = vmatprep.subr.bf16.mxu0 0
      %2275 = vmatpush1.bf16.msra.mxu0 0
      %2276 = vmatprep.subr.bf16.mxu0 0
      %2277 = vmatpush1.bf16.msra.mxu0 0
      %2278 = vmatprep.subr.bf16.mxu0 0
      %2279 = vmatpush1.bf16.msra.mxu0 %v2260
      %2280 = vmatprep.subr.bf16.mxu0 0
      %2281 = vmatpush1.bf16.msra.mxu0 %v2259
      %2282 = vmatprep.subr.bf16.mxu0 0
      %2283 = vmatpush2.bf16.msra.mxu0 0
      %2284 = vmatprep.subr.bf16.mxu0 0
      %2285 = vmatpush2.bf16.msra.mxu0 0
      %2286 = vmatprep.subr.bf16.mxu0 0
      %2287 = vmatpush2.bf16.msra.mxu0 0
      %2288 = vmatprep.subr.bf16.mxu0 0
      %2289 = vmatpush2.bf16.msra.mxu0 0
      %2290 = vmatprep.subr.bf16.mxu0 0
      %2291 = vmatpush2.bf16.msra.mxu0 0
      %2292 = vmatprep.subr.bf16.mxu0 0
      %2293 = vmatpush2.bf16.msra.mxu0 0
      %2294 = vmatprep.subr.bf16.mxu0 0
      %2295 = vmatpush2.bf16.msra.mxu0 0
      %2296 = vmatprep.subr.bf16.mxu0 0
      %2297 = vmatpush2.bf16.msra.mxu0 0
      %2298 = vmatprep.mubr.bf16.mxu0 0
      %2299 = vmatmul.mubr.bf16.gmra.mxu0 %v2264
      %v2300 = vpop.f32.mrf.mxu0
      %v2301 = vadd.f32 0.0, %v2300
      %v2302 = vpop.f32.mrf.mxu0
      %v2303 = vpop.f32.mrf.mxu0
      %v2304 = vpop.f32.mrf.mxu0
      %2305 = vdwg.mxu0
      %v2306 = vadd.f32 %v2241, %v2301
      %v2307 = vld [vmem:[%s778] sm:$0xc]
      %v2308 = vld [vmem:[%s1104] sm:$0xf]
      %v2309 = vld [vmem:[%s1104 + $0x4] sm:$0xf]
      %v2310 = vld [vmem:[%s1104 + $0x8] sm:$0xf]
      %v2311 = vld [vmem:[%s1104 + $0xc] sm:$0xf]
      %v2313 = vunpack.c.l.b16 %v2307
      %v2314 = vpack.c.b16 %v2313, %v2313
      %v2315 = vrot.slane %v2314, 2
      %v2320 = vunpack.c.l.b16 %v2308
      %v2321 = vunpack.c.l.b16 %v2309
      %v2322 = vunpack.c.l.b16 %v2310
      %v2323 = vunpack.c.l.b16 %v2311
      %v2324 = vpack.c.b16 %v2321, %v2320
      %v2325 = vpack.c.b16 %v2323, %v2322
      %v2329 = vsel %vm810, %v2315, 0
      %2331 = vmatprep.subr.bf16.mxu0 0
      %2332 = vmatpush1.bf16.msra.mxu0 0
      %2333 = vmatprep.subr.bf16.mxu0 0
      %2334 = vmatpush1.bf16.msra.mxu0 0
      %2335 = vmatprep.subr.bf16.mxu0 0
      %2336 = vmatpush1.bf16.msra.mxu0 0
      %2337 = vmatprep.subr.bf16.mxu0 0
      %2338 = vmatpush1.bf16.msra.mxu0 0
      %2339 = vmatprep.subr.bf16.mxu0 0
      %2340 = vmatpush1.bf16.msra.mxu0 0
      %2341 = vmatprep.subr.bf16.mxu0 0
      %2342 = vmatpush1.bf16.msra.mxu0 0
      %2343 = vmatprep.subr.bf16.mxu0 0
      %2344 = vmatpush1.bf16.msra.mxu0 %v2325
      %2345 = vmatprep.subr.bf16.mxu0 0
      %2346 = vmatpush1.bf16.msra.mxu0 %v2324
      %2347 = vmatprep.subr.bf16.mxu0 0
      %2348 = vmatpush2.bf16.msra.mxu0 0
      %2349 = vmatprep.subr.bf16.mxu0 0
      %2350 = vmatpush2.bf16.msra.mxu0 0
      %2351 = vmatprep.subr.bf16.mxu0 0
      %2352 = vmatpush2.bf16.msra.mxu0 0
      %2353 = vmatprep.subr.bf16.mxu0 0
      %2354 = vmatpush2.bf16.msra.mxu0 0
      %2355 = vmatprep.subr.bf16.mxu0 0
      %2356 = vmatpush2.bf16.msra.mxu0 0
      %2357 = vmatprep.subr.bf16.mxu0 0
      %2358 = vmatpush2.bf16.msra.mxu0 0
      %2359 = vmatprep.subr.bf16.mxu0 0
      %2360 = vmatpush2.bf16.msra.mxu0 0
      %2361 = vmatprep.subr.bf16.mxu0 0
      %2362 = vmatpush2.bf16.msra.mxu0 0
      %2363 = vmatprep.mubr.bf16.mxu0 0
      %2364 = vmatmul.mubr.bf16.gmra.mxu0 %v2329
      %v2365 = vpop.f32.mrf.mxu0
      %v2366 = vadd.f32 0.0, %v2365
      %v2367 = vpop.f32.mrf.mxu0
      %v2368 = vpop.f32.mrf.mxu0
      %v2369 = vpop.f32.mrf.mxu0
      %2370 = vdwg.mxu0
      %v2371 = vadd.f32 %v2306, %v2366
      %v2372 = vld [vmem:[%s1169] sm:$0xf]
      %v2373 = vld [vmem:[%s1169 + $0x4] sm:$0xf]
      %v2374 = vld [vmem:[%s1169 + $0x8] sm:$0xf]
      %v2375 = vld [vmem:[%s1169 + $0xc] sm:$0xf]
      %v2377 = vunpack.c.l.b16 %v1996
      %v2378 = vpack.c.b16 %v2377, %v2377
      %v2380 = vshrl.u32 %v2378, 16
      %v2382 = vshll.u32 %v2378, 16
      %v2384 = vrot.slane %v2382, 1
      %v2385 = vor.u32 %v2380, %v2384
      %v2390 = vunpack.c.l.b16 %v2372
      %v2391 = vunpack.c.l.b16 %v2373
      %v2392 = vunpack.c.l.b16 %v2374
      %v2393 = vunpack.c.l.b16 %v2375
      %v2394 = vpack.c.b16 %v2391, %v2390
      %v2395 = vpack.c.b16 %v2393, %v2392
      %v2399 = vsel %vm810, %v2385, 0
      %2401 = vmatprep.subr.bf16.mxu0 0
      %2402 = vmatpush1.bf16.msra.mxu0 0
      %2403 = vmatprep.subr.bf16.mxu0 0
      %2404 = vmatpush1.bf16.msra.mxu0 0
      %2405 = vmatprep.subr.bf16.mxu0 0
      %2406 = vmatpush1.bf16.msra.mxu0 0
      %2407 = vmatprep.subr.bf16.mxu0 0
      %2408 = vmatpush1.bf16.msra.mxu0 0
      %2409 = vmatprep.subr.bf16.mxu0 0
      %2410 = vmatpush1.bf16.msra.mxu0 0
      %2411 = vmatprep.subr.bf16.mxu0 0
      %2412 = vmatpush1.bf16.msra.mxu0 0
      %2413 = vmatprep.subr.bf16.mxu0 0
      %2414 = vmatpush1.bf16.msra.mxu0 %v2395
      %2415 = vmatprep.subr.bf16.mxu0 0
      %2416 = vmatpush1.bf16.msra.mxu0 %v2394
      %2417 = vmatprep.subr.bf16.mxu0 0
      %2418 = vmatpush2.bf16.msra.mxu0 0
      %2419 = vmatprep.subr.bf16.mxu0 0
      %2420 = vmatpush2.bf16.msra.mxu0 0
      %2421 = vmatprep.subr.bf16.mxu0 0
      %2422 = vmatpush2.bf16.msra.mxu0 0
      %2423 = vmatprep.subr.bf16.mxu0 0
      %2424 = vmatpush2.bf16.msra.mxu0 0
      %2425 = vmatprep.subr.bf16.mxu0 0
      %2426 = vmatpush2.bf16.msra.mxu0 0
      %2427 = vmatprep.subr.bf16.mxu0 0
      %2428 = vmatpush2.bf16.msra.mxu0 0
      %2429 = vmatprep.subr.bf16.mxu0 0
      %2430 = vmatpush2.bf16.msra.mxu0 0
      %2431 = vmatprep.subr.bf16.mxu0 0
      %2432 = vmatpush2.bf16.msra.mxu0 0
      %2433 = vmatprep.mubr.bf16.mxu0 0
      %2434 = vmatmul.mubr.bf16.gmra.mxu0 %v2399
      %v2435 = vpop.f32.mrf.mxu0
      %v2436 = vadd.f32 0.0, %v2435
      %v2437 = vpop.f32.mrf.mxu0
      %v2438 = vpop.f32.mrf.mxu0
      %v2439 = vpop.f32.mrf.mxu0
      %2440 = vdwg.mxu0
      %v2441 = vadd.f32 %v2371, %v2436
      %v2442 = vld [vmem:[%s1240] sm:$0xf]
      %v2443 = vld [vmem:[%s1240 + $0x4] sm:$0xf]
      %v2444 = vld [vmem:[%s1240 + $0x8] sm:$0xf]
      %v2445 = vld [vmem:[%s1240 + $0xc] sm:$0xf]
      %v2447 = vunpack.c.l.b16 %v2001
      %v2448 = vpack.c.b16 %v2447, %v2447
      %v2450 = vshrl.u32 %v2448, 16
      %v2452 = vshll.u32 %v2448, 16
      %v2454 = vrot.slane %v2452, 1
      %v2455 = vor.u32 %v2450, %v2454
      %v2460 = vunpack.c.l.b16 %v2442
      %v2461 = vunpack.c.l.b16 %v2443
      %v2462 = vunpack.c.l.b16 %v2444
      %v2463 = vunpack.c.l.b16 %v2445
      %v2464 = vpack.c.b16 %v2461, %v2460
      %v2465 = vpack.c.b16 %v2463, %v2462
      %v2469 = vsel %vm810, %v2455, 0
      %2471 = vmatprep.subr.bf16.mxu0 0
      %2472 = vmatpush1.bf16.msra.mxu0 0
      %2473 = vmatprep.subr.bf16.mxu0 0
      %2474 = vmatpush1.bf16.msra.mxu0 0
      %2475 = vmatprep.subr.bf16.mxu0 0
      %2476 = vmatpush1.bf16.msra.mxu0 0
      %2477 = vmatprep.subr.bf16.mxu0 0
      %2478 = vmatpush1.bf16.msra.mxu0 0
      %2479 = vmatprep.subr.bf16.mxu0 0
      %2480 = vmatpush1.bf16.msra.mxu0 0
      %2481 = vmatprep.subr.bf16.mxu0 0
      %2482 = vmatpush1.bf16.msra.mxu0 0
      %2483 = vmatprep.subr.bf16.mxu0 0
      %2484 = vmatpush1.bf16.msra.mxu0 %v2465
      %2485 = vmatprep.subr.bf16.mxu0 0
      %2486 = vmatpush1.bf16.msra.mxu0 %v2464
      %2487 = vmatprep.subr.bf16.mxu0 0
      %2488 = vmatpush2.bf16.msra.mxu0 0
      %2489 = vmatprep.subr.bf16.mxu0 0
      %2490 = vmatpush2.bf16.msra.mxu0 0
      %2491 = vmatprep.subr.bf16.mxu0 0
      %2492 = vmatpush2.bf16.msra.mxu0 0
      %2493 = vmatprep.subr.bf16.mxu0 0
      %2494 = vmatpush2.bf16.msra.mxu0 0
      %2495 = vmatprep.subr.bf16.mxu0 0
      %2496 = vmatpush2.bf16.msra.mxu0 0
      %2497 = vmatprep.subr.bf16.mxu0 0
      %2498 = vmatpush2.bf16.msra.mxu0 0
      %2499 = vmatprep.subr.bf16.mxu0 0
      %2500 = vmatpush2.bf16.msra.mxu0 0
      %2501 = vmatprep.subr.bf16.mxu0 0
      %2502 = vmatpush2.bf16.msra.mxu0 0
      %2503 = vmatprep.mubr.bf16.mxu0 0
      %2504 = vmatmul.mubr.bf16.gmra.mxu0 %v2469
      %v2505 = vpop.f32.mrf.mxu0
      %v2506 = vadd.f32 0.0, %v2505
      %v2507 = vpop.f32.mrf.mxu0
      %v2508 = vpop.f32.mrf.mxu0
      %v2509 = vpop.f32.mrf.mxu0
      %2510 = vdwg.mxu0
      %v2511 = vadd.f32 %v2441, %v2506
      %v2512 = vld [vmem:[%s1311] sm:$0xf]
      %v2513 = vld [vmem:[%s1311 + $0x4] sm:$0xf]
      %v2514 = vld [vmem:[%s1311 + $0x8] sm:$0xf]
      %v2515 = vld [vmem:[%s1311 + $0xc] sm:$0xf]
      %v2517 = vunpack.c.l.b16 %v2116
      %v2518 = vpack.c.b16 %v2517, %v2517
      %v2520 = vshrl.u32 %v2518, 16
      %v2522 = vshll.u32 %v2518, 16
      %v2524 = vrot.slane %v2522, 1
      %v2525 = vor.u32 %v2520, %v2524
      %v2530 = vunpack.c.l.b16 %v2512
      %v2531 = vunpack.c.l.b16 %v2513
      %v2532 = vunpack.c.l.b16 %v2514
      %v2533 = vunpack.c.l.b16 %v2515
      %v2534 = vpack.c.b16 %v2531, %v2530
      %v2535 = vpack.c.b16 %v2533, %v2532
      %v2539 = vsel %vm810, %v2525, 0
      %2541 = vmatprep.subr.bf16.mxu0 0
      %2542 = vmatpush1.bf16.msra.mxu0 0
      %2543 = vmatprep.subr.bf16.mxu0 0
      %2544 = vmatpush1.bf16.msra.mxu0 0
      %2545 = vmatprep.subr.bf16.mxu0 0
      %2546 = vmatpush1.bf16.msra.mxu0 0
      %2547 = vmatprep.subr.bf16.mxu0 0
      %2548 = vmatpush1.bf16.msra.mxu0 0
      %2549 = vmatprep.subr.bf16.mxu0 0
      %2550 = vmatpush1.bf16.msra.mxu0 0
      %2551 = vmatprep.subr.bf16.mxu0 0
      %2552 = vmatpush1.bf16.msra.mxu0 0
      %2553 = vmatprep.subr.bf16.mxu0 0
      %2554 = vmatpush1.bf16.msra.mxu0 %v2535
      %2555 = vmatprep.subr.bf16.mxu0 0
      %2556 = vmatpush1.bf16.msra.mxu0 %v2534
      %2557 = vmatprep.subr.bf16.mxu0 0
      %2558 = vmatpush2.bf16.msra.mxu0 0
      %2559 = vmatprep.subr.bf16.mxu0 0
      %2560 = vmatpush2.bf16.msra.mxu0 0
      %2561 = vmatprep.subr.bf16.mxu0 0
      %2562 = vmatpush2.bf16.msra.mxu0 0
      %2563 = vmatprep.subr.bf16.mxu0 0
      %2564 = vmatpush2.bf16.msra.mxu0 0
      %2565 = vmatprep.subr.bf16.mxu0 0
      %2566 = vmatpush2.bf16.msra.mxu0 0
      %2567 = vmatprep.subr.bf16.mxu0 0
      %2568 = vmatpush2.bf16.msra.mxu0 0
      %2569 = vmatprep.subr.bf16.mxu0 0
      %2570 = vmatpush2.bf16.msra.mxu0 0
      %2571 = vmatprep.subr.bf16.mxu0 0
      %2572 = vmatpush2.bf16.msra.mxu0 0
      %2573 = vmatprep.mubr.bf16.mxu0 0
      %2574 = vmatmul.mubr.bf16.gmra.mxu0 %v2539
      %v2575 = vpop.f32.mrf.mxu0
      %v2576 = vadd.f32 0.0, %v2575
      %v2577 = vpop.f32.mrf.mxu0
      %v2578 = vpop.f32.mrf.mxu0
      %v2579 = vpop.f32.mrf.mxu0
      %2580 = vdwg.mxu0
      %v2581 = vadd.f32 %v2511, %v2576
      %v2582 = vadd.f32 %v2581, %v785
      %v2583 = vmax.f32 %v2582, 0.0
      %v2584 = vpack.c.bf16 %v2583, %v2583
      %v2587 = vunpack.c.l.s4 1983009808
      %v2588 = vunpack.c.0.s8 %v2587
      %v2589 = vlaneseq
      %v2590 = vshrl.u32 %v2589, 7
      %v2591 = vsub.s32 %v2588, %v2590
      %v2592 = vrot.slane %v2584, %v2591
      %2593 = vrot.lane.b32.xlu0 %v2592, 64
      %v2594 = vpop.permute.xlu0 %2593
      %vm2596 = vcmask 779776
      %vm2597 = vmand %vm2596, %vm1386
      %v2598 = vld [vmem:[#allocation3] sm:$0x3]
      %v2599 = vsel %vm2597, %v2594, %v2598
      %2600 = vst [vmem:[#allocation3] sm:$0x3] %v2599
      %v2601 = vld [vmem:[#allocation3] sm:$0x3]
      %v2602 = vld [vmem:[%s5] sm:$0xf]
      %v2603 = vld [vmem:[%s5 + $0x4] sm:$0xf]
      %v2604 = vld [vmem:[%s5 + $0x8] sm:$0xf]
      %v2605 = vld [vmem:[%s5 + $0xc] sm:$0xf]
      %v2606 = vld [vmem:[%s5 + $0x10] sm:$0xf]
      %v2607 = vld [vmem:[%s5 + $0x14] sm:$0xf]
      %v2608 = vld [vmem:[%s5 + $0x18] sm:$0xf]
      %v2609 = vld [vmem:[%s5 + $0x1c] sm:$0xf]
      %v2610 = vld [vmem:[%s5 + $0x20] sm:$0xf]
      %v2611 = vld [vmem:[%s5 + $0x24] sm:$0xf]
      %v2612 = vld [vmem:[%s5 + $0x28] sm:$0xf]
      %v2613 = vld [vmem:[%s5 + $0x2c] sm:$0xf]
      %v2614 = vld [vmem:[%s6] sm:$0x1]
      %v2616 = vlaneseq
      %v2617 = vshrl.u32 %v2616, 7
      %v2618 = vsub.s32 0, %v2617
      %v2619 = vrot.slane %v2614, %v2618
      %v2633 = vunpack.c.l.b16 %v2602
      %v2634 = vunpack.c.l.b16 %v2603
      %v2635 = vunpack.c.l.b16 %v2604
      %v2636 = vunpack.c.l.b16 %v2605
      %v2637 = vunpack.c.l.b16 %v2606
      %v2638 = vunpack.c.l.b16 %v2607
      %v2639 = vunpack.c.l.b16 %v2608
      %v2640 = vunpack.c.l.b16 %v2609
      %v2641 = vunpack.c.l.b16 %v2610
      %v2642 = vunpack.c.l.b16 %v2611
      %v2643 = vunpack.c.l.b16 %v2612
      %v2644 = vunpack.c.l.b16 %v2613
      %v2645 = vpack.c.b16 %v2634, %v2633
      %v2646 = vpack.c.b16 %v2636, %v2635
      %v2647 = vpack.c.b16 %v2638, %v2637
      %v2648 = vpack.c.b16 %v2640, %v2639
      %v2649 = vpack.c.b16 %v2642, %v2641
      %v2650 = vpack.c.b16 %v2644, %v2643
      %vm2657 = vcmask 785408
      %v2659 = vsel %vm2657, %v2601, 0
      %2661 = vmatprep.subr.bf16.mxu0 0
      %2662 = vmatpush1.bf16.msra.mxu0 0
      %2663 = vmatprep.subr.bf16.mxu0 0
      %2664 = vmatpush1.bf16.msra.mxu0 0
      %2665 = vmatprep.subr.bf16.mxu0 0
      %2666 = vmatpush1.bf16.msra.mxu0 %v2650
      %2667 = vmatprep.subr.bf16.mxu0 0
      %2668 = vmatpush1.bf16.msra.mxu0 %v2649
      %2669 = vmatprep.subr.bf16.mxu0 0
      %2670 = vmatpush1.bf16.msra.mxu0 %v2648
      %2671 = vmatprep.subr.bf16.mxu0 0
      %2672 = vmatpush1.bf16.msra.mxu0 %v2647
      %2673 = vmatprep.subr.bf16.mxu0 0
      %2674 = vmatpush1.bf16.msra.mxu0 %v2646
      %2675 = vmatprep.subr.bf16.mxu0 0
      %2676 = vmatpush1.bf16.msra.mxu0 %v2645
      %2677 = vmatprep.subr.bf16.mxu0 0
      %2678 = vmatpush2.bf16.msra.mxu0 0
      %2679 = vmatprep.subr.bf16.mxu0 0
      %2680 = vmatpush2.bf16.msra.mxu0 0
      %2681 = vmatprep.subr.bf16.mxu0 0
      %2682 = vmatpush2.bf16.msra.mxu0 0
      %2683 = vmatprep.subr.bf16.mxu0 0
      %2684 = vmatpush2.bf16.msra.mxu0 0
      %2685 = vmatprep.subr.bf16.mxu0 0
      %2686 = vmatpush2.bf16.msra.mxu0 0
      %2687 = vmatprep.subr.bf16.mxu0 0
      %2688 = vmatpush2.bf16.msra.mxu0 0
      %2689 = vmatprep.subr.bf16.mxu0 0
      %2690 = vmatpush2.bf16.msra.mxu0 0
      %2691 = vmatprep.subr.bf16.mxu0 0
      %2692 = vmatpush2.bf16.msra.mxu0 0
      %2693 = vmatprep.mubr.bf16.mxu0 0
      %2694 = vmatmul.mubr.bf16.gmra.mxu0 %v2659
      %v2695 = vpop.f32.mrf.mxu0
      %v2696 = vadd.f32 %v2619, %v2695
      %v2697 = vpop.f32.mrf.mxu0
      %v2698 = vpop.f32.mrf.mxu0
      %v2699 = vpop.f32.mrf.mxu0
      %2700 = vdwg.mxu0
      %v2701 = vmul.f32 %v2696, 5.656854
      %v2702 = vld [vmem:[%s347] sm:$0x7]
      %v2703 = vadd.f32 %v2701, %v2702
      %vm2704 = vcmask 256000
      %2705 = vst.msk [vmem:[%s354] sm:$0x7] %vm2704, %v2703
      %p2706 = scmp.lt.s32.totalorder %s23, 1
      %s2707 = scalar_select %p2706, %s23, 1
      %p2708 = scmp.lt.s32.totalorder %s24, 0
      %s2709 = scalar_select %p2708, %s24, 0
      %s2710 = sadd.s32 %s2709, %s2707
      %s2711 = smul.addr %s2710, 4
      %s2712 = scalar_lea.vmem %s8, %s2711
      // Predicated region
      $region53: #{conv2d_subsampling_forward.1} parent=51 // pred_check
        %p2713 = pneg %p231
      $region54: #{conv2d_subsampling_forward.1} parent=51 // pred_check_branch
        %2715 = sbr.rel (%p2713) target = $region56
      $region55: #{conv2d_subsampling_forward.1} parent=51 // pred_region
        _
      $region56: #{conv2d_subsampling_forward.1} parent=51 // pred_fallthru
        _
    $region52: #{conv2d_subsampling_forward.1} parent=5 // pred_fallthru
      _
    %p2716 = scmp.le.s32.totalorder 2, %s14
    // Predicated region
    $region57: #{conv2d_subsampling_forward.1} parent=5 // pred_check
      %p2717 = pneg %p2716
    $region58: #{conv2d_subsampling_forward.1} parent=5 // pred_check_branch
      %2719 = sbr.rel (%p2717) target = $region60
    $region59: #{conv2d_subsampling_forward.1} parent=5 // pred_region
      %s2720 = ssub.s32 %s14, 2
      // Predicated region
      $region61: #{conv2d_subsampling_forward.1} parent=59 // pred_check
        %p2721 = pneg %p237
      $region62: #{conv2d_subsampling_forward.1} parent=59 // pred_check_branch
        %2723 = sbr.rel (%p2721) target = $region64
      $region63: #{conv2d_subsampling_forward.1} parent=59 // pred_region
        %p2724 = scmp.lt.s32.totalorder %s25, 1
        %s2725 = scalar_select %p2724, %s25, 1
        %p2726 = scmp.lt.s32.totalorder %s26, 0
        %s2727 = scalar_select %p2726, %s26, 0
        %s2728 = sadd.s32 %s2727, %s2725
        %s2729 = smul.addr %s2728, 4
        %s2730 = scalar_lea.vmem %s8, %s2729
      $region64: #{conv2d_subsampling_forward.1} parent=59 // pred_fallthru
        _
    $region60: #{conv2d_subsampling_forward.1} parent=5 // pred_fallthru
      _
  $region6: #{conv2d_subsampling_forward.1} parent=0 // loop_footer
    %s18 = sadd.s32 1, %s14
  $region7: #{conv2d_subsampling_forward.1} parent=0 // loop_footer_branch
    %13 = sbr.rel target = $region3
  $region8: #{conv2d_subsampling_forward.1} parent=0 // loop_exit
    _

</llo_original>
